<compile_context>
chip_gen: v7x
topology: tpu7x:2x2x1
jax: 0.10.0
libtpu: 0.0.40
codegen_flags: <defaults>
</compile_context>

<pallas_src>
import jax
import jax.numpy as jnp
import numpy as np
from jax.experimental import pallas as pl
from jax.experimental.pallas import tpu as pltpu


def _make_kernel(dim_out, cheb_k, num_supports, pad_cols):
    """Kernel processing one TBN-row batch block per grid step."""
    S = num_supports
    K = cheb_k

    def kernel(*refs):
        x_ref, s1_ref, s2_ref, ge_ref = refs[:4]
        sup_refs = refs[4:4 + S]
        (w0_ref, wmge_ref, bm_ref,
         wgp_ref, bg_ref,
         wuid_ref, wup_ref, bu_ref,
         wh_ref, bh_ref, o_ref) = refs[4 + S:]

        x2 = x_ref[...]          # (TBN, dim_in)        bf16
        s1b = s1_ref[...]        # (TBN, dim_state)     bf16
        s2b = s2_ref[...]        # (TBN, dim_state)     bf16
        geb = ge_ref[...]        # (TBN, gate_emb_dim)  bf16

        # 32-lane-aligned feature concat (weight rows were permuted host-side to match).
        X2 = jnp.concatenate([s1b, s2b, x2], axis=-1)            # (TBN, gc_in) bf16

        # Fused [mlpgate_xss | gate_identity] dot -> one lane-dense 4*dim_out output.
        mix = jnp.dot(X2, w0_ref[...], preferred_element_type=jnp.float32)
        mr = jax.nn.sigmoid(
            mix[:, :dim_out]
            + jnp.dot(geb, wmge_ref[...], preferred_element_type=jnp.float32)
            + bm_ref[...])
        state = mr * s1b + (1.0 - mr) * s2b                      # f32

        # Block-diagonal supports: one full-tile graph matmul per Chebyshev term.
        A = [sup_refs[si][0] for si in range(S)]                 # (TBN, TBN) bf16

        def cheb_prop(acc, feat_bf16, w_prop_ref):
            """acc (f32) += sum over supports / orders k>=1 of (T_k @ feat) @ W_k."""
            feat_f32 = feat_bf16.astype(jnp.float32)
            t = 0
            for si in range(S):
                prev_prev = feat_f32
                prev = jnp.dot(A[si], feat_bf16,
                               preferred_element_type=jnp.float32)          # k = 1
                acc = acc + jnp.dot(prev.astype(jnp.bfloat16), w_prop_ref[t],
                                    preferred_element_type=jnp.float32)
                t += 1
                for _ in range(2, K):                                        # k = 2..K-1
                    nxt = (2.0 * jnp.dot(A[si], prev.astype(jnp.bfloat16),
                                         preferred_element_type=jnp.float32)
                           - prev_prev)
                    prev_prev, prev = prev, nxt
                    acc = acc + jnp.dot(prev.astype(jnp.bfloat16), w_prop_ref[t],
                                        preferred_element_type=jnp.float32)
                    t += 1
            return acc

        # ---- gate AGCN (identity term already inside `mix`) -> z1, z2, r ----
        gate_acc = cheb_prop(mix[:, dim_out:], X2, wgp_ref)
        zz_r = jax.nn.sigmoid(gate_acc + bg_ref[...])
        z1 = zz_r[:, 0:dim_out]
        z2 = zz_r[:, dim_out:2 * dim_out]
        r = zz_r[:, 2 * dim_out:3 * dim_out]

        # ---- update AGCN -> hc ----
        cand = jnp.concatenate([(z1 * s1b).astype(jnp.bfloat16),
                                (z2 * s2b).astype(jnp.bfloat16),
                                x2], axis=-1)                    # (TBN, gc_in) bf16
        upd_acc = jnp.dot(cand, wuid_ref[...], preferred_element_type=jnp.float32)
        upd_acc = cheb_prop(upd_acc, cand, wup_ref)
        hc = jnp.tanh(upd_acc + bu_ref[...])

        # ---- GRU blend + hop projection, packed into one 128-lane f32 slab ----
        h = r * state + (1.0 - r) * hc                           # (TBN, dim_out) f32
        t_out = (jnp.dot(h.astype(jnp.bfloat16), wh_ref[...],
                         preferred_element_type=jnp.float32) + bh_ref[...])
        pieces = [h, t_out]
        if pad_cols:
            pieces.append(jnp.zeros((h.shape[0], pad_cols), jnp.float32))
        o_ref[...] = jnp.concatenate(pieces, axis=-1)            # unmasked full-lane store

    return kernel


def adcrnn_decoder4(xt, state1, state2, gatembedding, supports, params, cheb_k):
    """Returns (current_state, transnext_state) matching ADCRNN_Decoder4.forward."""
    B, N, dim_in = xt.shape
    dim_state = state1.shape[-1]
    gate_emb_dim = gatembedding.shape[-1]
    supports = list(supports)
    S = len(supports)
    K = int(cheb_k)
    assert K >= 2, "cheb_k must be >= 2 (as in the PyTorch module)"
    assert N % 8 == 0, "node count N must be a multiple of 8 (pad the graph otherwise)"
    gc_in = dim_in + 2 * dim_state

    w_gate, w_upd = params["w_gate"], params["w_upd"]
    dim_out = w_upd.shape[1]
    hid_out = params["w_hop"].shape[1]
    assert w_gate.shape == (S * K * gc_in, 3 * dim_out)
    assert w_upd.shape == (S * K * gc_in, dim_out)
    assert params["w_mlp"].shape == (gc_in + gate_emb_dim, dim_out)

    bf = jnp.bfloat16

    # ---- host-side weight prep (static slicing / permutation / pre-sums) ----
    # Module feature order [x | s1 | s2]  ->  kernel order [s1 | s2 | x] (32-lane aligned).
    perm = np.concatenate([np.arange(dim_in, dim_in + dim_state),
                           np.arange(dim_in + dim_state, gc_in),
                           np.arange(dim_in)])

    Wg3 = w_gate.reshape(S * K, gc_in, 3 * dim_out)
    Wu3 = w_upd.reshape(S * K, gc_in, dim_out)
    prop_idx = [si * K + k for si in range(S) for k in range(1, K)]
    wg_id = Wg3[0::K].sum(axis=0)[perm]                     # summed T0 blocks, permuted
    wu_id = Wu3[0::K].sum(axis=0)[perm]
    wg_prop = jnp.stack([Wg3[i] for i in prop_idx], axis=0)[:, perm, :]
    wu_prop = jnp.stack([Wu3[i] for i in prop_idx], axis=0)[:, perm, :]
    wm_xss = params["w_mlp"][:gc_in][perm]
    wm_ge = params["w_mlp"][gc_in:]
    w0 = jnp.concatenate([wm_xss, wg_id], axis=1)           # (gc_in, 4*dim_out) fused

    bm = params["b_mlp"].reshape(1, -1).astype(jnp.float32)
    bg = params["b_gate"].reshape(1, -1).astype(jnp.float32)
    bu = params["b_upd"].reshape(1, -1).astype(jnp.float32)
    bh = params["b_hop"].reshape(1, -1).astype(jnp.float32)

    w0 = w0.astype(bf)
    wm_ge = wm_ge.astype(bf)
    wg_prop = wg_prop.astype(bf)
    wu_id = wu_id.astype(bf)
    wu_prop = wu_prop.astype(bf)
    w_hop = params["w_hop"].astype(bf)

    # ---- batch blocking: 128-row tiles (v5e sweet spot), 256 on bigger batches so the
    #      256-wide v6e/v7x MXU fills and v7x still gets >= 2 parallel grid steps. ----
    target_rows = 256 if (B * N) >= 512 else 128
    TB = max(1, min(B, target_rows // max(N, 1)))
    while B % TB:
        TB -= 1
    TBN = TB * N
    G = B // TB

    # bf16 activation slabs (halves HBM->VMEM DMA; all accumulation stays f32 in-kernel).
    x2 = xt.reshape(B * N, dim_in).astype(bf)
    s1_2 = state1.reshape(B * N, dim_state).astype(bf)
    s2_2 = state2.reshape(B * N, dim_state).astype(bf)
    ge2 = gatembedding.reshape(B * N, gate_emb_dim).astype(bf)

    # Block-diagonal supports: (G, TBN, TBN) per support, built host-side.
    # TODO(synk): for large N keep supports in HBM (memory_space=pl.ANY) and DMA node-row
    # panels manually instead of materializing full (TBN, TBN) blocks.
    eye_tb = jnp.eye(TB, dtype=jnp.float32)
    sup_bd = [jnp.einsum('gtnm,ts->gtnsm',
                         A.astype(jnp.float32).reshape(G, TB, N, N),
                         eye_tb).reshape(G, TBN, TBN).astype(bf)
              for A in supports]

    # Lane-dense packed output: [h (dim_out) | trans (hid_out) | zero pad] -> mult of 128.
    out_cols = ((dim_out + hid_out + 127) // 128) * 128
    pad_cols = out_cols - dim_out - hid_out

    def row_spec(c):
        return pl.BlockSpec((TBN, c), lambda i: (i, 0))

    def full_spec(a):
        return pl.BlockSpec(a.shape, lambda i, _nd=a.ndim: (0,) * _nd)

    sup_spec = pl.BlockSpec((1, TBN, TBN), lambda i: (i, 0, 0))
    out_spec = pl.BlockSpec((TBN, out_cols), lambda i: (i, 0))

    weights = [w0, wm_ge, bm, wg_prop, bg, wu_id, wu_prop, bu, w_hop, bh]

    # ---- explicit VMEM budget (padded to (8,128) tiles, double-buffered) ----
    def _padded_bytes(shape, dtype):
        shp = list(shape)
        shp[-1] = -(-shp[-1] // 128) * 128
        if len(shp) >= 2:
            shp[-2] = -(-shp[-2] // 8) * 8
        return int(np.prod(shp)) * jnp.dtype(dtype).itemsize

    block_bytes = (_padded_bytes((TBN, dim_in), bf)
                   + 2 * _padded_bytes((TBN, dim_state), bf)
                   + _padded_bytes((TBN, gate_emb_dim), bf)
                   + S * _padded_bytes((1, TBN, TBN), bf)
                   + _padded_bytes((TBN, out_cols), jnp.float32)
                   + sum(_padded_bytes(w.shape, w.dtype) for w in weights))
    # generous headroom, clamped to a window that is valid on v5e/v6e and v7x (64 MiB VMEM)
    vmem_limit = int(min(max(4 * block_bytes + (4 << 20), 32 << 20), 64 << 20))

    # ---- scheduling hint for XLA (this kernel is latency/overhead-bound) ----
    graph_flops = 2 * 2 * S * (K - 1) * G * TBN * TBN * gc_in
    dense_flops = 2 * B * N * (gc_in * 4 * dim_out
                               + gate_emb_dim * dim_out
                               + S * (K - 1) * gc_in * (3 * dim_out + dim_out)
                               + gc_in * dim_out
                               + dim_out * hid_out)
    bytes_accessed = (2 * (x2.size + s1_2.size + s2_2.size + ge2.size)
                      + 2 * sum(int(np.prod(s.shape)) for s in sup_bd)
                      + sum(int(np.prod(w.shape)) * jnp.dtype(w.dtype).itemsize
                            for w in weights)
                      + 4 * B * N * out_cols)
    cost = pl.CostEstimate(flops=int(graph_flops + dense_flops),
                           transcendentals=int(B * N * 5 * dim_out),
                           bytes_accessed=int(bytes_accessed))

    kernel = _make_kernel(dim_out, K, S, pad_cols)

    out = pl.pallas_call(
        kernel,
        out_shape=jax.ShapeDtypeStruct((B * N, out_cols), jnp.float32),
        grid=(G,),
        in_specs=([row_spec(dim_in), row_spec(dim_state), row_spec(dim_state),
                   row_spec(gate_emb_dim)]
                  + [sup_spec] * S
                  + [full_spec(w) for w in weights]),
        out_specs=out_spec,
        compiler_params=pltpu.CompilerParams(
            dimension_semantics=("parallel",),
            vmem_limit_bytes=vmem_limit),
        cost_estimate=cost,
    )(x2, s1_2, s2_2, ge2, *sup_bd, *weights)

    current_state = out[:, :dim_out].reshape(B, N, dim_out)
    transnext_state = out[:, dim_out:dim_out + hid_out].reshape(B, N, hid_out)
    return current_state, transnext_state


# ----- pure-JAX f32 reference (mirrors the PyTorch forward) for the correctness check ----
def _reference(xt, s1, s2, ge, supports, params, cheb_k):
    N = xt.shape[1]
    dim_out = params["w_upd"].shape[1]

    inp = jnp.concatenate([xt, s1, s2, ge], axis=-1)
    mr = jax.nn.sigmoid(inp @ params["w_mlp"] + params["b_mlp"])
    state = mr * s1 + (1.0 - mr) * s2

    def agcn(X, W, Bv):
        eye = jnp.eye(N, dtype=jnp.float32)[None]
        xg = []
        for A in supports:
            terms = [jnp.broadcast_to(eye, A.shape), A]
            for _ in range(2, cheb_k):
                terms.append(2.0 * jnp.einsum('bnm,bmk->bnk', A, terms[-1]) - terms[-2])
            for T in terms:
                xg.append(jnp.einsum('bnm,bmc->bnc', T, X))
        xg = jnp.concatenate(xg, axis=-1)
        return jnp.einsum('bni,io->bno', xg, W) + Bv

    X = jnp.concatenate([xt, s1, s2], axis=-1)
    zz_r = jax.nn.sigmoid(agcn(X, params["w_gate"], params["b_gate"]))
    z1 = zz_r[..., :dim_out]
    z2 = zz_r[..., dim_out:2 * dim_out]
    r = zz_r[..., 2 * dim_out:]
    cand = jnp.concatenate([xt, z1 * s1, z2 * s2], axis=-1)
    hc = jnp.tanh(agcn(cand, params["w_upd"], params["b_upd"]))
    h = r * state + (1.0 - r) * hc
    trans = h @ params["w_hop"] + params["b_hop"]
    return h, trans


def _xavier_normal(key, shape):
    fan_in, fan_out = shape
    std = np.sqrt(2.0 / (fan_in + fan_out))
    return std * jax.random.normal(key, shape, jnp.float32)


if __name__ == "__main__":
    B, N = 16, 16
    dim_in, dim_state, dim_out = 4, 32, 32
    gate_emb_dim, hidden_out, cheb_k = 8, 64, 3

    key = jax.random.PRNGKey(0)
    ks = jax.random.split(key, 12)

    x = jax.random.normal(ks[0], (B, N, dim_in), jnp.float32)
    s1 = jax.random.normal(ks[1], (B, N, dim_state), jnp.float32)
    s2 = jax.random.normal(ks[2], (B, N, dim_state), jnp.float32)
    ge = jax.random.normal(ks[3], (B, N, gate_emb_dim), jnp.float32)
    sup_a = jax.nn.softmax(jax.random.normal(ks[4], (B, N, N), jnp.float32), axis=-1)
    sup_b = jax.nn.softmax(jax.random.normal(ks[5], (B, N, N), jnp.float32), axis=-1)
    supports = [sup_a, sup_b]

    gc_in = dim_in + 2 * dim_state
    params = {
        # nn.Linear / AGCN weights stored transposed so everything is x @ W + b
        "w_mlp": _xavier_normal(ks[6], (gc_in + gate_emb_dim, dim_out)),
        "b_mlp": 0.01 * jax.random.normal(ks[7], (dim_out,), jnp.float32),
        "w_gate": _xavier_normal(ks[8], (2 * cheb_k * gc_in, 3 * dim_out)),
        "b_gate": jnp.zeros((3 * dim_out,), jnp.float32),
        "w_upd": _xavier_normal(ks[9], (2 * cheb_k * gc_in, dim_out)),
        "b_upd": jnp.zeros((dim_out,), jnp.float32),
        "w_hop": _xavier_normal(ks[10], (dim_out, hidden_out)),
        "b_hop": 0.01 * jax.random.normal(ks[11], (hidden_out,), jnp.float32),
    }

    h, trans = adcrnn_decoder4(x, s1, s2, ge, supports, params, cheb_k)
    h, trans = jax.block_until_ready((h, trans))

    # bf16 MXU operands (f32 accumulation) vs f32 reference -> tolerance widened to 5e-2
    # as anticipated in the perf review.
    h_ref, t_ref = _reference(x, s1, s2, ge, supports, params, cheb_k)
    np.testing.assert_allclose(np.asarray(h), np.asarray(h_ref), rtol=5e-2, atol=5e-2)
    np.testing.assert_allclose(np.asarray(trans), np.asarray(t_ref), rtol=5e-2, atol=5e-2)

    print("KERNEL_OK")
</pallas_src>

<mosaic_0001>
module attributes {stable_mosaic.version = 11 : i64} {
  func.func @kernel(%arg0: i32, %arg1: memref<128x4xbf16, #tpu.memory_space<vmem>>, %arg2: memref<128x32xbf16, #tpu.memory_space<vmem>>, %arg3: memref<128x32xbf16, #tpu.memory_space<vmem>>, %arg4: memref<128x8xbf16, #tpu.memory_space<vmem>>, %arg5: memref<1x128x128xbf16, #tpu.memory_space<vmem>>, %arg6: memref<1x128x128xbf16, #tpu.memory_space<vmem>>, %arg7: memref<68x128xbf16, #tpu.memory_space<vmem>>, %arg8: memref<8x32xbf16, #tpu.memory_space<vmem>>, %arg9: memref<1x32xf32, #tpu.memory_space<vmem>>, %arg10: memref<4x68x96xbf16, #tpu.memory_space<vmem>>, %arg11: memref<1x96xf32, #tpu.memory_space<vmem>>, %arg12: memref<68x32xbf16, #tpu.memory_space<vmem>>, %arg13: memref<4x68x32xbf16, #tpu.memory_space<vmem>>, %arg14: memref<1x32xf32, #tpu.memory_space<vmem>>, %arg15: memref<32x64xbf16, #tpu.memory_space<vmem>>, %arg16: memref<1x64xf32, #tpu.memory_space<vmem>>, %arg17: memref<128x128xf32, #tpu.memory_space<vmem>>) attributes {dimension_semantics = [#tpu.dimension_semantics<parallel>], iteration_bounds = array<i64: 2>, scalar_prefetch = 0 : i64, scratch_operands = 0 : i64, tpu.core_type = #tpu.core_type<tc>, window_params = [{transform_indices = @transform_0, window_bounds = array<i64: 128, 4>}, {transform_indices = @transform_1, window_bounds = array<i64: 128, 32>}, {transform_indices = @transform_2, window_bounds = array<i64: 128, 32>}, {transform_indices = @transform_3, window_bounds = array<i64: 128, 8>}, {transform_indices = @transform_4, window_bounds = array<i64: 1, 128, 128>}, {transform_indices = @transform_5, window_bounds = array<i64: 1, 128, 128>}, {pipeline_mode = #tpu.pipeline_mode<synchronous>, transform_indices = @transform_6, window_bounds = array<i64: 68, 128>}, {pipeline_mode = #tpu.pipeline_mode<synchronous>, transform_indices = @transform_7, window_bounds = array<i64: 8, 32>}, {pipeline_mode = #tpu.pipeline_mode<synchronous>, transform_indices = @transform_8, window_bounds = array<i64: 1, 32>}, {pipeline_mode = #tpu.pipeline_mode<synchronous>, transform_indices = @transform_9, window_bounds = array<i64: 4, 68, 96>}, {pipeline_mode = #tpu.pipeline_mode<synchronous>, transform_indices = @transform_10, window_bounds = array<i64: 1, 96>}, {pipeline_mode = #tpu.pipeline_mode<synchronous>, transform_indices = @transform_11, window_bounds = array<i64: 68, 32>}, {pipeline_mode = #tpu.pipeline_mode<synchronous>, transform_indices = @transform_12, window_bounds = array<i64: 4, 68, 32>}, {pipeline_mode = #tpu.pipeline_mode<synchronous>, transform_indices = @transform_13, window_bounds = array<i64: 1, 32>}, {pipeline_mode = #tpu.pipeline_mode<synchronous>, transform_indices = @transform_14, window_bounds = array<i64: 32, 64>}, {pipeline_mode = #tpu.pipeline_mode<synchronous>, transform_indices = @transform_15, window_bounds = array<i64: 1, 64>}, {transform_indices = @transform_16, window_bounds = array<i64: 128, 128>}]} {
    %c0 = arith.constant 0 : index
    %c0_0 = arith.constant 0 : index
    %0 = vector.load %arg1[%c0, %c0_0] : memref<128x4xbf16, #tpu.memory_space<vmem>>, vector<128x4xbf16>
    %c0_1 = arith.constant 0 : index
    %c0_2 = arith.constant 0 : index
    %1 = vector.load %arg2[%c0_1, %c0_2] : memref<128x32xbf16, #tpu.memory_space<vmem>>, vector<128x32xbf16>
    %c0_3 = arith.constant 0 : index
    %c0_4 = arith.constant 0 : index
    %2 = vector.load %arg3[%c0_3, %c0_4] : memref<128x32xbf16, #tpu.memory_space<vmem>>, vector<128x32xbf16>
    %c0_5 = arith.constant 0 : index
    %c0_6 = arith.constant 0 : index
    %3 = vector.load %arg4[%c0_5, %c0_6] : memref<128x8xbf16, #tpu.memory_space<vmem>>, vector<128x8xbf16>
    %4 = tpu.concatenate %1, %2, %0 in 1 : vector<128x32xbf16>, vector<128x32xbf16>, vector<128x4xbf16> -> vector<128x68xbf16>
    %c0_7 = arith.constant 0 : index
    %c0_8 = arith.constant 0 : index
    %5 = vector.load %arg7[%c0_7, %c0_8] : memref<68x128xbf16, #tpu.memory_space<vmem>>, vector<68x128xbf16>
    %cst = arith.constant dense<0.000000e+00> : vector<128x128xf32>
    %6 = tpu.matmul %4, %5, %cst {dimension_numbers = #tpu.dot_dimension_numbers<[1], [0], [0], [1], [0, 0, 1, 1], [], []>} : vector<128x68xbf16>, vector<68x128xbf16>, vector<128x128xf32> -> vector<128x128xf32>
    %7 = vector.extract_strided_slice %6 {offsets = [0, 0], sizes = [128, 32], strides = [1, 1]} : vector<128x128xf32> to vector<128x32xf32>
    %c0_9 = arith.constant 0 : index
    %c0_10 = arith.constant 0 : index
    %8 = vector.load %arg8[%c0_9, %c0_10] : memref<8x32xbf16, #tpu.memory_space<vmem>>, vector<8x32xbf16>
    %cst_11 = arith.constant dense<0.000000e+00> : vector<128x32xf32>
    %9 = tpu.matmul %3, %8, %cst_11 {dimension_numbers = #tpu.dot_dimension_numbers<[1], [0], [0], [1], [0, 0, 1, 1], [], []>} : vector<128x8xbf16>, vector<8x32xbf16>, vector<128x32xf32> -> vector<128x32xf32>
    %10 = arith.addf %7, %9 : vector<128x32xf32>
    %c0_12 = arith.constant 0 : index
    %c0_13 = arith.constant 0 : index
    %11 = vector.load %arg9[%c0_12, %c0_13] : memref<1x32xf32, #tpu.memory_space<vmem>>, vector<1x32xf32>
    %12 = vector.broadcast %11 : vector<1x32xf32> to vector<128x32xf32>
    %13 = arith.addf %10, %12 : vector<128x32xf32>
    %14 = arith.negf %13 : vector<128x32xf32>
    %15 = math.exp %14 : vector<128x32xf32>
    %cst_14 = arith.constant 1.000000e+00 : f32
    %16 = vector.broadcast %cst_14 : f32 to vector<128x32xf32>
    %17 = arith.addf %16, %15 : vector<128x32xf32>
    %18 = arith.divf %16, %17 : vector<128x32xf32>
    %19 = arith.extf %1 : vector<128x32xbf16> to vector<128x32xf32>
    %20 = arith.mulf %18, %19 : vector<128x32xf32>
    %cst_15 = arith.constant 1.000000e+00 : f32
    %21 = vector.broadcast %cst_15 : f32 to vector<128x32xf32>
    %22 = arith.subf %21, %18 : vector<128x32xf32>
    %23 = arith.extf %2 : vector<128x32xbf16> to vector<128x32xf32>
    %24 = arith.mulf %22, %23 : vector<128x32xf32>
    %25 = arith.addf %20, %24 : vector<128x32xf32>
    %c0_16 = arith.constant 0 : index
    %c0_17 = arith.constant 0 : index
    %c0_18 = arith.constant 0 : index
    %26 = vector.load %arg5[%c0_16, %c0_17, %c0_18] : memref<1x128x128xbf16, #tpu.memory_space<vmem>>, vector<1x128x128xbf16>
    %27 = vector.shape_cast %26 : vector<1x128x128xbf16> to vector<128x128xbf16>
    %c0_19 = arith.constant 0 : index
    %c0_20 = arith.constant 0 : index
    %c0_21 = arith.constant 0 : index
    %28 = vector.load %arg6[%c0_19, %c0_20, %c0_21] : memref<1x128x128xbf16, #tpu.memory_space<vmem>>, vector<1x128x128xbf16>
    %29 = vector.shape_cast %28 : vector<1x128x128xbf16> to vector<128x128xbf16>
    %30 = vector.extract_strided_slice %6 {offsets = [0, 32], sizes = [128, 96], strides = [1, 1]} : vector<128x128xf32> to vector<128x96xf32>
    %31 = arith.extf %4 : vector<128x68xbf16> to vector<128x68xf32>
    %cst_22 = arith.constant dense<0.000000e+00> : vector<128x68xf32>
    %32 = tpu.matmul %27, %4, %cst_22 {dimension_numbers = #tpu.dot_dimension_numbers<[1], [0], [0], [1], [0, 0, 1, 1], [], []>} : vector<128x128xbf16>, vector<128x68xbf16>, vector<128x68xf32> -> vector<128x68xf32>
    %33 = arith.truncf %32 : vector<128x68xf32> to vector<128x68xbf16>
    %c0_23 = arith.constant 0 : index
    %c0_24 = arith.constant 0 : index
    %c0_25 = arith.constant 0 : index
    %34 = vector.load %arg10[%c0_23, %c0_24, %c0_25] : memref<4x68x96xbf16, #tpu.memory_space<vmem>>, vector<1x68x96xbf16>
    %35 = vector.shape_cast %34 : vector<1x68x96xbf16> to vector<68x96xbf16>
    %cst_26 = arith.constant dense<0.000000e+00> : vector<128x96xf32>
    %36 = tpu.matmul %33, %35, %cst_26 {dimension_numbers = #tpu.dot_dimension_numbers<[1], [0], [0], [1], [0, 0, 1, 1], [], []>} : vector<128x68xbf16>, vector<68x96xbf16>, vector<128x96xf32> -> vector<128x96xf32>
    %37 = arith.addf %30, %36 : vector<128x96xf32>
    %38 = arith.truncf %32 : vector<128x68xf32> to vector<128x68xbf16>
    %cst_27 = arith.constant dense<0.000000e+00> : vector<128x68xf32>
    %39 = tpu.matmul %27, %38, %cst_27 {dimension_numbers = #tpu.dot_dimension_numbers<[1], [0], [0], [1], [0, 0, 1, 1], [], []>} : vector<128x128xbf16>, vector<128x68xbf16>, vector<128x68xf32> -> vector<128x68xf32>
    %cst_28 = arith.constant 2.000000e+00 : f32
    %40 = vector.broadcast %cst_28 : f32 to vector<128x68xf32>
    %41 = arith.mulf %40, %39 : vector<128x68xf32>
    %42 = arith.subf %41, %31 : vector<128x68xf32>
    %43 = arith.truncf %42 : vector<128x68xf32> to vector<128x68xbf16>
    %c1 = arith.constant 1 : index
    %c0_29 = arith.constant 0 : index
    %c0_30 = arith.constant 0 : index
    %44 = vector.load %arg10[%c1, %c0_29, %c0_30] : memref<4x68x96xbf16, #tpu.memory_space<vmem>>, vector<1x68x96xbf16>
    %45 = vector.shape_cast %44 : vector<1x68x96xbf16> to vector<68x96xbf16>
    %cst_31 = arith.constant dense<0.000000e+00> : vector<128x96xf32>
    %46 = tpu.matmul %43, %45, %cst_31 {dimension_numbers = #tpu.dot_dimension_numbers<[1], [0], [0], [1], [0, 0, 1, 1], [], []>} : vector<128x68xbf16>, vector<68x96xbf16>, vector<128x96xf32> -> vector<128x96xf32>
    %47 = arith.addf %37, %46 : vector<128x96xf32>
    %cst_32 = arith.constant dense<0.000000e+00> : vector<128x68xf32>
    %48 = tpu.matmul %29, %4, %cst_32 {dimension_numbers = #tpu.dot_dimension_numbers<[1], [0], [0], [1], [0, 0, 1, 1], [], []>} : vector<128x128xbf16>, vector<128x68xbf16>, vector<128x68xf32> -> vector<128x68xf32>
    %49 = arith.truncf %48 : vector<128x68xf32> to vector<128x68xbf16>
    %c2 = arith.constant 2 : index
    %c0_33 = arith.constant 0 : index
    %c0_34 = arith.constant 0 : index
    %50 = vector.load %arg10[%c2, %c0_33, %c0_34] : memref<4x68x96xbf16, #tpu.memory_space<vmem>>, vector<1x68x96xbf16>
    %51 = vector.shape_cast %50 : vector<1x68x96xbf16> to vector<68x96xbf16>
    %cst_35 = arith.constant dense<0.000000e+00> : vector<128x96xf32>
    %52 = tpu.matmul %49, %51, %cst_35 {dimension_numbers = #tpu.dot_dimension_numbers<[1], [0], [0], [1], [0, 0, 1, 1], [], []>} : vector<128x68xbf16>, vector<68x96xbf16>, vector<128x96xf32> -> vector<128x96xf32>
    %53 = arith.addf %47, %52 : vector<128x96xf32>
    %54 = arith.truncf %48 : vector<128x68xf32> to vector<128x68xbf16>
    %cst_36 = arith.constant dense<0.000000e+00> : vector<128x68xf32>
    %55 = tpu.matmul %29, %54, %cst_36 {dimension_numbers = #tpu.dot_dimension_numbers<[1], [0], [0], [1], [0, 0, 1, 1], [], []>} : vector<128x128xbf16>, vector<128x68xbf16>, vector<128x68xf32> -> vector<128x68xf32>
    %cst_37 = arith.constant 2.000000e+00 : f32
    %56 = vector.broadcast %cst_37 : f32 to vector<128x68xf32>
    %57 = arith.mulf %56, %55 : vector<128x68xf32>
    %58 = arith.subf %57, %31 : vector<128x68xf32>
    %59 = arith.truncf %58 : vector<128x68xf32> to vector<128x68xbf16>
    %c3 = arith.constant 3 : index
    %c0_38 = arith.constant 0 : index
    %c0_39 = arith.constant 0 : index
    %60 = vector.load %arg10[%c3, %c0_38, %c0_39] : memref<4x68x96xbf16, #tpu.memory_space<vmem>>, vector<1x68x96xbf16>
    %61 = vector.shape_cast %60 : vector<1x68x96xbf16> to vector<68x96xbf16>
    %cst_40 = arith.constant dense<0.000000e+00> : vector<128x96xf32>
    %62 = tpu.matmul %59, %61, %cst_40 {dimension_numbers = #tpu.dot_dimension_numbers<[1], [0], [0], [1], [0, 0, 1, 1], [], []>} : vector<128x68xbf16>, vector<68x96xbf16>, vector<128x96xf32> -> vector<128x96xf32>
    %63 = arith.addf %53, %62 : vector<128x96xf32>
    %c0_41 = arith.constant 0 : index
    %c0_42 = arith.constant 0 : index
    %64 = vector.load %arg11[%c0_41, %c0_42] : memref<1x96xf32, #tpu.memory_space<vmem>>, vector<1x96xf32>
    %65 = vector.broadcast %64 : vector<1x96xf32> to vector<128x96xf32>
    %66 = arith.addf %63, %65 : vector<128x96xf32>
    %67 = arith.negf %66 : vector<128x96xf32>
    %68 = math.exp %67 : vector<128x96xf32>
    %cst_43 = arith.constant 1.000000e+00 : f32
    %69 = vector.broadcast %cst_43 : f32 to vector<128x96xf32>
    %70 = arith.addf %69, %68 : vector<128x96xf32>
    %71 = arith.divf %69, %70 : vector<128x96xf32>
    %72 = vector.extract_strided_slice %71 {offsets = [0, 0], sizes = [128, 32], strides = [1, 1]} : vector<128x96xf32> to vector<128x32xf32>
    %73 = vector.extract_strided_slice %71 {offsets = [0, 32], sizes = [128, 32], strides = [1, 1]} : vector<128x96xf32> to vector<128x32xf32>
    %74 = vector.extract_strided_slice %71 {offsets = [0, 64], sizes = [128, 32], strides = [1, 1]} : vector<128x96xf32> to vector<128x32xf32>
    %75 = arith.extf %1 : vector<128x32xbf16> to vector<128x32xf32>
    %76 = arith.mulf %72, %75 : vector<128x32xf32>
    %77 = arith.truncf %76 : vector<128x32xf32> to vector<128x32xbf16>
    %78 = arith.extf %2 : vector<128x32xbf16> to vector<128x32xf32>
    %79 = arith.mulf %73, %78 : vector<128x32xf32>
    %80 = arith.truncf %79 : vector<128x32xf32> to vector<128x32xbf16>
    %81 = tpu.concatenate %77, %80, %0 in 1 : vector<128x32xbf16>, vector<128x32xbf16>, vector<128x4xbf16> -> vector<128x68xbf16>
    %c0_44 = arith.constant 0 : index
    %c0_45 = arith.constant 0 : index
    %82 = vector.load %arg12[%c0_44, %c0_45] : memref<68x32xbf16, #tpu.memory_space<vmem>>, vector<68x32xbf16>
    %cst_46 = arith.constant dense<0.000000e+00> : vector<128x32xf32>
    %83 = tpu.matmul %81, %82, %cst_46 {dimension_numbers = #tpu.dot_dimension_numbers<[1], [0], [0], [1], [0, 0, 1, 1], [], []>} : vector<128x68xbf16>, vector<68x32xbf16>, vector<128x32xf32> -> vector<128x32xf32>
    %84 = arith.extf %81 : vector<128x68xbf16> to vector<128x68xf32>
    %cst_47 = arith.constant dense<0.000000e+00> : vector<128x68xf32>
    %85 = tpu.matmul %27, %81, %cst_47 {dimension_numbers = #tpu.dot_dimension_numbers<[1], [0], [0], [1], [0, 0, 1, 1], [], []>} : vector<128x128xbf16>, vector<128x68xbf16>, vector<128x68xf32> -> vector<128x68xf32>
    %86 = arith.truncf %85 : vector<128x68xf32> to vector<128x68xbf16>
    %c0_48 = arith.constant 0 : index
    %c0_49 = arith.constant 0 : index
    %c0_50 = arith.constant 0 : index
    %87 = vector.load %arg13[%c0_48, %c0_49, %c0_50] : memref<4x68x32xbf16, #tpu.memory_space<vmem>>, vector<1x68x32xbf16>
    %88 = vector.shape_cast %87 : vector<1x68x32xbf16> to vector<68x32xbf16>
    %cst_51 = arith.constant dense<0.000000e+00> : vector<128x32xf32>
    %89 = tpu.matmul %86, %88, %cst_51 {dimension_numbers = #tpu.dot_dimension_numbers<[1], [0], [0], [1], [0, 0, 1, 1], [], []>} : vector<128x68xbf16>, vector<68x32xbf16>, vector<128x32xf32> -> vector<128x32xf32>
    %90 = arith.addf %83, %89 : vector<128x32xf32>
    %91 = arith.truncf %85 : vector<128x68xf32> to vector<128x68xbf16>
    %cst_52 = arith.constant dense<0.000000e+00> : vector<128x68xf32>
    %92 = tpu.matmul %27, %91, %cst_52 {dimension_numbers = #tpu.dot_dimension_numbers<[1], [0], [0], [1], [0, 0, 1, 1], [], []>} : vector<128x128xbf16>, vector<128x68xbf16>, vector<128x68xf32> -> vector<128x68xf32>
    %cst_53 = arith.constant 2.000000e+00 : f32
    %93 = vector.broadcast %cst_53 : f32 to vector<128x68xf32>
    %94 = arith.mulf %93, %92 : vector<128x68xf32>
    %95 = arith.subf %94, %84 : vector<128x68xf32>
    %96 = arith.truncf %95 : vector<128x68xf32> to vector<128x68xbf16>
    %c1_54 = arith.constant 1 : index
    %c0_55 = arith.constant 0 : index
    %c0_56 = arith.constant 0 : index
    %97 = vector.load %arg13[%c1_54, %c0_55, %c0_56] : memref<4x68x32xbf16, #tpu.memory_space<vmem>>, vector<1x68x32xbf16>
    %98 = vector.shape_cast %97 : vector<1x68x32xbf16> to vector<68x32xbf16>
    %cst_57 = arith.constant dense<0.000000e+00> : vector<128x32xf32>
    %99 = tpu.matmul %96, %98, %cst_57 {dimension_numbers = #tpu.dot_dimension_numbers<[1], [0], [0], [1], [0, 0, 1, 1], [], []>} : vector<128x68xbf16>, vector<68x32xbf16>, vector<128x32xf32> -> vector<128x32xf32>
    %100 = arith.addf %90, %99 : vector<128x32xf32>
    %cst_58 = arith.constant dense<0.000000e+00> : vector<128x68xf32>
    %101 = tpu.matmul %29, %81, %cst_58 {dimension_numbers = #tpu.dot_dimension_numbers<[1], [0], [0], [1], [0, 0, 1, 1], [], []>} : vector<128x128xbf16>, vector<128x68xbf16>, vector<128x68xf32> -> vector<128x68xf32>
    %102 = arith.truncf %101 : vector<128x68xf32> to vector<128x68xbf16>
    %c2_59 = arith.constant 2 : index
    %c0_60 = arith.constant 0 : index
    %c0_61 = arith.constant 0 : index
    %103 = vector.load %arg13[%c2_59, %c0_60, %c0_61] : memref<4x68x32xbf16, #tpu.memory_space<vmem>>, vector<1x68x32xbf16>
    %104 = vector.shape_cast %103 : vector<1x68x32xbf16> to vector<68x32xbf16>
    %cst_62 = arith.constant dense<0.000000e+00> : vector<128x32xf32>
    %105 = tpu.matmul %102, %104, %cst_62 {dimension_numbers = #tpu.dot_dimension_numbers<[1], [0], [0], [1], [0, 0, 1, 1], [], []>} : vector<128x68xbf16>, vector<68x32xbf16>, vector<128x32xf32> -> vector<128x32xf32>
    %106 = arith.addf %100, %105 : vector<128x32xf32>
    %107 = arith.truncf %101 : vector<128x68xf32> to vector<128x68xbf16>
    %cst_63 = arith.constant dense<0.000000e+00> : vector<128x68xf32>
    %108 = tpu.matmul %29, %107, %cst_63 {dimension_numbers = #tpu.dot_dimension_numbers<[1], [0], [0], [1], [0, 0, 1, 1], [], []>} : vector<128x128xbf16>, vector<128x68xbf16>, vector<128x68xf32> -> vector<128x68xf32>
    %cst_64 = arith.constant 2.000000e+00 : f32
    %109 = vector.broadcast %cst_64 : f32 to vector<128x68xf32>
    %110 = arith.mulf %109, %108 : vector<128x68xf32>
    %111 = arith.subf %110, %84 : vector<128x68xf32>
    %112 = arith.truncf %111 : vector<128x68xf32> to vector<128x68xbf16>
    %c3_65 = arith.constant 3 : index
    %c0_66 = arith.constant 0 : index
    %c0_67 = arith.constant 0 : index
    %113 = vector.load %arg13[%c3_65, %c0_66, %c0_67] : memref<4x68x32xbf16, #tpu.memory_space<vmem>>, vector<1x68x32xbf16>
    %114 = vector.shape_cast %113 : vector<1x68x32xbf16> to vector<68x32xbf16>
    %cst_68 = arith.constant dense<0.000000e+00> : vector<128x32xf32>
    %115 = tpu.matmul %112, %114, %cst_68 {dimension_numbers = #tpu.dot_dimension_numbers<[1], [0], [0], [1], [0, 0, 1, 1], [], []>} : vector<128x68xbf16>, vector<68x32xbf16>, vector<128x32xf32> -> vector<128x32xf32>
    %116 = arith.addf %106, %115 : vector<128x32xf32>
    %c0_69 = arith.constant 0 : index
    %c0_70 = arith.constant 0 : index
    %117 = vector.load %arg14[%c0_69, %c0_70] : memref<1x32xf32, #tpu.memory_space<vmem>>, vector<1x32xf32>
    %118 = vector.broadcast %117 : vector<1x32xf32> to vector<128x32xf32>
    %119 = arith.addf %116, %118 : vector<128x32xf32>
    %120 = math.tanh %119 : vector<128x32xf32>
    %121 = arith.mulf %74, %25 : vector<128x32xf32>
    %cst_71 = arith.constant 1.000000e+00 : f32
    %122 = vector.broadcast %cst_71 : f32 to vector<128x32xf32>
    %123 = arith.subf %122, %74 : vector<128x32xf32>
    %124 = arith.mulf %123, %120 : vector<128x32xf32>
    %125 = arith.addf %121, %124 : vector<128x32xf32>
    %126 = arith.truncf %125 : vector<128x32xf32> to vector<128x32xbf16>
    %c0_72 = arith.constant 0 : index
    %c0_73 = arith.constant 0 : index
    %127 = vector.load %arg15[%c0_72, %c0_73] : memref<32x64xbf16, #tpu.memory_space<vmem>>, vector<32x64xbf16>
    %cst_74 = arith.constant dense<0.000000e+00> : vector<128x64xf32>
    %128 = tpu.matmul %126, %127, %cst_74 {dimension_numbers = #tpu.dot_dimension_numbers<[1], [0], [0], [1], [0, 0, 1, 1], [], []>} : vector<128x32xbf16>, vector<32x64xbf16>, vector<128x64xf32> -> vector<128x64xf32>
    %c0_75 = arith.constant 0 : index
    %c0_76 = arith.constant 0 : index
    %129 = vector.load %arg16[%c0_75, %c0_76] : memref<1x64xf32, #tpu.memory_space<vmem>>, vector<1x64xf32>
    %130 = vector.broadcast %129 : vector<1x64xf32> to vector<128x64xf32>
    %131 = arith.addf %128, %130 : vector<128x64xf32>
    %cst_77 = arith.constant 0.000000e+00 : f32
    %132 = vector.broadcast %cst_77 : f32 to vector<128x32xf32>
    %133 = tpu.concatenate %125, %131, %132 in 1 : vector<128x32xf32>, vector<128x64xf32>, vector<128x32xf32> -> vector<128x128xf32>
    %c0_78 = arith.constant 0 : index
    %c0_79 = arith.constant 0 : index
    %134 = vector.load %arg17[%c0_78, %c0_79] : memref<128x128xf32, #tpu.memory_space<vmem>>, vector<128x128xf32>
    tpu.vector_store %arg17[%c0_78, %c0_79], %133 {strides = array<i32>} : memref<128x128xf32, #tpu.memory_space<vmem>>, vector<128x128xf32>,
    return
  }
  func.func @transform_0(%arg0: i32) -> (i32, i32) {
    %c0_i32 = arith.constant 0 : i32
    %c0_i32_0 = arith.constant 0 : i32
    return %arg0, %c0_i32 : i32, i32
  }
  func.func @transform_1(%arg0: i32) -> (i32, i32) {
    %c0_i32 = arith.constant 0 : i32
    %c0_i32_0 = arith.constant 0 : i32
    return %arg0, %c0_i32 : i32, i32
  }
  func.func @transform_2(%arg0: i32) -> (i32, i32) {
    %c0_i32 = arith.constant 0 : i32
    %c0_i32_0 = arith.constant 0 : i32
    return %arg0, %c0_i32 : i32, i32
  }
  func.func @transform_3(%arg0: i32) -> (i32, i32) {
    %c0_i32 = arith.constant 0 : i32
    %c0_i32_0 = arith.constant 0 : i32
    return %arg0, %c0_i32 : i32, i32
  }
  func.func @transform_4(%arg0: i32) -> (i32, i32, i32) {
    %c0_i32 = arith.constant 0 : i32
    %c0_i32_0 = arith.constant 0 : i32
    %c0_i32_1 = arith.constant 0 : i32
    return %arg0, %c0_i32, %c0_i32_0 : i32, i32, i32
  }
  func.func @transform_5(%arg0: i32) -> (i32, i32, i32) {
    %c0_i32 = arith.constant 0 : i32
    %c0_i32_0 = arith.constant 0 : i32
    %c0_i32_1 = arith.constant 0 : i32
    return %arg0, %c0_i32, %c0_i32_0 : i32, i32, i32
  }
  func.func @transform_6(%arg0: i32) -> (i32, i32) {
    %c0_i32 = arith.constant 0 : i32
    %c0_i32_0 = arith.constant 0 : i32
    %c0_i32_1 = arith.constant 0 : i32
    return %c0_i32, %c0_i32_0 : i32, i32
  }
  func.func @transform_7(%arg0: i32) -> (i32, i32) {
    %c0_i32 = arith.constant 0 : i32
    %c0_i32_0 = arith.constant 0 : i32
    %c0_i32_1 = arith.constant 0 : i32
    return %c0_i32, %c0_i32_0 : i32, i32
  }
  func.func @transform_8(%arg0: i32) -> (i32, i32) {
    %c0_i32 = arith.constant 0 : i32
    %c0_i32_0 = arith.constant 0 : i32
    %c0_i32_1 = arith.constant 0 : i32
    return %c0_i32, %c0_i32_0 : i32, i32
  }
  func.func @transform_9(%arg0: i32) -> (i32, i32, i32) {
    %c0_i32 = arith.constant 0 : i32
    %c0_i32_0 = arith.constant 0 : i32
    %c0_i32_1 = arith.constant 0 : i32
    %c0_i32_2 = arith.constant 0 : i32
    return %c0_i32, %c0_i32_0, %c0_i32_1 : i32, i32, i32
  }
  func.func @transform_10(%arg0: i32) -> (i32, i32) {
    %c0_i32 = arith.constant 0 : i32
    %c0_i32_0 = arith.constant 0 : i32
    %c0_i32_1 = arith.constant 0 : i32
    return %c0_i32, %c0_i32_0 : i32, i32
  }
  func.func @transform_11(%arg0: i32) -> (i32, i32) {
    %c0_i32 = arith.constant 0 : i32
    %c0_i32_0 = arith.constant 0 : i32
    %c0_i32_1 = arith.constant 0 : i32
    return %c0_i32, %c0_i32_0 : i32, i32
  }
  func.func @transform_12(%arg0: i32) -> (i32, i32, i32) {
    %c0_i32 = arith.constant 0 : i32
    %c0_i32_0 = arith.constant 0 : i32
    %c0_i32_1 = arith.constant 0 : i32
    %c0_i32_2 = arith.constant 0 : i32
    return %c0_i32, %c0_i32_0, %c0_i32_1 : i32, i32, i32
  }
  func.func @transform_13(%arg0: i32) -> (i32, i32) {
    %c0_i32 = arith.constant 0 : i32
    %c0_i32_0 = arith.constant 0 : i32
    %c0_i32_1 = arith.constant 0 : i32
    return %c0_i32, %c0_i32_0 : i32, i32
  }
  func.func @transform_14(%arg0: i32) -> (i32, i32) {
    %c0_i32 = arith.constant 0 : i32
    %c0_i32_0 = arith.constant 0 : i32
    %c0_i32_1 = arith.constant 0 : i32
    return %c0_i32, %c0_i32_0 : i32, i32
  }
  func.func @transform_15(%arg0: i32) -> (i32, i32) {
    %c0_i32 = arith.constant 0 : i32
    %c0_i32_0 = arith.constant 0 : i32
    %c0_i32_1 = arith.constant 0 : i32
    return %c0_i32, %c0_i32_0 : i32, i32
  }
  func.func @transform_16(%arg0: i32) -> (i32, i32) {
    %c0_i32 = arith.constant 0 : i32
    %c0_i32_0 = arith.constant 0 : i32
    return %arg0, %c0_i32 : i32, i32
  }
}

</mosaic_0001>

<llo_original>
// kernel: tpu_custom_call.1
$region0: #{tpu_custom_call.1}
  #allocation0 [shape = 'u32[]', space=smem, size = 0x4, offset = 0x4, fixed_abs, tag = 'smem constant byte address 0x4 - core index']
  #allocation1 [shape = 'u32[144,128]{1,0:T(1,128)}', space=vmem, size = 0x12000, scoped, tag = 'internal scratch']
  %s0 = inlined_call_operand.vmem [shape: bf16[256,4], index: 0, kind: input, shape index: {}]
  %s1 = inlined_call_operand.vmem [shape: bf16[256,32], index: 1, kind: input, shape index: {}]
  %s2 = inlined_call_operand.vmem [shape: bf16[256,32], index: 2, kind: input, shape index: {}]
  %s3 = inlined_call_operand.vmem [shape: bf16[256,8], index: 3, kind: input, shape index: {}]
  %s4 = inlined_call_operand.vmem [shape: bf16[2,128,128], index: 4, kind: input, shape index: {}]
  %s5 = inlined_call_operand.vmem [shape: bf16[2,128,128], index: 5, kind: input, shape index: {}]
  %s6 = inlined_call_operand.vmem [shape: bf16[68,128], index: 6, kind: input, shape index: {}]
  %s7 = inlined_call_operand.vmem [shape: bf16[8,32], index: 7, kind: input, shape index: {}]
  %s8 = inlined_call_operand.vmem [shape: f32[1,32], index: 8, kind: input, shape index: {}]
  %s9 = inlined_call_operand.vmem [shape: bf16[4,68,96], index: 9, kind: input, shape index: {}]
  %s10 = inlined_call_operand.vmem [shape: f32[1,96], index: 10, kind: input, shape index: {}]
  %s11 = inlined_call_operand.vmem [shape: bf16[68,32], index: 11, kind: input, shape index: {}]
  %s12 = inlined_call_operand.vmem [shape: bf16[4,68,32], index: 12, kind: input, shape index: {}]
  %s13 = inlined_call_operand.vmem [shape: f32[1,32], index: 13, kind: input, shape index: {}]
  %s14 = inlined_call_operand.vmem [shape: bf16[32,64], index: 14, kind: input, shape index: {}]
  %s15 = inlined_call_operand.vmem [shape: f32[1,64], index: 15, kind: input, shape index: {}]
  %s16 = inlined_call_operand.hbm [shape: f32[256,128], index: 16, kind: output, shape index: {}]
  %s17 = sld [smem:[#allocation0]]
  $region97: #{tpu_custom_call.1} parent=0
    _
  %s19 = ssub.s32 1, %s17
  %s20 = scalar_select 0, %s19, %s17
  $region1: #{tpu_custom_call.1} parent=0
    #allocation2 [shape = 'u8[131072]{0}', space=vmem, size = 0x20000, scoped, tag = 'output window, operand 0']
    #allocation3 [shape = 's32[2]{0}', space=sflag, size = 0x8, scoped, tag = 'scoped memory for tpu_custom_call.1']
    %21 = vsyncpa [#allocation3], 0
    %s22 = scalar_lea.sflag [#allocation3], 1
    %23 = vsyncpa %s22, 0
    loop: start=0, step=1, limit=4
    $region2: #{tpu_custom_call.1} parent=1 // loop_pre_header
      _
    $region3: #{tpu_custom_call.1} parent=1 // loop_header
      %s25 = sphi 0, %s29
      %p26 = scmp.ge.s32.totalorder %s25, 4
      %s35 = sphi 0, %s37
      %s38 = sphi 0, %s35
      %s39 = sphi 0, %s38
      %s55 = sphi 0, %s39
      %s61 = sphi 0, %s63
      %s64 = sphi 0, %s61
      %s65 = sphi 0, %s64
      %s81 = sphi 0, %s65
      %s87 = sphi 0, %s89
      %s90 = sphi 0, %s87
      %s91 = sphi 0, %s90
      %s107 = sphi 0, %s91
      %s113 = sphi 0, %s115
      %s116 = sphi 0, %s113
      %s117 = sphi 0, %s116
      %s133 = sphi 0, %s117
      %s139 = sphi 0, %s141
      %s142 = sphi 0, %s139
      %s143 = sphi 0, %s142
      %s159 = sphi 0, %s143
      %s165 = sphi 0, %s167
      %s168 = sphi 0, %s165
      %s169 = sphi 0, %s168
      %s185 = sphi 0, %s169
      %s189 = sphi 0, %s189
      %s191 = sphi 0, %s189
      %s192 = sphi 0, %s191
      %s206 = sphi 0, %s192
      %s210 = sphi 0, %s210
      %s212 = sphi 0, %s210
      %s213 = sphi 0, %s212
      %s227 = sphi 0, %s213
      %s231 = sphi 0, %s231
      %s233 = sphi 0, %s231
      %s234 = sphi 0, %s233
      %s248 = sphi 0, %s234
      %s252 = sphi 0, %s252
      %s254 = sphi 0, %s252
      %s255 = sphi 0, %s254
      %s269 = sphi 0, %s255
      %s273 = sphi 0, %s273
      %s275 = sphi 0, %s273
      %s276 = sphi 0, %s275
      %s290 = sphi 0, %s276
      %s294 = sphi 0, %s294
      %s296 = sphi 0, %s294
      %s297 = sphi 0, %s296
      %s311 = sphi 0, %s297
      %s315 = sphi 0, %s315
      %s317 = sphi 0, %s315
      %s318 = sphi 0, %s317
      %s332 = sphi 0, %s318
      %s336 = sphi 0, %s336
      %s338 = sphi 0, %s336
      %s339 = sphi 0, %s338
      %s353 = sphi 0, %s339
      %s357 = sphi 0, %s357
      %s359 = sphi 0, %s357
      %s360 = sphi 0, %s359
      %s374 = sphi 0, %s360
      %s378 = sphi 0, %s378
      %s380 = sphi 0, %s378
      %s381 = sphi 0, %s380
      %s395 = sphi 0, %s381
      %s401 = sphi 0, %s403
      %s404 = sphi 0, %s401
      %s405 = sphi 0, %s404
      %s421 = sphi 0, %s405
    $region4: #{tpu_custom_call.1} parent=1 // loop_header_branch
      %28 = sbr.rel (%p26) target = $region8
    $region5: #{tpu_custom_call.1} parent=1 // loop_body
      %s30 = ssub.s32 %s25, 1
      %s31 = ssub.s32 %s25, 2
      %s32 = sadd.s32 %s25, 1
      %s33 = ssub.s32 %s25, %s32
      %p34 = scmp.eq.s32.totalorder %s33, 0
      %s36 = sadd.s32 %s35, 1
      %s37 = scalar_select %p34, %s35, %s36
      %p40 = pneg %p34
      %p41 = scmp.eq.s32.totalorder %s25, 1
      %p42 = por %p40, %p41
      %p43 = scmp.ne.s32.totalorder %s35, %s38
      %p44 = scmp.eq.s32.totalorder %s25, 0
      %p45 = por %p43, %p44
      %p46 = scmp.ne.s32.totalorder %s35, %s38
      %p47 = scmp.eq.s32.totalorder %s30, 1
      %p48 = por %p46, %p47
      %p49 = scmp.ne.s32.totalorder %s38, %s39
      %p50 = scmp.eq.s32.totalorder %s30, 0
      %p51 = por %p49, %p50
      %p52 = scmp.ne.s32.totalorder %s38, %s39
      %p53 = scmp.eq.s32.totalorder %s31, 1
      %p54 = por %p52, %p53
      %p56 = scmp.ne.s32.totalorder %s39, %s55
      %p57 = scmp.eq.s32.totalorder %s31, 0
      %p58 = por %p56, %p57
      %s59 = ssub.s32 %s25, %s32
      %p60 = scmp.eq.s32.totalorder %s59, 0
      %s62 = sadd.s32 %s61, 1
      %s63 = scalar_select %p60, %s61, %s62
      %p66 = pneg %p60
      %p67 = scmp.eq.s32.totalorder %s25, 1
      %p68 = por %p66, %p67
      %p69 = scmp.ne.s32.totalorder %s61, %s64
      %p70 = scmp.eq.s32.totalorder %s25, 0
      %p71 = por %p69, %p70
      %p72 = scmp.ne.s32.totalorder %s61, %s64
      %p73 = scmp.eq.s32.totalorder %s30, 1
      %p74 = por %p72, %p73
      %p75 = scmp.ne.s32.totalorder %s64, %s65
      %p76 = scmp.eq.s32.totalorder %s30, 0
      %p77 = por %p75, %p76
      %p78 = scmp.ne.s32.totalorder %s64, %s65
      %p79 = scmp.eq.s32.totalorder %s31, 1
      %p80 = por %p78, %p79
      %p82 = scmp.ne.s32.totalorder %s65, %s81
      %p83 = scmp.eq.s32.totalorder %s31, 0
      %p84 = por %p82, %p83
      %s85 = ssub.s32 %s25, %s32
      %p86 = scmp.eq.s32.totalorder %s85, 0
      %s88 = sadd.s32 %s87, 1
      %s89 = scalar_select %p86, %s87, %s88
      %p92 = pneg %p86
      %p93 = scmp.eq.s32.totalorder %s25, 1
      %p94 = por %p92, %p93
      %p95 = scmp.ne.s32.totalorder %s87, %s90
      %p96 = scmp.eq.s32.totalorder %s25, 0
      %p97 = por %p95, %p96
      %p98 = scmp.ne.s32.totalorder %s87, %s90
      %p99 = scmp.eq.s32.totalorder %s30, 1
      %p100 = por %p98, %p99
      %p101 = scmp.ne.s32.totalorder %s90, %s91
      %p102 = scmp.eq.s32.totalorder %s30, 0
      %p103 = por %p101, %p102
      %p104 = scmp.ne.s32.totalorder %s90, %s91
      %p105 = scmp.eq.s32.totalorder %s31, 1
      %p106 = por %p104, %p105
      %p108 = scmp.ne.s32.totalorder %s91, %s107
      %p109 = scmp.eq.s32.totalorder %s31, 0
      %p110 = por %p108, %p109
      %s111 = ssub.s32 %s25, %s32
      %p112 = scmp.eq.s32.totalorder %s111, 0
      %s114 = sadd.s32 %s113, 1
      %s115 = scalar_select %p112, %s113, %s114
      %p118 = pneg %p112
      %p119 = scmp.eq.s32.totalorder %s25, 1
      %p120 = por %p118, %p119
      %p121 = scmp.ne.s32.totalorder %s113, %s116
      %p122 = scmp.eq.s32.totalorder %s25, 0
      %p123 = por %p121, %p122
      %p124 = scmp.ne.s32.totalorder %s113, %s116
      %p125 = scmp.eq.s32.totalorder %s30, 1
      %p126 = por %p124, %p125
      %p127 = scmp.ne.s32.totalorder %s116, %s117
      %p128 = scmp.eq.s32.totalorder %s30, 0
      %p129 = por %p127, %p128
      %p130 = scmp.ne.s32.totalorder %s116, %s117
      %p131 = scmp.eq.s32.totalorder %s31, 1
      %p132 = por %p130, %p131
      %p134 = scmp.ne.s32.totalorder %s117, %s133
      %p135 = scmp.eq.s32.totalorder %s31, 0
      %p136 = por %p134, %p135
      %s137 = ssub.s32 %s25, %s32
      %p138 = scmp.eq.s32.totalorder %s137, 0
      %s140 = sadd.s32 %s139, 1
      %s141 = scalar_select %p138, %s139, %s140
      %p144 = pneg %p138
      %p145 = scmp.eq.s32.totalorder %s25, 1
      %p146 = por %p144, %p145
      %p147 = scmp.ne.s32.totalorder %s139, %s142
      %p148 = scmp.eq.s32.totalorder %s25, 0
      %p149 = por %p147, %p148
      %p150 = scmp.ne.s32.totalorder %s139, %s142
      %p151 = scmp.eq.s32.totalorder %s30, 1
      %p152 = por %p150, %p151
      %p153 = scmp.ne.s32.totalorder %s142, %s143
      %p154 = scmp.eq.s32.totalorder %s30, 0
      %p155 = por %p153, %p154
      %p156 = scmp.ne.s32.totalorder %s142, %s143
      %p157 = scmp.eq.s32.totalorder %s31, 1
      %p158 = por %p156, %p157
      %p160 = scmp.ne.s32.totalorder %s143, %s159
      %p161 = scmp.eq.s32.totalorder %s31, 0
      %p162 = por %p160, %p161
      %s163 = ssub.s32 %s25, %s32
      %p164 = scmp.eq.s32.totalorder %s163, 0
      %s166 = sadd.s32 %s165, 1
      %s167 = scalar_select %p164, %s165, %s166
      %p170 = pneg %p164
      %p171 = scmp.eq.s32.totalorder %s25, 1
      %p172 = por %p170, %p171
      %p173 = scmp.ne.s32.totalorder %s165, %s168
      %p174 = scmp.eq.s32.totalorder %s25, 0
      %p175 = por %p173, %p174
      %p176 = scmp.ne.s32.totalorder %s165, %s168
      %p177 = scmp.eq.s32.totalorder %s30, 1
      %p178 = por %p176, %p177
      %p179 = scmp.ne.s32.totalorder %s168, %s169
      %p180 = scmp.eq.s32.totalorder %s30, 0
      %p181 = por %p179, %p180
      %p182 = scmp.ne.s32.totalorder %s168, %s169
      %p183 = scmp.eq.s32.totalorder %s31, 1
      %p184 = por %p182, %p183
      %p186 = scmp.ne.s32.totalorder %s169, %s185
      %p187 = scmp.eq.s32.totalorder %s31, 0
      %p188 = por %p186, %p187
      %s190 = sadd.s32 %s189, 1
      %p193 = scmp.eq.s32.totalorder %s25, 1
      %p194 = scmp.ne.s32.totalorder %s189, %s191
      %p195 = scmp.eq.s32.totalorder %s25, 0
      %p196 = por %p194, %p195
      %p197 = scmp.ne.s32.totalorder %s189, %s191
      %p198 = scmp.eq.s32.totalorder %s30, 1
      %p199 = por %p197, %p198
      %p200 = scmp.ne.s32.totalorder %s191, %s192
      %p201 = scmp.eq.s32.totalorder %s30, 0
      %p202 = por %p200, %p201
      %p203 = scmp.ne.s32.totalorder %s191, %s192
      %p204 = scmp.eq.s32.totalorder %s31, 1
      %p205 = por %p203, %p204
      %p207 = scmp.ne.s32.totalorder %s192, %s206
      %p208 = scmp.eq.s32.totalorder %s31, 0
      %p209 = por %p207, %p208
      %s211 = sadd.s32 %s210, 1
      %p214 = scmp.eq.s32.totalorder %s25, 1
      %p215 = scmp.ne.s32.totalorder %s210, %s212
      %p216 = scmp.eq.s32.totalorder %s25, 0
      %p217 = por %p215, %p216
      %p218 = scmp.ne.s32.totalorder %s210, %s212
      %p219 = scmp.eq.s32.totalorder %s30, 1
      %p220 = por %p218, %p219
      %p221 = scmp.ne.s32.totalorder %s212, %s213
      %p222 = scmp.eq.s32.totalorder %s30, 0
      %p223 = por %p221, %p222
      %p224 = scmp.ne.s32.totalorder %s212, %s213
      %p225 = scmp.eq.s32.totalorder %s31, 1
      %p226 = por %p224, %p225
      %p228 = scmp.ne.s32.totalorder %s213, %s227
      %p229 = scmp.eq.s32.totalorder %s31, 0
      %p230 = por %p228, %p229
      %s232 = sadd.s32 %s231, 1
      %p235 = scmp.eq.s32.totalorder %s25, 1
      %p236 = scmp.ne.s32.totalorder %s231, %s233
      %p237 = scmp.eq.s32.totalorder %s25, 0
      %p238 = por %p236, %p237
      %p239 = scmp.ne.s32.totalorder %s231, %s233
      %p240 = scmp.eq.s32.totalorder %s30, 1
      %p241 = por %p239, %p240
      %p242 = scmp.ne.s32.totalorder %s233, %s234
      %p243 = scmp.eq.s32.totalorder %s30, 0
      %p244 = por %p242, %p243
      %p245 = scmp.ne.s32.totalorder %s233, %s234
      %p246 = scmp.eq.s32.totalorder %s31, 1
      %p247 = por %p245, %p246
      %p249 = scmp.ne.s32.totalorder %s234, %s248
      %p250 = scmp.eq.s32.totalorder %s31, 0
      %p251 = por %p249, %p250
      %s253 = sadd.s32 %s252, 1
      %p256 = scmp.eq.s32.totalorder %s25, 1
      %p257 = scmp.ne.s32.totalorder %s252, %s254
      %p258 = scmp.eq.s32.totalorder %s25, 0
      %p259 = por %p257, %p258
      %p260 = scmp.ne.s32.totalorder %s252, %s254
      %p261 = scmp.eq.s32.totalorder %s30, 1
      %p262 = por %p260, %p261
      %p263 = scmp.ne.s32.totalorder %s254, %s255
      %p264 = scmp.eq.s32.totalorder %s30, 0
      %p265 = por %p263, %p264
      %p266 = scmp.ne.s32.totalorder %s254, %s255
      %p267 = scmp.eq.s32.totalorder %s31, 1
      %p268 = por %p266, %p267
      %p270 = scmp.ne.s32.totalorder %s255, %s269
      %p271 = scmp.eq.s32.totalorder %s31, 0
      %p272 = por %p270, %p271
      %s274 = sadd.s32 %s273, 1
      %p277 = scmp.eq.s32.totalorder %s25, 1
      %p278 = scmp.ne.s32.totalorder %s273, %s275
      %p279 = scmp.eq.s32.totalorder %s25, 0
      %p280 = por %p278, %p279
      %p281 = scmp.ne.s32.totalorder %s273, %s275
      %p282 = scmp.eq.s32.totalorder %s30, 1
      %p283 = por %p281, %p282
      %p284 = scmp.ne.s32.totalorder %s275, %s276
      %p285 = scmp.eq.s32.totalorder %s30, 0
      %p286 = por %p284, %p285
      %p287 = scmp.ne.s32.totalorder %s275, %s276
      %p288 = scmp.eq.s32.totalorder %s31, 1
      %p289 = por %p287, %p288
      %p291 = scmp.ne.s32.totalorder %s276, %s290
      %p292 = scmp.eq.s32.totalorder %s31, 0
      %p293 = por %p291, %p292
      %s295 = sadd.s32 %s294, 1
      %p298 = scmp.eq.s32.totalorder %s25, 1
      %p299 = scmp.ne.s32.totalorder %s294, %s296
      %p300 = scmp.eq.s32.totalorder %s25, 0
      %p301 = por %p299, %p300
      %p302 = scmp.ne.s32.totalorder %s294, %s296
      %p303 = scmp.eq.s32.totalorder %s30, 1
      %p304 = por %p302, %p303
      %p305 = scmp.ne.s32.totalorder %s296, %s297
      %p306 = scmp.eq.s32.totalorder %s30, 0
      %p307 = por %p305, %p306
      %p308 = scmp.ne.s32.totalorder %s296, %s297
      %p309 = scmp.eq.s32.totalorder %s31, 1
      %p310 = por %p308, %p309
      %p312 = scmp.ne.s32.totalorder %s297, %s311
      %p313 = scmp.eq.s32.totalorder %s31, 0
      %p314 = por %p312, %p313
      %s316 = sadd.s32 %s315, 1
      %p319 = scmp.eq.s32.totalorder %s25, 1
      %p320 = scmp.ne.s32.totalorder %s315, %s317
      %p321 = scmp.eq.s32.totalorder %s25, 0
      %p322 = por %p320, %p321
      %p323 = scmp.ne.s32.totalorder %s315, %s317
      %p324 = scmp.eq.s32.totalorder %s30, 1
      %p325 = por %p323, %p324
      %p326 = scmp.ne.s32.totalorder %s317, %s318
      %p327 = scmp.eq.s32.totalorder %s30, 0
      %p328 = por %p326, %p327
      %p329 = scmp.ne.s32.totalorder %s317, %s318
      %p330 = scmp.eq.s32.totalorder %s31, 1
      %p331 = por %p329, %p330
      %p333 = scmp.ne.s32.totalorder %s318, %s332
      %p334 = scmp.eq.s32.totalorder %s31, 0
      %p335 = por %p333, %p334
      %s337 = sadd.s32 %s336, 1
      %p340 = scmp.eq.s32.totalorder %s25, 1
      %p341 = scmp.ne.s32.totalorder %s336, %s338
      %p342 = scmp.eq.s32.totalorder %s25, 0
      %p343 = por %p341, %p342
      %p344 = scmp.ne.s32.totalorder %s336, %s338
      %p345 = scmp.eq.s32.totalorder %s30, 1
      %p346 = por %p344, %p345
      %p347 = scmp.ne.s32.totalorder %s338, %s339
      %p348 = scmp.eq.s32.totalorder %s30, 0
      %p349 = por %p347, %p348
      %p350 = scmp.ne.s32.totalorder %s338, %s339
      %p351 = scmp.eq.s32.totalorder %s31, 1
      %p352 = por %p350, %p351
      %p354 = scmp.ne.s32.totalorder %s339, %s353
      %p355 = scmp.eq.s32.totalorder %s31, 0
      %p356 = por %p354, %p355
      %s358 = sadd.s32 %s357, 1
      %p361 = scmp.eq.s32.totalorder %s25, 1
      %p362 = scmp.ne.s32.totalorder %s357, %s359
      %p363 = scmp.eq.s32.totalorder %s25, 0
      %p364 = por %p362, %p363
      %p365 = scmp.ne.s32.totalorder %s357, %s359
      %p366 = scmp.eq.s32.totalorder %s30, 1
      %p367 = por %p365, %p366
      %p368 = scmp.ne.s32.totalorder %s359, %s360
      %p369 = scmp.eq.s32.totalorder %s30, 0
      %p370 = por %p368, %p369
      %p371 = scmp.ne.s32.totalorder %s359, %s360
      %p372 = scmp.eq.s32.totalorder %s31, 1
      %p373 = por %p371, %p372
      %p375 = scmp.ne.s32.totalorder %s360, %s374
      %p376 = scmp.eq.s32.totalorder %s31, 0
      %p377 = por %p375, %p376
      %s379 = sadd.s32 %s378, 1
      %p382 = scmp.eq.s32.totalorder %s25, 1
      %p383 = scmp.ne.s32.totalorder %s378, %s380
      %p384 = scmp.eq.s32.totalorder %s25, 0
      %p385 = por %p383, %p384
      %p386 = scmp.ne.s32.totalorder %s378, %s380
      %p387 = scmp.eq.s32.totalorder %s30, 1
      %p388 = por %p386, %p387
      %p389 = scmp.ne.s32.totalorder %s380, %s381
      %p390 = scmp.eq.s32.totalorder %s30, 0
      %p391 = por %p389, %p390
      %p392 = scmp.ne.s32.totalorder %s380, %s381
      %p393 = scmp.eq.s32.totalorder %s31, 1
      %p394 = por %p392, %p393
      %p396 = scmp.ne.s32.totalorder %s381, %s395
      %p397 = scmp.eq.s32.totalorder %s31, 0
      %p398 = por %p396, %p397
      %s399 = ssub.s32 %s25, %s32
      %p400 = scmp.eq.s32.totalorder %s399, 0
      %s402 = sadd.s32 %s401, 1
      %s403 = scalar_select %p400, %s401, %s402
      %p406 = pneg %p400
      %p407 = scmp.eq.s32.totalorder %s25, 1
      %p408 = por %p406, %p407
      %p409 = scmp.ne.s32.totalorder %s401, %s404
      %p410 = scmp.eq.s32.totalorder %s25, 0
      %p411 = por %p409, %p410
      %p412 = scmp.ne.s32.totalorder %s401, %s404
      %p413 = scmp.eq.s32.totalorder %s30, 1
      %p414 = por %p412, %p413
      %p415 = scmp.ne.s32.totalorder %s404, %s405
      %p416 = scmp.eq.s32.totalorder %s30, 0
      %p417 = por %p415, %p416
      %p418 = scmp.ne.s32.totalorder %s404, %s405
      %p419 = scmp.eq.s32.totalorder %s31, 1
      %p420 = por %p418, %p419
      %p422 = scmp.ne.s32.totalorder %s405, %s421
      %p423 = scmp.eq.s32.totalorder %s31, 0
      %p424 = por %p422, %p423
      %p425 = scmp.le.s32.totalorder 1, %s25
      %p426 = scmp.lt.s32.totalorder %s25, 3
      %p427 = pnand %p425, %p426
      %p428 = pneg %p427
      // Predicated region
      $region9: #{tpu_custom_call.1} parent=5 // pred_check
        _
      $region10: #{tpu_custom_call.1} parent=5 // pred_check_branch
        %430 = sbr.rel (%p427) target = $region12
      $region11: #{tpu_custom_call.1} parent=5 // pred_region
        %s431 = ssub.s32 %s25, 1
        // Predicated region
        $region13: #{tpu_custom_call.1} parent=11 // pred_check
          %p432 = pneg %p202
        $region14: #{tpu_custom_call.1} parent=11 // pred_check_branch
          %434 = sbr.rel (%p432) target = $region16
        $region15: #{tpu_custom_call.1} parent=11 // pred_region
          _
        $region16: #{tpu_custom_call.1} parent=11 // pred_fallthru
          _
        // Predicated region
        $region17: #{tpu_custom_call.1} parent=11 // pred_check
          %p435 = pneg %p223
        $region18: #{tpu_custom_call.1} parent=11 // pred_check_branch
          %437 = sbr.rel (%p435) target = $region20
        $region19: #{tpu_custom_call.1} parent=11 // pred_region
          _
        $region20: #{tpu_custom_call.1} parent=11 // pred_fallthru
          _
        // Predicated region
        $region21: #{tpu_custom_call.1} parent=11 // pred_check
          %p438 = pneg %p244
        $region22: #{tpu_custom_call.1} parent=11 // pred_check_branch
          %440 = sbr.rel (%p438) target = $region24
        $region23: #{tpu_custom_call.1} parent=11 // pred_region
          _
        $region24: #{tpu_custom_call.1} parent=11 // pred_fallthru
          _
        // Predicated region
        $region25: #{tpu_custom_call.1} parent=11 // pred_check
          %p441 = pneg %p265
        $region26: #{tpu_custom_call.1} parent=11 // pred_check_branch
          %443 = sbr.rel (%p441) target = $region28
        $region27: #{tpu_custom_call.1} parent=11 // pred_region
          _
        $region28: #{tpu_custom_call.1} parent=11 // pred_fallthru
          _
        // Predicated region
        $region29: #{tpu_custom_call.1} parent=11 // pred_check
          %p444 = pneg %p286
        $region30: #{tpu_custom_call.1} parent=11 // pred_check_branch
          %446 = sbr.rel (%p444) target = $region32
        $region31: #{tpu_custom_call.1} parent=11 // pred_region
          _
        $region32: #{tpu_custom_call.1} parent=11 // pred_fallthru
          _
        // Predicated region
        $region33: #{tpu_custom_call.1} parent=11 // pred_check
          %p447 = pneg %p307
        $region34: #{tpu_custom_call.1} parent=11 // pred_check_branch
          %449 = sbr.rel (%p447) target = $region36
        $region35: #{tpu_custom_call.1} parent=11 // pred_region
          _
        $region36: #{tpu_custom_call.1} parent=11 // pred_fallthru
          _
        // Predicated region
        $region37: #{tpu_custom_call.1} parent=11 // pred_check
          %p450 = pneg %p328
        $region38: #{tpu_custom_call.1} parent=11 // pred_check_branch
          %452 = sbr.rel (%p450) target = $region40
        $region39: #{tpu_custom_call.1} parent=11 // pred_region
          _
        $region40: #{tpu_custom_call.1} parent=11 // pred_fallthru
          _
        // Predicated region
        $region41: #{tpu_custom_call.1} parent=11 // pred_check
          %p453 = pneg %p349
        $region42: #{tpu_custom_call.1} parent=11 // pred_check_branch
          %455 = sbr.rel (%p453) target = $region44
        $region43: #{tpu_custom_call.1} parent=11 // pred_region
          _
        $region44: #{tpu_custom_call.1} parent=11 // pred_fallthru
          _
        // Predicated region
        $region45: #{tpu_custom_call.1} parent=11 // pred_check
          %p456 = pneg %p370
        $region46: #{tpu_custom_call.1} parent=11 // pred_check_branch
          %458 = sbr.rel (%p456) target = $region48
        $region47: #{tpu_custom_call.1} parent=11 // pred_region
          _
        $region48: #{tpu_custom_call.1} parent=11 // pred_fallthru
          _
        // Predicated region
        $region49: #{tpu_custom_call.1} parent=11 // pred_check
          %p459 = pneg %p391
        $region50: #{tpu_custom_call.1} parent=11 // pred_check_branch
          %461 = sbr.rel (%p459) target = $region52
        $region51: #{tpu_custom_call.1} parent=11 // pred_region
          _
        $region52: #{tpu_custom_call.1} parent=11 // pred_fallthru
          _
      $region12: #{tpu_custom_call.1} parent=5 // pred_fallthru
        _
      %p462 = scmp.lt.s32.totalorder %s25, 2
      // Predicated region
      $region53: #{tpu_custom_call.1} parent=5 // pred_check
        %p463 = pneg %p462
      $region54: #{tpu_custom_call.1} parent=5 // pred_check_branch
        %465 = sbr.rel (%p463) target = $region56
      $region55: #{tpu_custom_call.1} parent=5 // pred_region
        // Predicated region
        $region57: #{tpu_custom_call.1} parent=55 // pred_check
          %p466 = pneg %p45
        $region58: #{tpu_custom_call.1} parent=55 // pred_check_branch
          %468 = sbr.rel (%p466) target = $region60
        $region59: #{tpu_custom_call.1} parent=55 // pred_region
          %s469 = smul.u32 16, %s25
          %p470 = scmp.lt.s32.totalorder %s469, 31
          %s471 = scalar_select %p470, %s469, 31
          %s472 = smul.addr %s471, 4
          %s473 = scalar_lea.vmem %s0, %s472
          %s474 = smul.u32 16, %s25
        $region60: #{tpu_custom_call.1} parent=55 // pred_fallthru
          _
        // Predicated region
        $region61: #{tpu_custom_call.1} parent=55 // pred_check
          %p475 = pneg %p71
        $region62: #{tpu_custom_call.1} parent=55 // pred_check_branch
          %477 = sbr.rel (%p475) target = $region64
        $region63: #{tpu_custom_call.1} parent=55 // pred_region
          %s478 = smul.u32 16, %s25
          %p479 = scmp.lt.s32.totalorder %s478, 31
          %s480 = scalar_select %p479, %s478, 31
          %s481 = smul.addr %s480, 4
          %s482 = scalar_lea.vmem %s1, %s481
          %s483 = smul.u32 16, %s25
        $region64: #{tpu_custom_call.1} parent=55 // pred_fallthru
          _
        // Predicated region
        $region65: #{tpu_custom_call.1} parent=55 // pred_check
          %p484 = pneg %p97
        $region66: #{tpu_custom_call.1} parent=55 // pred_check_branch
          %486 = sbr.rel (%p484) target = $region68
        $region67: #{tpu_custom_call.1} parent=55 // pred_region
          %s487 = smul.u32 16, %s25
          %p488 = scmp.lt.s32.totalorder %s487, 31
          %s489 = scalar_select %p488, %s487, 31
          %s490 = smul.addr %s489, 4
          %s491 = scalar_lea.vmem %s2, %s490
          %s492 = smul.u32 16, %s25
        $region68: #{tpu_custom_call.1} parent=55 // pred_fallthru
          _
        // Predicated region
        $region69: #{tpu_custom_call.1} parent=55 // pred_check
          %p493 = pneg %p123
        $region70: #{tpu_custom_call.1} parent=55 // pred_check_branch
          %495 = sbr.rel (%p493) target = $region72
        $region71: #{tpu_custom_call.1} parent=55 // pred_region
          %s496 = smul.u32 16, %s25
          %p497 = scmp.lt.s32.totalorder %s496, 31
          %s498 = scalar_select %p497, %s496, 31
          %s499 = smul.addr %s498, 4
          %s500 = scalar_lea.vmem %s3, %s499
          %s501 = smul.u32 16, %s25
        $region72: #{tpu_custom_call.1} parent=55 // pred_fallthru
          _
        // Predicated region
        $region73: #{tpu_custom_call.1} parent=55 // pred_check
          %p502 = pneg %p149
        $region74: #{tpu_custom_call.1} parent=55 // pred_check_branch
          %504 = sbr.rel (%p502) target = $region76
        $region75: #{tpu_custom_call.1} parent=55 // pred_region
          %p505 = scmp.lt.s32.totalorder %s25, 1
          %s506 = scalar_select %p505, %s25, 1
          %s507 = smul.addr %s506, 16
          %s508 = smul.addr %s507, 4
          %s509 = scalar_lea.vmem %s4, %s508
        $region76: #{tpu_custom_call.1} parent=55 // pred_fallthru
          _
        // Predicated region
        $region77: #{tpu_custom_call.1} parent=55 // pred_check
          %p510 = pneg %p175
        $region78: #{tpu_custom_call.1} parent=55 // pred_check_branch
          %512 = sbr.rel (%p510) target = $region80
        $region79: #{tpu_custom_call.1} parent=55 // pred_region
          %p513 = scmp.lt.s32.totalorder %s25, 1
          %s514 = scalar_select %p513, %s25, 1
          %s515 = smul.addr %s514, 16
          %s516 = smul.addr %s515, 4
          %s517 = scalar_lea.vmem %s5, %s516
        $region80: #{tpu_custom_call.1} parent=55 // pred_fallthru
          _
      $region56: #{tpu_custom_call.1} parent=5 // pred_fallthru
        _
      %p518 = scmp.le.s32.totalorder 1, %s25
      %p519 = scmp.lt.s32.totalorder %s25, 3
      %p520 = pnand %p518, %p519
      %p521 = pneg %p520
      // Predicated region
      $region81: #{tpu_custom_call.1} parent=5 // pred_check
        _
      $region82: #{tpu_custom_call.1} parent=5 // pred_check_branch
        %523 = sbr.rel (%p520) target = $region84
      $region83: #{tpu_custom_call.1} parent=5 // pred_region
        %s524 = ssub.s32 %s25, 1
        %s525 = smul.u32 16, %s30
        %p526 = scmp.lt.s32.totalorder %s525, 31
        %s527 = scalar_select %p526, %s525, 31
        %s528 = smul.addr %s527, 4
        %s529 = scalar_lea.vmem %s0, %s528
        %p530 = pneg %p51
        %p531 = pneg %p48
        %s532 = smul.u32 16, %s30
        %p533 = scmp.lt.s32.totalorder %s532, 31
        %s534 = scalar_select %p533, %s532, 31
        %s535 = smul.addr %s534, 4
        %s536 = scalar_lea.vmem %s1, %s535
        %p537 = pneg %p77
        %p538 = pneg %p74
        %s539 = smul.u32 16, %s30
        %p540 = scmp.lt.s32.totalorder %s539, 31
        %s541 = scalar_select %p540, %s539, 31
        %s542 = smul.addr %s541, 4
        %s543 = scalar_lea.vmem %s2, %s542
        %p544 = pneg %p103
        %p545 = pneg %p100
        %s546 = smul.u32 16, %s30
        %p547 = scmp.lt.s32.totalorder %s546, 31
        %s548 = scalar_select %p547, %s546, 31
        %s549 = smul.addr %s548, 4
        %s550 = scalar_lea.vmem %s3, %s549
        %p551 = pneg %p129
        %p552 = pneg %p126
        %p553 = scmp.lt.s32.totalorder %s30, 1
        %s554 = scalar_select %p553, %s30, 1
        %s555 = smul.addr %s554, 16
        %s556 = smul.addr %s555, 4
        %s557 = scalar_lea.vmem %s4, %s556
        %p558 = pneg %p155
        %p559 = pneg %p152
        %p560 = scmp.lt.s32.totalorder %s30, 1
        %s561 = scalar_select %p560, %s30, 1
        %s562 = smul.addr %s561, 16
        %s563 = smul.addr %s562, 4
        %s564 = scalar_lea.vmem %s5, %s563
        %p565 = pneg %p181
        %p566 = pneg %p178
        %p567 = pneg %p202
        %p568 = pneg %p199
        %p569 = pneg %p223
        %p570 = pneg %p220
        %p571 = pneg %p244
        %p572 = pneg %p241
        %p573 = pneg %p265
        %p574 = pneg %p262
        %p575 = pneg %p286
        %p576 = pneg %p283
        %p577 = pneg %p307
        %p578 = pneg %p304
        %p579 = pneg %p328
        %p580 = pneg %p325
        %p581 = pneg %p349
        %p582 = pneg %p346
        %p583 = pneg %p370
        %p584 = pneg %p367
        %p585 = pneg %p391
        %p586 = pneg %p388
        %p587 = pneg %p417
        %p588 = pneg %p414
        %s589 = sand.u32 %s404, 1
        %s590 = scalar_lea.sflag [#allocation3], %s589
        %s591 = sand.u32 %s404, 1
        %s592 = smul.addr %s591, 128
        %s593 = scalar_lea.vmem [#allocation2], %s592
        %s594 = smul.u32 16, %s30
        %p595 = scmp.lt.s32.totalorder %s594, 31
        %s596 = scalar_select %p595, %s594, 31
        %s597 = smul.addr %s596, 4
        %s598 = scalar_lea.vmem %s0, %s597
        %s599 = smul.u32 16, %s30
        %s600 = smul.u32 16, %s30
        %p601 = scmp.lt.s32.totalorder %s600, 31
        %s602 = scalar_select %p601, %s600, 31
        %s603 = smul.addr %s602, 4
        %s604 = scalar_lea.vmem %s1, %s603
        %s605 = smul.u32 16, %s30
        %s606 = smul.u32 16, %s30
        %p607 = scmp.lt.s32.totalorder %s606, 31
        %s608 = scalar_select %p607, %s606, 31
        %s609 = smul.addr %s608, 4
        %s610 = scalar_lea.vmem %s2, %s609
        %s611 = smul.u32 16, %s30
        %s612 = smul.u32 16, %s30
        %p613 = scmp.lt.s32.totalorder %s612, 31
        %s614 = scalar_select %p613, %s612, 31
        %s615 = smul.addr %s614, 4
        %s616 = scalar_lea.vmem %s3, %s615
        %s617 = smul.u32 16, %s30
        %p618 = scmp.lt.s32.totalorder %s30, 1
        %s619 = scalar_select %p618, %s30, 1
        %s620 = smul.addr %s619, 16
        %s621 = smul.addr %s620, 4
        %s622 = scalar_lea.vmem %s4, %s621
        %p623 = scmp.lt.s32.totalorder %s30, 1
        %s624 = scalar_select %p623, %s30, 1
        %s625 = smul.addr %s624, 16
        %s626 = smul.addr %s625, 4
        %s627 = scalar_lea.vmem %s5, %s626
        %s628 = smul.u32 16, %s30
        %v630 = vld [vmem:[%s598] sm:$0xf]
        %v631 = vld [vmem:[%s598 + $0x4] sm:$0xf]
        %v632 = vld [vmem:[%s598 + $0x8] sm:$0xf]
        %v633 = vld [vmem:[%s598 + $0xc] sm:$0xf]
        %v634 = vld [vmem:[%s598 + $0x10] sm:$0xf]
        %v635 = vld [vmem:[%s598 + $0x14] sm:$0xf]
        %v636 = vld [vmem:[%s598 + $0x18] sm:$0xf]
        %v637 = vld [vmem:[%s598 + $0x1c] sm:$0xf]
        %v638 = vld [vmem:[%s598 + $0x20] sm:$0xf]
        %v639 = vld [vmem:[%s598 + $0x24] sm:$0xf]
        %v640 = vld [vmem:[%s598 + $0x28] sm:$0xf]
        %v641 = vld [vmem:[%s598 + $0x2c] sm:$0xf]
        %v642 = vld [vmem:[%s598 + $0x30] sm:$0xf]
        %v643 = vld [vmem:[%s598 + $0x34] sm:$0xf]
        %v644 = vld [vmem:[%s598 + $0x38] sm:$0xf]
        %v645 = vld [vmem:[%s598 + $0x3c] sm:$0xf]
        %v646 = vld [vmem:[%s604] sm:$0xf]
        %v647 = vld [vmem:[%s604 + $0x4] sm:$0xf]
        %v648 = vld [vmem:[%s604 + $0x8] sm:$0xf]
        %v649 = vld [vmem:[%s604 + $0xc] sm:$0xf]
        %v650 = vld [vmem:[%s604 + $0x10] sm:$0xf]
        %v651 = vld [vmem:[%s604 + $0x14] sm:$0xf]
        %v652 = vld [vmem:[%s604 + $0x18] sm:$0xf]
        %v653 = vld [vmem:[%s604 + $0x1c] sm:$0xf]
        %v654 = vld [vmem:[%s604 + $0x20] sm:$0xf]
        %v655 = vld [vmem:[%s604 + $0x24] sm:$0xf]
        %v656 = vld [vmem:[%s604 + $0x28] sm:$0xf]
        %v657 = vld [vmem:[%s604 + $0x2c] sm:$0xf]
        %v658 = vld [vmem:[%s604 + $0x30] sm:$0xf]
        %v659 = vld [vmem:[%s604 + $0x34] sm:$0xf]
        %v660 = vld [vmem:[%s604 + $0x38] sm:$0xf]
        %v661 = vld [vmem:[%s604 + $0x3c] sm:$0xf]
        %v662 = vld [vmem:[%s610] sm:$0xf]
        %v663 = vld [vmem:[%s610 + $0x4] sm:$0xf]
        %v664 = vld [vmem:[%s610 + $0x8] sm:$0xf]
        %v665 = vld [vmem:[%s610 + $0xc] sm:$0xf]
        %v666 = vld [vmem:[%s610 + $0x10] sm:$0xf]
        %v667 = vld [vmem:[%s610 + $0x14] sm:$0xf]
        %v668 = vld [vmem:[%s610 + $0x18] sm:$0xf]
        %v669 = vld [vmem:[%s610 + $0x1c] sm:$0xf]
        %v670 = vld [vmem:[%s610 + $0x20] sm:$0xf]
        %v671 = vld [vmem:[%s610 + $0x24] sm:$0xf]
        %v672 = vld [vmem:[%s610 + $0x28] sm:$0xf]
        %v673 = vld [vmem:[%s610 + $0x2c] sm:$0xf]
        %v674 = vld [vmem:[%s610 + $0x30] sm:$0xf]
        %v675 = vld [vmem:[%s610 + $0x34] sm:$0xf]
        %v676 = vld [vmem:[%s610 + $0x38] sm:$0xf]
        %v677 = vld [vmem:[%s610 + $0x3c] sm:$0xf]
        %v678 = vld [vmem:[%s616] sm:$0xf]
        %v679 = vld [vmem:[%s616 + $0x4] sm:$0xf]
        %v680 = vld [vmem:[%s616 + $0x8] sm:$0xf]
        %v681 = vld [vmem:[%s616 + $0xc] sm:$0xf]
        %v682 = vld [vmem:[%s616 + $0x10] sm:$0xf]
        %v683 = vld [vmem:[%s616 + $0x14] sm:$0xf]
        %v684 = vld [vmem:[%s616 + $0x18] sm:$0xf]
        %v685 = vld [vmem:[%s616 + $0x1c] sm:$0xf]
        %v686 = vld [vmem:[%s616 + $0x20] sm:$0xf]
        %v687 = vld [vmem:[%s616 + $0x24] sm:$0xf]
        %v688 = vld [vmem:[%s616 + $0x28] sm:$0xf]
        %v689 = vld [vmem:[%s616 + $0x2c] sm:$0xf]
        %v690 = vld [vmem:[%s616 + $0x30] sm:$0xf]
        %v691 = vld [vmem:[%s616 + $0x34] sm:$0xf]
        %v692 = vld [vmem:[%s616 + $0x38] sm:$0xf]
        %v693 = vld [vmem:[%s616 + $0x3c] sm:$0xf]
        %v710 = vunpack.c.l.b16 %v646
        %v711 = vunpack.c.l.b16 %v647
        %v712 = vunpack.c.l.b16 %v648
        %v713 = vunpack.c.l.b16 %v649
        %v714 = vunpack.c.l.b16 %v650
        %v715 = vunpack.c.l.b16 %v651
        %v716 = vunpack.c.l.b16 %v652
        %v717 = vunpack.c.l.b16 %v653
        %v718 = vunpack.c.l.b16 %v654
        %v719 = vunpack.c.l.b16 %v655
        %v720 = vunpack.c.l.b16 %v656
        %v721 = vunpack.c.l.b16 %v657
        %v722 = vunpack.c.l.b16 %v658
        %v723 = vunpack.c.l.b16 %v659
        %v724 = vunpack.c.l.b16 %v660
        %v725 = vunpack.c.l.b16 %v661
        %v726 = vpack.c.b16 %v711, %v710
        %v727 = vpack.c.b16 %v713, %v712
        %v728 = vpack.c.b16 %v715, %v714
        %v729 = vpack.c.b16 %v717, %v716
        %v730 = vpack.c.b16 %v719, %v718
        %v731 = vpack.c.b16 %v721, %v720
        %v732 = vpack.c.b16 %v723, %v722
        %v733 = vpack.c.b16 %v725, %v724
        %v750 = vunpack.c.l.b16 %v662
        %v751 = vunpack.c.l.b16 %v663
        %v752 = vunpack.c.l.b16 %v664
        %v753 = vunpack.c.l.b16 %v665
        %v754 = vunpack.c.l.b16 %v666
        %v755 = vunpack.c.l.b16 %v667
        %v756 = vunpack.c.l.b16 %v668
        %v757 = vunpack.c.l.b16 %v669
        %v758 = vunpack.c.l.b16 %v670
        %v759 = vunpack.c.l.b16 %v671
        %v760 = vunpack.c.l.b16 %v672
        %v761 = vunpack.c.l.b16 %v673
        %v762 = vunpack.c.l.b16 %v674
        %v763 = vunpack.c.l.b16 %v675
        %v764 = vunpack.c.l.b16 %v676
        %v765 = vunpack.c.l.b16 %v677
        %v766 = vpack.c.b16 %v751, %v750
        %v767 = vpack.c.b16 %v753, %v752
        %v768 = vpack.c.b16 %v755, %v754
        %v769 = vpack.c.b16 %v757, %v756
        %v770 = vpack.c.b16 %v759, %v758
        %v771 = vpack.c.b16 %v761, %v760
        %v772 = vpack.c.b16 %v763, %v762
        %v773 = vpack.c.b16 %v765, %v764
        %774 = vrot.lane.b32.xlu0 %v766, 32
        %v775 = vpop.permute.xlu0 %774
        %776 = vrot.lane.b32.xlu0 %v767, 32
        %v777 = vpop.permute.xlu0 %776
        %778 = vrot.lane.b32.xlu0 %v768, 32
        %v779 = vpop.permute.xlu0 %778
        %780 = vrot.lane.b32.xlu0 %v769, 32
        %v781 = vpop.permute.xlu0 %780
        %782 = vrot.lane.b32.xlu0 %v770, 32
        %v783 = vpop.permute.xlu0 %782
        %784 = vrot.lane.b32.xlu0 %v771, 32
        %v785 = vpop.permute.xlu0 %784
        %786 = vrot.lane.b32.xlu0 %v772, 32
        %v787 = vpop.permute.xlu0 %786
        %788 = vrot.lane.b32.xlu0 %v773, 32
        %v789 = vpop.permute.xlu0 %788
        %v806 = vunpack.c.l.b16 %v630
        %v807 = vunpack.c.l.b16 %v631
        %v808 = vunpack.c.l.b16 %v632
        %v809 = vunpack.c.l.b16 %v633
        %v810 = vunpack.c.l.b16 %v634
        %v811 = vunpack.c.l.b16 %v635
        %v812 = vunpack.c.l.b16 %v636
        %v813 = vunpack.c.l.b16 %v637
        %v814 = vunpack.c.l.b16 %v638
        %v815 = vunpack.c.l.b16 %v639
        %v816 = vunpack.c.l.b16 %v640
        %v817 = vunpack.c.l.b16 %v641
        %v818 = vunpack.c.l.b16 %v642
        %v819 = vunpack.c.l.b16 %v643
        %v820 = vunpack.c.l.b16 %v644
        %v821 = vunpack.c.l.b16 %v645
        %v822 = vpack.c.b16 %v807, %v806
        %v823 = vpack.c.b16 %v809, %v808
        %v824 = vpack.c.b16 %v811, %v810
        %v825 = vpack.c.b16 %v813, %v812
        %v826 = vpack.c.b16 %v815, %v814
        %v827 = vpack.c.b16 %v817, %v816
        %v828 = vpack.c.b16 %v819, %v818
        %v829 = vpack.c.b16 %v821, %v820
        %830 = vrot.lane.b32.xlu0 %v822, 64
        %v831 = vpop.permute.xlu0 %830
        %832 = vrot.lane.b32.xlu0 %v823, 64
        %v833 = vpop.permute.xlu0 %832
        %834 = vrot.lane.b32.xlu0 %v824, 64
        %v835 = vpop.permute.xlu0 %834
        %836 = vrot.lane.b32.xlu0 %v825, 64
        %v837 = vpop.permute.xlu0 %836
        %838 = vrot.lane.b32.xlu0 %v826, 64
        %v839 = vpop.permute.xlu0 %838
        %840 = vrot.lane.b32.xlu0 %v827, 64
        %v841 = vpop.permute.xlu0 %840
        %842 = vrot.lane.b32.xlu0 %v828, 64
        %v843 = vpop.permute.xlu0 %842
        %844 = vrot.lane.b32.xlu0 %v829, 64
        %v845 = vpop.permute.xlu0 %844
        %vm846 = vcmask 261120
        %v849 = vsel %vm846, %v726, %v775
        %v852 = vsel %vm846, %v727, %v777
        %v855 = vsel %vm846, %v728, %v779
        %v858 = vsel %vm846, %v729, %v781
        %v861 = vsel %vm846, %v730, %v783
        %v864 = vsel %vm846, %v731, %v785
        %v867 = vsel %vm846, %v732, %v787
        %v870 = vsel %vm846, %v733, %v789
        %vm871 = vcmask 523264
        %v873 = vsel %vm871, %v849, %v831
        %v876 = vsel %vm871, %v852, %v833
        %v879 = vsel %vm871, %v855, %v835
        %v882 = vsel %vm871, %v858, %v837
        %v885 = vsel %vm871, %v861, %v839
        %v888 = vsel %vm871, %v864, %v841
        %v891 = vsel %vm871, %v867, %v843
        %v894 = vsel %vm871, %v870, %v845
        %v896 = vld [vmem:[%s6] sm:$0xf]
        %v897 = vld [vmem:[%s6 + $0x4] sm:$0xf]
        %v898 = vld [vmem:[%s6 + $0x8] sm:$0xf]
        %v899 = vld [vmem:[%s6 + $0xc] sm:$0xf]
        %v900 = vld [vmem:[%s6 + $0x10] sm:$0xf]
        %v901 = vld [vmem:[%s6 + $0x14] sm:$0xf]
        %v902 = vld [vmem:[%s6 + $0x18] sm:$0xf]
        %v903 = vld [vmem:[%s6 + $0x1c] sm:$0xf]
        %v904 = vld [vmem:[%s6 + $0x20] sm:$0x3]
        %v914 = vunpack.c.l.b16 %v896
        %v915 = vunpack.c.l.b16 %v897
        %v916 = vunpack.c.l.b16 %v898
        %v917 = vunpack.c.l.b16 %v899
        %v918 = vunpack.c.l.b16 %v900
        %v919 = vunpack.c.l.b16 %v901
        %v920 = vunpack.c.l.b16 %v902
        %v921 = vunpack.c.l.b16 %v903
        %v922 = vunpack.c.l.b16 %v904
        %v923 = vpack.c.b16 %v915, %v914
        %v924 = vpack.c.b16 %v917, %v916
        %v925 = vpack.c.b16 %v919, %v918
        %v926 = vpack.c.b16 %v921, %v920
        %v927 = vpack.c.b16 %v922, %v922
        %vm932 = vcmask 556032
        %v933 = vsel %vm932, %v873, 0
        %v935 = vsel %vm932, %v876, 0
        %v937 = vsel %vm932, %v879, 0
        %v939 = vsel %vm932, %v882, 0
        %v941 = vsel %vm932, %v885, 0
        %v943 = vsel %vm932, %v888, 0
        %v945 = vsel %vm932, %v891, 0
        %v947 = vsel %vm932, %v894, 0
        %vm949 = vcmask 1041408
        %v951 = vsel %vm949, %v927, 0
        %953 = vmatprep.subr.bf16.mxu0 0
        %954 = vmatpush1.bf16.msra.mxu0 %v923
        %955 = vmatprep.subr.bf16.mxu0 0
        %956 = vmatpush1.bf16.msra.mxu0 %v924
        %957 = vmatprep.subr.bf16.mxu0 0
        %958 = vmatpush1.bf16.msra.mxu0 %v925
        %959 = vmatprep.subr.bf16.mxu0 0
        %960 = vmatpush1.bf16.msra.mxu0 %v926
        %961 = vmatprep.subr.bf16.mxu0 0
        %962 = vmatpush1.bf16.msra.mxu0 %v951
        %963 = vmatprep.subr.bf16.mxu0 0
        %964 = vmatpush1.bf16.msra.mxu0 0
        %965 = vmatprep.subr.bf16.mxu0 0
        %966 = vmatpush1.bf16.msra.mxu0 0
        %967 = vmatprep.subr.bf16.mxu0 0
        %968 = vmatpush1.bf16.msra.mxu0 0
        %969 = vmatprep.subr.bf16.mxu0 0
        %970 = vmatpush1.bf16.msra.mxu0 0
        %971 = vmatprep.subr.bf16.mxu0 0
        %972 = vmatpush1.bf16.msra.mxu0 0
        %973 = vmatprep.subr.bf16.mxu0 0
        %974 = vmatpush1.bf16.msra.mxu0 0
        %975 = vmatprep.subr.bf16.mxu0 0
        %976 = vmatpush1.bf16.msra.mxu0 0
        %977 = vmatprep.subr.bf16.mxu0 0
        %978 = vmatpush1.bf16.msra.mxu0 0
        %979 = vmatprep.subr.bf16.mxu0 0
        %980 = vmatpush1.bf16.msra.mxu0 0
        %981 = vmatprep.subr.bf16.mxu0 0
        %982 = vmatpush1.bf16.msra.mxu0 0
        %983 = vmatprep.subr.bf16.mxu0 0
        %984 = vmatpush1.bf16.msra.mxu0 0
        %985 = vmatprep.mubr.bf16.mxu0 0
        %986 = vmatmul.mubr.bf16.gmra.mrb[0].mxu0 %v933
        %v987 = vpop.f32.mrb[0].mxu0
        %v988 = vadd.f32 0.0, %v987
        %v989 = vpop.f32.mrb[0].mxu0
        %v990 = vpop.f32.mrb[0].mxu0
        %v991 = vadd.f32 0.0, %v990
        %v992 = vpop.f32.mrb[0].mxu0
        %993 = vmatprep.mubr.bf16.mxu0 0
        %994 = vmatmul.mubr.bf16.gmra.mrb[0].mxu0 %v935
        %v995 = vpop.f32.mrb[0].mxu0
        %v996 = vadd.f32 0.0, %v995
        %v997 = vpop.f32.mrb[0].mxu0
        %v998 = vpop.f32.mrb[0].mxu0
        %v999 = vadd.f32 0.0, %v998
        %v1000 = vpop.f32.mrb[0].mxu0
        %1001 = vmatprep.mubr.bf16.mxu0 0
        %1002 = vmatmul.mubr.bf16.gmra.mrb[0].mxu0 %v937
        %v1003 = vpop.f32.mrb[0].mxu0
        %v1004 = vadd.f32 0.0, %v1003
        %v1005 = vpop.f32.mrb[0].mxu0
        %v1006 = vpop.f32.mrb[0].mxu0
        %v1007 = vadd.f32 0.0, %v1006
        %v1008 = vpop.f32.mrb[0].mxu0
        %1009 = vmatprep.mubr.bf16.mxu0 0
        %1010 = vmatmul.mubr.bf16.gmra.mrb[0].mxu0 %v939
        %v1011 = vpop.f32.mrb[0].mxu0
        %v1012 = vadd.f32 0.0, %v1011
        %v1013 = vpop.f32.mrb[0].mxu0
        %v1014 = vpop.f32.mrb[0].mxu0
        %v1015 = vadd.f32 0.0, %v1014
        %v1016 = vpop.f32.mrb[0].mxu0
        %1017 = vmatprep.mubr.bf16.mxu0 0
        %1018 = vmatmul.mubr.bf16.gmra.mrb[0].mxu0 %v941
        %v1019 = vpop.f32.mrb[0].mxu0
        %v1020 = vadd.f32 0.0, %v1019
        %v1021 = vpop.f32.mrb[0].mxu0
        %v1022 = vpop.f32.mrb[0].mxu0
        %v1023 = vadd.f32 0.0, %v1022
        %v1024 = vpop.f32.mrb[0].mxu0
        %1025 = vmatprep.mubr.bf16.mxu0 0
        %1026 = vmatmul.mubr.bf16.gmra.mrb[0].mxu0 %v943
        %v1027 = vpop.f32.mrb[0].mxu0
        %v1028 = vadd.f32 0.0, %v1027
        %v1029 = vpop.f32.mrb[0].mxu0
        %v1030 = vpop.f32.mrb[0].mxu0
        %v1031 = vadd.f32 0.0, %v1030
        %v1032 = vpop.f32.mrb[0].mxu0
        %1033 = vmatprep.mubr.bf16.mxu0 0
        %1034 = vmatmul.mubr.bf16.gmra.mrb[0].mxu0 %v945
        %v1035 = vpop.f32.mrb[0].mxu0
        %v1036 = vadd.f32 0.0, %v1035
        %v1037 = vpop.f32.mrb[0].mxu0
        %v1038 = vpop.f32.mrb[0].mxu0
        %v1039 = vadd.f32 0.0, %v1038
        %v1040 = vpop.f32.mrb[0].mxu0
        %1041 = vmatprep.mubr.bf16.mxu0 0
        %1042 = vmatmul.mubr.bf16.gmra.mrb[0].mxu0 %v947
        %v1043 = vpop.f32.mrb[0].mxu0
        %v1044 = vadd.f32 0.0, %v1043
        %v1045 = vpop.f32.mrb[0].mxu0
        %v1046 = vpop.f32.mrb[0].mxu0
        %v1047 = vadd.f32 0.0, %v1046
        %v1048 = vpop.f32.mrb[0].mxu0
        %1049 = vdwg.mxu0
        %v1050 = vld [vmem:[%s7] sm:$0xf]
        %v1067 = vunpack.c.l.b16 %v678
        %v1068 = vunpack.c.l.b16 %v679
        %v1069 = vunpack.c.l.b16 %v680
        %v1070 = vunpack.c.l.b16 %v681
        %v1071 = vunpack.c.l.b16 %v682
        %v1072 = vunpack.c.l.b16 %v683
        %v1073 = vunpack.c.l.b16 %v684
        %v1074 = vunpack.c.l.b16 %v685
        %v1075 = vunpack.c.l.b16 %v686
        %v1076 = vunpack.c.l.b16 %v687
        %v1077 = vunpack.c.l.b16 %v688
        %v1078 = vunpack.c.l.b16 %v689
        %v1079 = vunpack.c.l.b16 %v690
        %v1080 = vunpack.c.l.b16 %v691
        %v1081 = vunpack.c.l.b16 %v692
        %v1082 = vunpack.c.l.b16 %v693
        %v1083 = vpack.c.b16 %v1068, %v1067
        %v1084 = vpack.c.b16 %v1070, %v1069
        %v1085 = vpack.c.b16 %v1072, %v1071
        %v1086 = vpack.c.b16 %v1074, %v1073
        %v1087 = vpack.c.b16 %v1076, %v1075
        %v1088 = vpack.c.b16 %v1078, %v1077
        %v1089 = vpack.c.b16 %v1080, %v1079
        %v1090 = vpack.c.b16 %v1082, %v1081
        %vm1091 = vcmask 64512
        %v1093 = vsel %vm1091, %v1083, 0
        %v1096 = vsel %vm1091, %v1084, 0
        %v1099 = vsel %vm1091, %v1085, 0
        %v1102 = vsel %vm1091, %v1086, 0
        %v1105 = vsel %vm1091, %v1087, 0
        %v1108 = vsel %vm1091, %v1088, 0
        %v1111 = vsel %vm1091, %v1089, 0
        %v1114 = vsel %vm1091, %v1090, 0
        %vm1116 = vcmask 1043456
        %v1118 = vsel %vm1116, %v1050, 0
        %1120 = vmatprep.subr.bf16.mxu0 0
        %1121 = vmatpush1.bf16.msra.mxu0 %v1118
        %1122 = vmatprep.subr.bf16.mxu0 0
        %1123 = vmatpush1.bf16.msra.mxu0 0
        %1124 = vmatprep.subr.bf16.mxu0 0
        %1125 = vmatpush1.bf16.msra.mxu0 0
        %1126 = vmatprep.subr.bf16.mxu0 0
        %1127 = vmatpush1.bf16.msra.mxu0 0
        %1128 = vmatprep.subr.bf16.mxu0 0
        %1129 = vmatpush1.bf16.msra.mxu0 0
        %1130 = vmatprep.subr.bf16.mxu0 0
        %1131 = vmatpush1.bf16.msra.mxu0 0
        %1132 = vmatprep.subr.bf16.mxu0 0
        %1133 = vmatpush1.bf16.msra.mxu0 0
        %1134 = vmatprep.subr.bf16.mxu0 0
        %1135 = vmatpush1.bf16.msra.mxu0 0
        %1136 = vmatprep.subr.bf16.mxu0 0
        %1137 = vmatpush1.bf16.msra.mxu0 0
        %1138 = vmatprep.subr.bf16.mxu0 0
        %1139 = vmatpush1.bf16.msra.mxu0 0
        %1140 = vmatprep.subr.bf16.mxu0 0
        %1141 = vmatpush1.bf16.msra.mxu0 0
        %1142 = vmatprep.subr.bf16.mxu0 0
        %1143 = vmatpush1.bf16.msra.mxu0 0
        %1144 = vmatprep.subr.bf16.mxu0 0
        %1145 = vmatpush1.bf16.msra.mxu0 0
        %1146 = vmatprep.subr.bf16.mxu0 0
        %1147 = vmatpush1.bf16.msra.mxu0 0
        %1148 = vmatprep.subr.bf16.mxu0 0
        %1149 = vmatpush1.bf16.msra.mxu0 0
        %1150 = vmatprep.subr.bf16.mxu0 0
        %1151 = vmatpush1.bf16.msra.mxu0 0
        %1152 = vmatprep.mubr.bf16.mxu0 0
        %1153 = vmatmul.mubr.bf16.gmra.mrb[0].mxu0 %v1093
        %v1154 = vpop.f32.mrb[0].mxu0
        %v1155 = vadd.f32 0.0, %v1154
        %v1156 = vpop.f32.mrb[0].mxu0
        %v1157 = vpop.f32.mrb[0].mxu0
        %v1158 = vadd.f32 0.0, %v1157
        %v1159 = vpop.f32.mrb[0].mxu0
        %1160 = vmatprep.mubr.bf16.mxu0 0
        %1161 = vmatmul.mubr.bf16.gmra.mrb[0].mxu0 %v1096
        %v1162 = vpop.f32.mrb[0].mxu0
        %v1163 = vadd.f32 0.0, %v1162
        %v1164 = vpop.f32.mrb[0].mxu0
        %v1165 = vpop.f32.mrb[0].mxu0
        %v1166 = vadd.f32 0.0, %v1165
        %v1167 = vpop.f32.mrb[0].mxu0
        %1168 = vmatprep.mubr.bf16.mxu0 0
        %1169 = vmatmul.mubr.bf16.gmra.mrb[0].mxu0 %v1099
        %v1170 = vpop.f32.mrb[0].mxu0
        %v1171 = vadd.f32 0.0, %v1170
        %v1172 = vpop.f32.mrb[0].mxu0
        %v1173 = vpop.f32.mrb[0].mxu0
        %v1174 = vadd.f32 0.0, %v1173
        %v1175 = vpop.f32.mrb[0].mxu0
        %1176 = vmatprep.mubr.bf16.mxu0 0
        %1177 = vmatmul.mubr.bf16.gmra.mrb[0].mxu0 %v1102
        %v1178 = vpop.f32.mrb[0].mxu0
        %v1179 = vadd.f32 0.0, %v1178
        %v1180 = vpop.f32.mrb[0].mxu0
        %v1181 = vpop.f32.mrb[0].mxu0
        %v1182 = vadd.f32 0.0, %v1181
        %v1183 = vpop.f32.mrb[0].mxu0
        %1184 = vmatprep.mubr.bf16.mxu0 0
        %1185 = vmatmul.mubr.bf16.gmra.mrb[0].mxu0 %v1105
        %v1186 = vpop.f32.mrb[0].mxu0
        %v1187 = vadd.f32 0.0, %v1186
        %v1188 = vpop.f32.mrb[0].mxu0
        %v1189 = vpop.f32.mrb[0].mxu0
        %v1190 = vadd.f32 0.0, %v1189
        %v1191 = vpop.f32.mrb[0].mxu0
        %1192 = vmatprep.mubr.bf16.mxu0 0
        %1193 = vmatmul.mubr.bf16.gmra.mrb[0].mxu0 %v1108
        %v1194 = vpop.f32.mrb[0].mxu0
        %v1195 = vadd.f32 0.0, %v1194
        %v1196 = vpop.f32.mrb[0].mxu0
        %v1197 = vpop.f32.mrb[0].mxu0
        %v1198 = vadd.f32 0.0, %v1197
        %v1199 = vpop.f32.mrb[0].mxu0
        %1200 = vmatprep.mubr.bf16.mxu0 0
        %1201 = vmatmul.mubr.bf16.gmra.mrb[0].mxu0 %v1111
        %v1202 = vpop.f32.mrb[0].mxu0
        %v1203 = vadd.f32 0.0, %v1202
        %v1204 = vpop.f32.mrb[0].mxu0
        %v1205 = vpop.f32.mrb[0].mxu0
        %v1206 = vadd.f32 0.0, %v1205
        %v1207 = vpop.f32.mrb[0].mxu0
        %1208 = vmatprep.mubr.bf16.mxu0 0
        %1209 = vmatmul.mubr.bf16.gmra.mrb[0].mxu0 %v1114
        %v1210 = vpop.f32.mrb[0].mxu0
        %v1211 = vadd.f32 0.0, %v1210
        %v1212 = vpop.f32.mrb[0].mxu0
        %v1213 = vpop.f32.mrb[0].mxu0
        %v1214 = vadd.f32 0.0, %v1213
        %v1215 = vpop.f32.mrb[0].mxu0
        %1216 = vdwg.mxu0
        %v1217 = vadd.f32 %v988, %v1155
        %v1218 = vadd.f32 %v991, %v1158
        %v1219 = vadd.f32 %v996, %v1163
        %v1220 = vadd.f32 %v999, %v1166
        %v1221 = vadd.f32 %v1004, %v1171
        %v1222 = vadd.f32 %v1007, %v1174
        %v1223 = vadd.f32 %v1012, %v1179
        %v1224 = vadd.f32 %v1015, %v1182
        %v1225 = vadd.f32 %v1020, %v1187
        %v1226 = vadd.f32 %v1023, %v1190
        %v1227 = vadd.f32 %v1028, %v1195
        %v1228 = vadd.f32 %v1031, %v1198
        %v1229 = vadd.f32 %v1036, %v1203
        %v1230 = vadd.f32 %v1039, %v1206
        %v1231 = vadd.f32 %v1044, %v1211
        %v1232 = vadd.f32 %v1047, %v1214
        %v1233 = vld [vmem:[%s8] sm:$0x1]
        %v1235 = vlaneseq
        %v1236 = vshrl.u32 %v1235, 7
        %v1237 = vsub.s32 0, %v1236
        %v1238 = vrot.slane %v1233, %v1237
        %v1240 = vadd.f32 %v1217, %v1238
        %v1241 = vadd.f32 %v1218, %v1238
        %v1242 = vadd.f32 %v1219, %v1238
        %v1243 = vadd.f32 %v1220, %v1238
        %v1244 = vadd.f32 %v1221, %v1238
        %v1245 = vadd.f32 %v1222, %v1238
        %v1246 = vadd.f32 %v1223, %v1238
        %v1247 = vadd.f32 %v1224, %v1238
        %v1248 = vadd.f32 %v1225, %v1238
        %v1249 = vadd.f32 %v1226, %v1238
        %v1250 = vadd.f32 %v1227, %v1238
        %v1251 = vadd.f32 %v1228, %v1238
        %v1252 = vadd.f32 %v1229, %v1238
        %v1253 = vadd.f32 %v1230, %v1238
        %v1254 = vadd.f32 %v1231, %v1238
        %v1255 = vadd.f32 %v1232, %v1238
        %v1256 = vxor.u32 %v1240, 2147483648
        %v1257 = vxor.u32 %v1241, 2147483648
        %v1258 = vxor.u32 %v1242, 2147483648
        %v1259 = vxor.u32 %v1243, 2147483648
        %v1260 = vxor.u32 %v1244, 2147483648
        %v1261 = vxor.u32 %v1245, 2147483648
        %v1262 = vxor.u32 %v1246, 2147483648
        %v1263 = vxor.u32 %v1247, 2147483648
        %v1264 = vxor.u32 %v1248, 2147483648
        %v1265 = vxor.u32 %v1249, 2147483648
        %v1266 = vxor.u32 %v1250, 2147483648
        %v1267 = vxor.u32 %v1251, 2147483648
        %v1268 = vxor.u32 %v1252, 2147483648
        %v1269 = vxor.u32 %v1253, 2147483648
        %v1270 = vxor.u32 %v1254, 2147483648
        %v1271 = vxor.u32 %v1255, 2147483648
        %v1272 = vmul.f32 %v1256, 1.442695
        %v1273 = vpow.pop %v1272
        %v1274 = vmul.f32 %v1257, 1.442695
        %v1275 = vpow.pop %v1274
        %v1276 = vmul.f32 %v1258, 1.442695
        %v1277 = vpow.pop %v1276
        %v1278 = vmul.f32 %v1259, 1.442695
        %v1279 = vpow.pop %v1278
        %v1280 = vmul.f32 %v1260, 1.442695
        %v1281 = vpow.pop %v1280
        %v1282 = vmul.f32 %v1261, 1.442695
        %v1283 = vpow.pop %v1282
        %v1284 = vmul.f32 %v1262, 1.442695
        %v1285 = vpow.pop %v1284
        %v1286 = vmul.f32 %v1263, 1.442695
        %v1287 = vpow.pop %v1286
        %v1288 = vmul.f32 %v1264, 1.442695
        %v1289 = vpow.pop %v1288
        %v1290 = vmul.f32 %v1265, 1.442695
        %v1291 = vpow.pop %v1290
        %v1292 = vmul.f32 %v1266, 1.442695
        %v1293 = vpow.pop %v1292
        %v1294 = vmul.f32 %v1267, 1.442695
        %v1295 = vpow.pop %v1294
        %v1296 = vmul.f32 %v1268, 1.442695
        %v1297 = vpow.pop %v1296
        %v1298 = vmul.f32 %v1269, 1.442695
        %v1299 = vpow.pop %v1298
        %v1300 = vmul.f32 %v1270, 1.442695
        %v1301 = vpow.pop %v1300
        %v1302 = vmul.f32 %v1271, 1.442695
        %v1303 = vpow.pop %v1302
        %v1304 = vadd.f32 %v1273, 1.0
        %v1305 = vadd.f32 %v1275, 1.0
        %v1306 = vadd.f32 %v1277, 1.0
        %v1307 = vadd.f32 %v1279, 1.0
        %v1308 = vadd.f32 %v1281, 1.0
        %v1309 = vadd.f32 %v1283, 1.0
        %v1310 = vadd.f32 %v1285, 1.0
        %v1311 = vadd.f32 %v1287, 1.0
        %v1312 = vadd.f32 %v1289, 1.0
        %v1313 = vadd.f32 %v1291, 1.0
        %v1314 = vadd.f32 %v1293, 1.0
        %v1315 = vadd.f32 %v1295, 1.0
        %v1316 = vadd.f32 %v1297, 1.0
        %v1317 = vadd.f32 %v1299, 1.0
        %v1318 = vadd.f32 %v1301, 1.0
        %v1319 = vadd.f32 %v1303, 1.0
        %v1320 = vrcp.pop %v1304
        %v1321 = vmul.f32 1.0, %v1320
        %v1322 = vrcp.pop %v1305
        %v1323 = vmul.f32 1.0, %v1322
        %v1324 = vrcp.pop %v1306
        %v1325 = vmul.f32 1.0, %v1324
        %v1326 = vrcp.pop %v1307
        %v1327 = vmul.f32 1.0, %v1326
        %v1328 = vrcp.pop %v1308
        %v1329 = vmul.f32 1.0, %v1328
        %v1330 = vrcp.pop %v1309
        %v1331 = vmul.f32 1.0, %v1330
        %v1332 = vrcp.pop %v1310
        %v1333 = vmul.f32 1.0, %v1332
        %v1334 = vrcp.pop %v1311
        %v1335 = vmul.f32 1.0, %v1334
        %v1336 = vrcp.pop %v1312
        %v1337 = vmul.f32 1.0, %v1336
        %v1338 = vrcp.pop %v1313
        %v1339 = vmul.f32 1.0, %v1338
        %v1340 = vrcp.pop %v1314
        %v1341 = vmul.f32 1.0, %v1340
        %v1342 = vrcp.pop %v1315
        %v1343 = vmul.f32 1.0, %v1342
        %v1344 = vrcp.pop %v1316
        %v1345 = vmul.f32 1.0, %v1344
        %v1346 = vrcp.pop %v1317
        %v1347 = vmul.f32 1.0, %v1346
        %v1348 = vrcp.pop %v1318
        %v1349 = vmul.f32 1.0, %v1348
        %v1350 = vrcp.pop %v1319
        %v1351 = vmul.f32 1.0, %v1350
        %v1352 = vunpack.c.l.bf16 %v646
        %v1353 = vunpack.c.l.bf16 %v647
        %v1354 = vunpack.c.l.bf16 %v648
        %v1355 = vunpack.c.l.bf16 %v649
        %v1356 = vunpack.c.l.bf16 %v650
        %v1357 = vunpack.c.l.bf16 %v651
        %v1358 = vunpack.c.l.bf16 %v652
        %v1359 = vunpack.c.l.bf16 %v653
        %v1360 = vunpack.c.l.bf16 %v654
        %v1361 = vunpack.c.l.bf16 %v655
        %v1362 = vunpack.c.l.bf16 %v656
        %v1363 = vunpack.c.l.bf16 %v657
        %v1364 = vunpack.c.l.bf16 %v658
        %v1365 = vunpack.c.l.bf16 %v659
        %v1366 = vunpack.c.l.bf16 %v660
        %v1367 = vunpack.c.l.bf16 %v661
        %v1368 = vmul.f32 %v1321, %v1352
        %v1369 = vmul.f32 %v1323, %v1353
        %v1370 = vmul.f32 %v1325, %v1354
        %v1371 = vmul.f32 %v1327, %v1355
        %v1372 = vmul.f32 %v1329, %v1356
        %v1373 = vmul.f32 %v1331, %v1357
        %v1374 = vmul.f32 %v1333, %v1358
        %v1375 = vmul.f32 %v1335, %v1359
        %v1376 = vmul.f32 %v1337, %v1360
        %v1377 = vmul.f32 %v1339, %v1361
        %v1378 = vmul.f32 %v1341, %v1362
        %v1379 = vmul.f32 %v1343, %v1363
        %v1380 = vmul.f32 %v1345, %v1364
        %v1381 = vmul.f32 %v1347, %v1365
        %v1382 = vmul.f32 %v1349, %v1366
        %v1383 = vmul.f32 %v1351, %v1367
        %v1384 = vsub.f32 1.0, %v1321
        %v1385 = vsub.f32 1.0, %v1323
        %v1386 = vsub.f32 1.0, %v1325
        %v1387 = vsub.f32 1.0, %v1327
        %v1388 = vsub.f32 1.0, %v1329
        %v1389 = vsub.f32 1.0, %v1331
        %v1390 = vsub.f32 1.0, %v1333
        %v1391 = vsub.f32 1.0, %v1335
        %v1392 = vsub.f32 1.0, %v1337
        %v1393 = vsub.f32 1.0, %v1339
        %v1394 = vsub.f32 1.0, %v1341
        %v1395 = vsub.f32 1.0, %v1343
        %v1396 = vsub.f32 1.0, %v1345
        %v1397 = vsub.f32 1.0, %v1347
        %v1398 = vsub.f32 1.0, %v1349
        %v1399 = vsub.f32 1.0, %v1351
        %v1400 = vunpack.c.l.bf16 %v662
        %v1401 = vunpack.c.l.bf16 %v663
        %v1402 = vunpack.c.l.bf16 %v664
        %v1403 = vunpack.c.l.bf16 %v665
        %v1404 = vunpack.c.l.bf16 %v666
        %v1405 = vunpack.c.l.bf16 %v667
        %v1406 = vunpack.c.l.bf16 %v668
        %v1407 = vunpack.c.l.bf16 %v669
        %v1408 = vunpack.c.l.bf16 %v670
        %v1409 = vunpack.c.l.bf16 %v671
        %v1410 = vunpack.c.l.bf16 %v672
        %v1411 = vunpack.c.l.bf16 %v673
        %v1412 = vunpack.c.l.bf16 %v674
        %v1413 = vunpack.c.l.bf16 %v675
        %v1414 = vunpack.c.l.bf16 %v676
        %v1415 = vunpack.c.l.bf16 %v677
        %v1416 = vmul.f32 %v1384, %v1400
        %v1417 = vmul.f32 %v1385, %v1401
        %v1418 = vmul.f32 %v1386, %v1402
        %v1419 = vmul.f32 %v1387, %v1403
        %v1420 = vmul.f32 %v1388, %v1404
        %v1421 = vmul.f32 %v1389, %v1405
        %v1422 = vmul.f32 %v1390, %v1406
        %v1423 = vmul.f32 %v1391, %v1407
        %v1424 = vmul.f32 %v1392, %v1408
        %v1425 = vmul.f32 %v1393, %v1409
        %v1426 = vmul.f32 %v1394, %v1410
        %v1427 = vmul.f32 %v1395, %v1411
        %v1428 = vmul.f32 %v1396, %v1412
        %v1429 = vmul.f32 %v1397, %v1413
        %v1430 = vmul.f32 %v1398, %v1414
        %v1431 = vmul.f32 %v1399, %v1415
        %v1432 = vadd.f32 %v1368, %v1416
        %v1433 = vadd.f32 %v1369, %v1417
        %v1434 = vadd.f32 %v1370, %v1418
        %v1435 = vadd.f32 %v1371, %v1419
        %v1436 = vadd.f32 %v1372, %v1420
        %v1437 = vadd.f32 %v1373, %v1421
        %v1438 = vadd.f32 %v1374, %v1422
        %v1439 = vadd.f32 %v1375, %v1423
        %v1440 = vadd.f32 %v1376, %v1424
        %v1441 = vadd.f32 %v1377, %v1425
        %v1442 = vadd.f32 %v1378, %v1426
        %v1443 = vadd.f32 %v1379, %v1427
        %v1444 = vadd.f32 %v1380, %v1428
        %v1445 = vadd.f32 %v1381, %v1429
        %v1446 = vadd.f32 %v1382, %v1430
        %v1447 = vadd.f32 %v1383, %v1431
        %v1448 = vld [vmem:[%s622] sm:$0xf]
        %v1449 = vld [vmem:[%s622 + $0x4] sm:$0xf]
        %v1450 = vld [vmem:[%s622 + $0x8] sm:$0xf]
        %v1451 = vld [vmem:[%s622 + $0xc] sm:$0xf]
        %v1452 = vld [vmem:[%s622 + $0x10] sm:$0xf]
        %v1453 = vld [vmem:[%s622 + $0x14] sm:$0xf]
        %v1454 = vld [vmem:[%s622 + $0x18] sm:$0xf]
        %v1455 = vld [vmem:[%s622 + $0x1c] sm:$0xf]
        %v1456 = vld [vmem:[%s622 + $0x20] sm:$0xf]
        %v1457 = vld [vmem:[%s622 + $0x24] sm:$0xf]
        %v1458 = vld [vmem:[%s622 + $0x28] sm:$0xf]
        %v1459 = vld [vmem:[%s622 + $0x2c] sm:$0xf]
        %v1460 = vld [vmem:[%s622 + $0x30] sm:$0xf]
        %v1461 = vld [vmem:[%s622 + $0x34] sm:$0xf]
        %v1462 = vld [vmem:[%s622 + $0x38] sm:$0xf]
        %v1463 = vld [vmem:[%s622 + $0x3c] sm:$0xf]
        %v1464 = vld [vmem:[%s627] sm:$0xf]
        %v1465 = vld [vmem:[%s627 + $0x4] sm:$0xf]
        %v1466 = vld [vmem:[%s627 + $0x8] sm:$0xf]
        %v1467 = vld [vmem:[%s627 + $0xc] sm:$0xf]
        %v1468 = vld [vmem:[%s627 + $0x10] sm:$0xf]
        %v1469 = vld [vmem:[%s627 + $0x14] sm:$0xf]
        %v1470 = vld [vmem:[%s627 + $0x18] sm:$0xf]
        %v1471 = vld [vmem:[%s627 + $0x1c] sm:$0xf]
        %v1472 = vld [vmem:[%s627 + $0x20] sm:$0xf]
        %v1473 = vld [vmem:[%s627 + $0x24] sm:$0xf]
        %v1474 = vld [vmem:[%s627 + $0x28] sm:$0xf]
        %v1475 = vld [vmem:[%s627 + $0x2c] sm:$0xf]
        %v1476 = vld [vmem:[%s627 + $0x30] sm:$0xf]
        %v1477 = vld [vmem:[%s627 + $0x34] sm:$0xf]
        %v1478 = vld [vmem:[%s627 + $0x38] sm:$0xf]
        %v1479 = vld [vmem:[%s627 + $0x3c] sm:$0xf]
        %v1480 = vunpack.c.l.bf16 %v873
        %v1481 = vunpack.c.h.bf16 %v873
        %v1482 = vunpack.c.l.bf16 %v876
        %v1483 = vunpack.c.h.bf16 %v876
        %v1484 = vunpack.c.l.bf16 %v879
        %v1485 = vunpack.c.h.bf16 %v879
        %v1486 = vunpack.c.l.bf16 %v882
        %v1487 = vunpack.c.h.bf16 %v882
        %v1488 = vunpack.c.l.bf16 %v885
        %v1489 = vunpack.c.h.bf16 %v885
        %v1490 = vunpack.c.l.bf16 %v888
        %v1491 = vunpack.c.h.bf16 %v888
        %v1492 = vunpack.c.l.bf16 %v891
        %v1493 = vunpack.c.h.bf16 %v891
        %v1494 = vunpack.c.l.bf16 %v894
        %v1495 = vunpack.c.h.bf16 %v894
        %v1512 = vunpack.c.l.b16 %v1448
        %v1513 = vunpack.c.l.b16 %v1449
        %v1514 = vunpack.c.l.b16 %v1450
        %v1515 = vunpack.c.l.b16 %v1451
        %v1516 = vunpack.c.l.b16 %v1452
        %v1517 = vunpack.c.l.b16 %v1453
        %v1518 = vunpack.c.l.b16 %v1454
        %v1519 = vunpack.c.l.b16 %v1455
        %v1520 = vunpack.c.l.b16 %v1456
        %v1521 = vunpack.c.l.b16 %v1457
        %v1522 = vunpack.c.l.b16 %v1458
        %v1523 = vunpack.c.l.b16 %v1459
        %v1524 = vunpack.c.l.b16 %v1460
        %v1525 = vunpack.c.l.b16 %v1461
        %v1526 = vunpack.c.l.b16 %v1462
        %v1527 = vunpack.c.l.b16 %v1463
        %v1528 = vpack.c.b16 %v1513, %v1512
        %v1529 = vpack.c.b16 %v1515, %v1514
        %v1530 = vpack.c.b16 %v1517, %v1516
        %v1531 = vpack.c.b16 %v1519, %v1518
        %v1532 = vpack.c.b16 %v1521, %v1520
        %v1533 = vpack.c.b16 %v1523, %v1522
        %v1534 = vpack.c.b16 %v1525, %v1524
        %v1535 = vpack.c.b16 %v1527, %v1526
        %1544 = vmatprep.subr.bf16.mxu0 0
        %1545 = vmatpush1.bf16.msra.mxu0 %v873
        %1546 = vmatprep.subr.bf16.mxu0 0
        %1547 = vmatpush1.bf16.msra.mxu0 %v876
        %1548 = vmatprep.subr.bf16.mxu0 0
        %1549 = vmatpush1.bf16.msra.mxu0 %v879
        %1550 = vmatprep.subr.bf16.mxu0 0
        %1551 = vmatpush1.bf16.msra.mxu0 %v882
        %1552 = vmatprep.subr.bf16.mxu0 0
        %1553 = vmatpush1.bf16.msra.mxu0 %v885
        %1554 = vmatprep.subr.bf16.mxu0 0
        %1555 = vmatpush1.bf16.msra.mxu0 %v888
        %1556 = vmatprep.subr.bf16.mxu0 0
        %1557 = vmatpush1.bf16.msra.mxu0 %v891
        %1558 = vmatprep.subr.bf16.mxu0 0
        %1559 = vmatpush1.bf16.msra.mxu0 %v894
        %1560 = vmatprep.subr.bf16.mxu0 0
        %1561 = vmatpush1.bf16.msra.mxu0 0
        %1562 = vmatprep.subr.bf16.mxu0 0
        %1563 = vmatpush1.bf16.msra.mxu0 0
        %1564 = vmatprep.subr.bf16.mxu0 0
        %1565 = vmatpush1.bf16.msra.mxu0 0
        %1566 = vmatprep.subr.bf16.mxu0 0
        %1567 = vmatpush1.bf16.msra.mxu0 0
        %1568 = vmatprep.subr.bf16.mxu0 0
        %1569 = vmatpush1.bf16.msra.mxu0 0
        %1570 = vmatprep.subr.bf16.mxu0 0
        %1571 = vmatpush1.bf16.msra.mxu0 0
        %1572 = vmatprep.subr.bf16.mxu0 0
        %1573 = vmatpush1.bf16.msra.mxu0 0
        %1574 = vmatprep.subr.bf16.mxu0 0
        %1575 = vmatpush1.bf16.msra.mxu0 0
        %1576 = vmatprep.mubr.bf16.mxu0 0
        %1577 = vmatmul.mubr.bf16.gmra.mrb[0].mxu0 %v1528
        %v1578 = vpop.f32.mrb[0].mxu0
        %v1579 = vadd.f32 0.0, %v1578
        %v1580 = vpop.f32.mrb[0].mxu0
        %v1581 = vpop.f32.mrb[0].mxu0
        %v1582 = vadd.f32 0.0, %v1581
        %v1583 = vpop.f32.mrb[0].mxu0
        %1584 = vmatprep.mubr.bf16.mxu0 0
        %1585 = vmatmul.mubr.bf16.gmra.mrb[0].mxu0 %v1529
        %v1586 = vpop.f32.mrb[0].mxu0
        %v1587 = vadd.f32 0.0, %v1586
        %v1588 = vpop.f32.mrb[0].mxu0
        %v1589 = vpop.f32.mrb[0].mxu0
        %v1590 = vadd.f32 0.0, %v1589
        %v1591 = vpop.f32.mrb[0].mxu0
        %1592 = vmatprep.mubr.bf16.mxu0 0
        %1593 = vmatmul.mubr.bf16.gmra.mrb[0].mxu0 %v1530
        %v1594 = vpop.f32.mrb[0].mxu0
        %v1595 = vadd.f32 0.0, %v1594
        %v1596 = vpop.f32.mrb[0].mxu0
        %v1597 = vpop.f32.mrb[0].mxu0
        %v1598 = vadd.f32 0.0, %v1597
        %v1599 = vpop.f32.mrb[0].mxu0
        %1600 = vmatprep.mubr.bf16.mxu0 0
        %1601 = vmatmul.mubr.bf16.gmra.mrb[0].mxu0 %v1531
        %v1602 = vpop.f32.mrb[0].mxu0
        %v1603 = vadd.f32 0.0, %v1602
        %v1604 = vpop.f32.mrb[0].mxu0
        %v1605 = vpop.f32.mrb[0].mxu0
        %v1606 = vadd.f32 0.0, %v1605
        %v1607 = vpop.f32.mrb[0].mxu0
        %1608 = vmatprep.mubr.bf16.mxu0 0
        %1609 = vmatmul.mubr.bf16.gmra.mrb[0].mxu0 %v1532
        %v1610 = vpop.f32.mrb[0].mxu0
        %v1611 = vadd.f32 0.0, %v1610
        %v1612 = vpop.f32.mrb[0].mxu0
        %v1613 = vpop.f32.mrb[0].mxu0
        %v1614 = vadd.f32 0.0, %v1613
        %v1615 = vpop.f32.mrb[0].mxu0
        %1616 = vmatprep.mubr.bf16.mxu0 0
        %1617 = vmatmul.mubr.bf16.gmra.mrb[0].mxu0 %v1533
        %v1618 = vpop.f32.mrb[0].mxu0
        %v1619 = vadd.f32 0.0, %v1618
        %v1620 = vpop.f32.mrb[0].mxu0
        %v1621 = vpop.f32.mrb[0].mxu0
        %v1622 = vadd.f32 0.0, %v1621
        %v1623 = vpop.f32.mrb[0].mxu0
        %1624 = vmatprep.mubr.bf16.mxu0 0
        %1625 = vmatmul.mubr.bf16.gmra.mrb[0].mxu0 %v1534
        %v1626 = vpop.f32.mrb[0].mxu0
        %v1627 = vadd.f32 0.0, %v1626
        %v1628 = vpop.f32.mrb[0].mxu0
        %v1629 = vpop.f32.mrb[0].mxu0
        %v1630 = vadd.f32 0.0, %v1629
        %v1631 = vpop.f32.mrb[0].mxu0
        %1632 = vmatprep.mubr.bf16.mxu0 0
        %1633 = vmatmul.mubr.bf16.gmra.mrb[0].mxu0 %v1535
        %v1634 = vpop.f32.mrb[0].mxu0
        %v1635 = vadd.f32 0.0, %v1634
        %v1636 = vpop.f32.mrb[0].mxu0
        %v1637 = vpop.f32.mrb[0].mxu0
        %v1638 = vadd.f32 0.0, %v1637
        %v1639 = vpop.f32.mrb[0].mxu0
        %1640 = vdwg.mxu0
        %v1641 = vpack.c.bf16 %v1582, %v1579
        %v1642 = vpack.c.bf16 %v1590, %v1587
        %v1643 = vpack.c.bf16 %v1598, %v1595
        %v1644 = vpack.c.bf16 %v1606, %v1603
        %v1645 = vpack.c.bf16 %v1614, %v1611
        %v1646 = vpack.c.bf16 %v1622, %v1619
        %v1647 = vpack.c.bf16 %v1630, %v1627
        %v1648 = vpack.c.bf16 %v1638, %v1635
        %v1649 = vld [vmem:[%s9] sm:$0xf]
        %v1650 = vld [vmem:[%s9 + $0x4] sm:$0xf]
        %v1651 = vld [vmem:[%s9 + $0x8] sm:$0xf]
        %v1652 = vld [vmem:[%s9 + $0xc] sm:$0xf]
        %v1653 = vld [vmem:[%s9 + $0x10] sm:$0xf]
        %v1654 = vld [vmem:[%s9 + $0x14] sm:$0xf]
        %v1655 = vld [vmem:[%s9 + $0x18] sm:$0xf]
        %v1656 = vld [vmem:[%s9 + $0x1c] sm:$0xf]
        %v1657 = vld [vmem:[%s9 + $0x20] sm:$0x3]
        %v1667 = vunpack.c.l.b16 %v1649
        %v1668 = vunpack.c.l.b16 %v1650
        %v1669 = vunpack.c.l.b16 %v1651
        %v1670 = vunpack.c.l.b16 %v1652
        %v1671 = vunpack.c.l.b16 %v1653
        %v1672 = vunpack.c.l.b16 %v1654
        %v1673 = vunpack.c.l.b16 %v1655
        %v1674 = vunpack.c.l.b16 %v1656
        %v1675 = vunpack.c.l.b16 %v1657
        %v1676 = vpack.c.b16 %v1668, %v1667
        %v1677 = vpack.c.b16 %v1670, %v1669
        %v1678 = vpack.c.b16 %v1672, %v1671
        %v1679 = vpack.c.b16 %v1674, %v1673
        %v1680 = vpack.c.b16 %v1675, %v1675
        %v1686 = vsel %vm932, %v1641, 0
        %v1689 = vsel %vm932, %v1642, 0
        %v1692 = vsel %vm932, %v1643, 0
        %v1695 = vsel %vm932, %v1644, 0
        %v1698 = vsel %vm932, %v1645, 0
        %v1701 = vsel %vm932, %v1646, 0
        %v1704 = vsel %vm932, %v1647, 0
        %v1707 = vsel %vm932, %v1648, 0
        %v1710 = vsel %vm949, %v1680, 0
        %1712 = vmatprep.subr.bf16.mxu0 0
        %1713 = vmatpush1.bf16.msra.mxu0 %v1676
        %1714 = vmatprep.subr.bf16.mxu0 0
        %1715 = vmatpush1.bf16.msra.mxu0 %v1677
        %1716 = vmatprep.subr.bf16.mxu0 0
        %1717 = vmatpush1.bf16.msra.mxu0 %v1678
        %1718 = vmatprep.subr.bf16.mxu0 0
        %1719 = vmatpush1.bf16.msra.mxu0 %v1679
        %1720 = vmatprep.subr.bf16.mxu0 0
        %1721 = vmatpush1.bf16.msra.mxu0 %v1710
        %1722 = vmatprep.subr.bf16.mxu0 0
        %1723 = vmatpush1.bf16.msra.mxu0 0
        %1724 = vmatprep.subr.bf16.mxu0 0
        %1725 = vmatpush1.bf16.msra.mxu0 0
        %1726 = vmatprep.subr.bf16.mxu0 0
        %1727 = vmatpush1.bf16.msra.mxu0 0
        %1728 = vmatprep.subr.bf16.mxu0 0
        %1729 = vmatpush1.bf16.msra.mxu0 0
        %1730 = vmatprep.subr.bf16.mxu0 0
        %1731 = vmatpush1.bf16.msra.mxu0 0
        %1732 = vmatprep.subr.bf16.mxu0 0
        %1733 = vmatpush1.bf16.msra.mxu0 0
        %1734 = vmatprep.subr.bf16.mxu0 0
        %1735 = vmatpush1.bf16.msra.mxu0 0
        %1736 = vmatprep.subr.bf16.mxu0 0
        %1737 = vmatpush1.bf16.msra.mxu0 0
        %1738 = vmatprep.subr.bf16.mxu0 0
        %1739 = vmatpush1.bf16.msra.mxu0 0
        %1740 = vmatprep.subr.bf16.mxu0 0
        %1741 = vmatpush1.bf16.msra.mxu0 0
        %1742 = vmatprep.subr.bf16.mxu0 0
        %1743 = vmatpush1.bf16.msra.mxu0 0
        %1744 = vmatprep.mubr.bf16.mxu0 0
        %1745 = vmatmul.mubr.bf16.gmra.mrb[0].mxu0 %v1686
        %v1746 = vpop.f32.mrb[0].mxu0
        %v1747 = vadd.f32 0.0, %v1746
        %v1748 = vpop.f32.mrb[0].mxu0
        %v1749 = vpop.f32.mrb[0].mxu0
        %v1750 = vadd.f32 0.0, %v1749
        %v1751 = vpop.f32.mrb[0].mxu0
        %1752 = vmatprep.mubr.bf16.mxu0 0
        %1753 = vmatmul.mubr.bf16.gmra.mrb[0].mxu0 %v1689
        %v1754 = vpop.f32.mrb[0].mxu0
        %v1755 = vadd.f32 0.0, %v1754
        %v1756 = vpop.f32.mrb[0].mxu0
        %v1757 = vpop.f32.mrb[0].mxu0
        %v1758 = vadd.f32 0.0, %v1757
        %v1759 = vpop.f32.mrb[0].mxu0
        %1760 = vmatprep.mubr.bf16.mxu0 0
        %1761 = vmatmul.mubr.bf16.gmra.mrb[0].mxu0 %v1692
        %v1762 = vpop.f32.mrb[0].mxu0
        %v1763 = vadd.f32 0.0, %v1762
        %v1764 = vpop.f32.mrb[0].mxu0
        %v1765 = vpop.f32.mrb[0].mxu0
        %v1766 = vadd.f32 0.0, %v1765
        %v1767 = vpop.f32.mrb[0].mxu0
        %1768 = vmatprep.mubr.bf16.mxu0 0
        %1769 = vmatmul.mubr.bf16.gmra.mrb[0].mxu0 %v1695
        %v1770 = vpop.f32.mrb[0].mxu0
        %v1771 = vadd.f32 0.0, %v1770
        %v1772 = vpop.f32.mrb[0].mxu0
        %v1773 = vpop.f32.mrb[0].mxu0
        %v1774 = vadd.f32 0.0, %v1773
        %v1775 = vpop.f32.mrb[0].mxu0
        %1776 = vmatprep.mubr.bf16.mxu0 0
        %1777 = vmatmul.mubr.bf16.gmra.mrb[0].mxu0 %v1698
        %v1778 = vpop.f32.mrb[0].mxu0
        %v1779 = vadd.f32 0.0, %v1778
        %v1780 = vpop.f32.mrb[0].mxu0
        %v1781 = vpop.f32.mrb[0].mxu0
        %v1782 = vadd.f32 0.0, %v1781
        %v1783 = vpop.f32.mrb[0].mxu0
        %1784 = vmatprep.mubr.bf16.mxu0 0
        %1785 = vmatmul.mubr.bf16.gmra.mrb[0].mxu0 %v1701
        %v1786 = vpop.f32.mrb[0].mxu0
        %v1787 = vadd.f32 0.0, %v1786
        %v1788 = vpop.f32.mrb[0].mxu0
        %v1789 = vpop.f32.mrb[0].mxu0
        %v1790 = vadd.f32 0.0, %v1789
        %v1791 = vpop.f32.mrb[0].mxu0
        %1792 = vmatprep.mubr.bf16.mxu0 0
        %1793 = vmatmul.mubr.bf16.gmra.mrb[0].mxu0 %v1704
        %v1794 = vpop.f32.mrb[0].mxu0
        %v1795 = vadd.f32 0.0, %v1794
        %v1796 = vpop.f32.mrb[0].mxu0
        %v1797 = vpop.f32.mrb[0].mxu0
        %v1798 = vadd.f32 0.0, %v1797
        %v1799 = vpop.f32.mrb[0].mxu0
        %1800 = vmatprep.mubr.bf16.mxu0 0
        %1801 = vmatmul.mubr.bf16.gmra.mrb[0].mxu0 %v1707
        %v1802 = vpop.f32.mrb[0].mxu0
        %v1803 = vadd.f32 0.0, %v1802
        %v1804 = vpop.f32.mrb[0].mxu0
        %v1805 = vpop.f32.mrb[0].mxu0
        %v1806 = vadd.f32 0.0, %v1805
        %v1807 = vpop.f32.mrb[0].mxu0
        %1808 = vdwg.mxu0
        %1825 = vrot.lane.b32.xlu0 %v1747, 32
        %v1826 = vpop.permute.xlu0 %1825
        %1827 = vrot.lane.b32.xlu0 %v1750, 32
        %v1828 = vpop.permute.xlu0 %1827
        %1829 = vrot.lane.b32.xlu0 %v1755, 32
        %v1830 = vpop.permute.xlu0 %1829
        %1831 = vrot.lane.b32.xlu0 %v1758, 32
        %v1832 = vpop.permute.xlu0 %1831
        %1833 = vrot.lane.b32.xlu0 %v1763, 32
        %v1834 = vpop.permute.xlu0 %1833
        %1835 = vrot.lane.b32.xlu0 %v1766, 32
        %v1836 = vpop.permute.xlu0 %1835
        %1837 = vrot.lane.b32.xlu0 %v1771, 32
        %v1838 = vpop.permute.xlu0 %1837
        %1839 = vrot.lane.b32.xlu0 %v1774, 32
        %v1840 = vpop.permute.xlu0 %1839
        %1841 = vrot.lane.b32.xlu0 %v1779, 32
        %v1842 = vpop.permute.xlu0 %1841
        %1843 = vrot.lane.b32.xlu0 %v1782, 32
        %v1844 = vpop.permute.xlu0 %1843
        %1845 = vrot.lane.b32.xlu0 %v1787, 32
        %v1846 = vpop.permute.xlu0 %1845
        %1847 = vrot.lane.b32.xlu0 %v1790, 32
        %v1848 = vpop.permute.xlu0 %1847
        %1849 = vrot.lane.b32.xlu0 %v1795, 32
        %v1850 = vpop.permute.xlu0 %1849
        %1851 = vrot.lane.b32.xlu0 %v1798, 32
        %v1852 = vpop.permute.xlu0 %1851
        %1853 = vrot.lane.b32.xlu0 %v1803, 32
        %v1854 = vpop.permute.xlu0 %1853
        %1855 = vrot.lane.b32.xlu0 %v1806, 32
        %v1856 = vpop.permute.xlu0 %1855
        %v1873 = vadd.f32 %v988, %v1826
        %v1874 = vadd.f32 %v991, %v1828
        %v1875 = vadd.f32 %v996, %v1830
        %v1876 = vadd.f32 %v999, %v1832
        %v1877 = vadd.f32 %v1004, %v1834
        %v1878 = vadd.f32 %v1007, %v1836
        %v1879 = vadd.f32 %v1012, %v1838
        %v1880 = vadd.f32 %v1015, %v1840
        %v1881 = vadd.f32 %v1020, %v1842
        %v1882 = vadd.f32 %v1023, %v1844
        %v1883 = vadd.f32 %v1028, %v1846
        %v1884 = vadd.f32 %v1031, %v1848
        %v1885 = vadd.f32 %v1036, %v1850
        %v1886 = vadd.f32 %v1039, %v1852
        %v1887 = vadd.f32 %v1044, %v1854
        %v1888 = vadd.f32 %v1047, %v1856
        %1889 = vmatprep.subr.bf16.mxu0 0
        %1890 = vmatpush1.bf16.msra.mxu0 %v1641
        %1891 = vmatprep.subr.bf16.mxu0 0
        %1892 = vmatpush1.bf16.msra.mxu0 %v1642
        %1893 = vmatprep.subr.bf16.mxu0 0
        %1894 = vmatpush1.bf16.msra.mxu0 %v1643
        %1895 = vmatprep.subr.bf16.mxu0 0
        %1896 = vmatpush1.bf16.msra.mxu0 %v1644
        %1897 = vmatprep.subr.bf16.mxu0 0
        %1898 = vmatpush1.bf16.msra.mxu0 %v1645
        %1899 = vmatprep.subr.bf16.mxu0 0
        %1900 = vmatpush1.bf16.msra.mxu0 %v1646
        %1901 = vmatprep.subr.bf16.mxu0 0
        %1902 = vmatpush1.bf16.msra.mxu0 %v1647
        %1903 = vmatprep.subr.bf16.mxu0 0
        %1904 = vmatpush1.bf16.msra.mxu0 %v1648
        %1905 = vmatprep.subr.bf16.mxu0 0
        %1906 = vmatpush1.bf16.msra.mxu0 0
        %1907 = vmatprep.subr.bf16.mxu0 0
        %1908 = vmatpush1.bf16.msra.mxu0 0
        %1909 = vmatprep.subr.bf16.mxu0 0
        %1910 = vmatpush1.bf16.msra.mxu0 0
        %1911 = vmatprep.subr.bf16.mxu0 0
        %1912 = vmatpush1.bf16.msra.mxu0 0
        %1913 = vmatprep.subr.bf16.mxu0 0
        %1914 = vmatpush1.bf16.msra.mxu0 0
        %1915 = vmatprep.subr.bf16.mxu0 0
        %1916 = vmatpush1.bf16.msra.mxu0 0
        %1917 = vmatprep.subr.bf16.mxu0 0
        %1918 = vmatpush1.bf16.msra.mxu0 0
        %1919 = vmatprep.subr.bf16.mxu0 0
        %1920 = vmatpush1.bf16.msra.mxu0 0
        %1921 = vmatprep.mubr.bf16.mxu0 0
        %1922 = vmatmul.mubr.bf16.gmra.mrb[0].mxu0 %v1528
        %v1923 = vpop.f32.mrb[0].mxu0
        %v1924 = vadd.f32 0.0, %v1923
        %v1925 = vpop.f32.mrb[0].mxu0
        %v1926 = vpop.f32.mrb[0].mxu0
        %v1927 = vadd.f32 0.0, %v1926
        %v1928 = vpop.f32.mrb[0].mxu0
        %1929 = vmatprep.mubr.bf16.mxu0 0
        %1930 = vmatmul.mubr.bf16.gmra.mrb[0].mxu0 %v1529
        %v1931 = vpop.f32.mrb[0].mxu0
        %v1932 = vadd.f32 0.0, %v1931
        %v1933 = vpop.f32.mrb[0].mxu0
        %v1934 = vpop.f32.mrb[0].mxu0
        %v1935 = vadd.f32 0.0, %v1934
        %v1936 = vpop.f32.mrb[0].mxu0
        %1937 = vmatprep.mubr.bf16.mxu0 0
        %1938 = vmatmul.mubr.bf16.gmra.mrb[0].mxu0 %v1530
        %v1939 = vpop.f32.mrb[0].mxu0
        %v1940 = vadd.f32 0.0, %v1939
        %v1941 = vpop.f32.mrb[0].mxu0
        %v1942 = vpop.f32.mrb[0].mxu0
        %v1943 = vadd.f32 0.0, %v1942
        %v1944 = vpop.f32.mrb[0].mxu0
        %1945 = vmatprep.mubr.bf16.mxu0 0
        %1946 = vmatmul.mubr.bf16.gmra.mrb[0].mxu0 %v1531
        %v1947 = vpop.f32.mrb[0].mxu0
        %v1948 = vadd.f32 0.0, %v1947
        %v1949 = vpop.f32.mrb[0].mxu0
        %v1950 = vpop.f32.mrb[0].mxu0
        %v1951 = vadd.f32 0.0, %v1950
        %v1952 = vpop.f32.mrb[0].mxu0
        %1953 = vmatprep.mubr.bf16.mxu0 0
        %1954 = vmatmul.mubr.bf16.gmra.mrb[0].mxu0 %v1532
        %v1955 = vpop.f32.mrb[0].mxu0
        %v1956 = vadd.f32 0.0, %v1955
        %v1957 = vpop.f32.mrb[0].mxu0
        %v1958 = vpop.f32.mrb[0].mxu0
        %v1959 = vadd.f32 0.0, %v1958
        %v1960 = vpop.f32.mrb[0].mxu0
        %1961 = vmatprep.mubr.bf16.mxu0 0
        %1962 = vmatmul.mubr.bf16.gmra.mrb[0].mxu0 %v1533
        %v1963 = vpop.f32.mrb[0].mxu0
        %v1964 = vadd.f32 0.0, %v1963
        %v1965 = vpop.f32.mrb[0].mxu0
        %v1966 = vpop.f32.mrb[0].mxu0
        %v1967 = vadd.f32 0.0, %v1966
        %v1968 = vpop.f32.mrb[0].mxu0
        %1969 = vmatprep.mubr.bf16.mxu0 0
        %1970 = vmatmul.mubr.bf16.gmra.mrb[0].mxu0 %v1534
        %v1971 = vpop.f32.mrb[0].mxu0
        %v1972 = vadd.f32 0.0, %v1971
        %v1973 = vpop.f32.mrb[0].mxu0
        %v1974 = vpop.f32.mrb[0].mxu0
        %v1975 = vadd.f32 0.0, %v1974
        %v1976 = vpop.f32.mrb[0].mxu0
        %1977 = vmatprep.mubr.bf16.mxu0 0
        %1978 = vmatmul.mubr.bf16.gmra.mrb[0].mxu0 %v1535
        %v1979 = vpop.f32.mrb[0].mxu0
        %v1980 = vadd.f32 0.0, %v1979
        %v1981 = vpop.f32.mrb[0].mxu0
        %v1982 = vpop.f32.mrb[0].mxu0
        %v1983 = vadd.f32 0.0, %v1982
        %v1984 = vpop.f32.mrb[0].mxu0
        %1985 = vdwg.mxu0
        %v1986 = vmul.f32 %v1924, 2.0
        %v1987 = vmul.f32 %v1927, 2.0
        %v1988 = vmul.f32 %v1932, 2.0
        %v1989 = vmul.f32 %v1935, 2.0
        %v1990 = vmul.f32 %v1940, 2.0
        %v1991 = vmul.f32 %v1943, 2.0
        %v1992 = vmul.f32 %v1948, 2.0
        %v1993 = vmul.f32 %v1951, 2.0
        %v1994 = vmul.f32 %v1956, 2.0
        %v1995 = vmul.f32 %v1959, 2.0
        %v1996 = vmul.f32 %v1964, 2.0
        %v1997 = vmul.f32 %v1967, 2.0
        %v1998 = vmul.f32 %v1972, 2.0
        %v1999 = vmul.f32 %v1975, 2.0
        %v2000 = vmul.f32 %v1980, 2.0
        %v2001 = vmul.f32 %v1983, 2.0
        %v2002 = vsub.f32 %v1986, %v1480
        %v2003 = vsub.f32 %v1987, %v1481
        %v2004 = vsub.f32 %v1988, %v1482
        %v2005 = vsub.f32 %v1989, %v1483
        %v2006 = vsub.f32 %v1990, %v1484
        %v2007 = vsub.f32 %v1991, %v1485
        %v2008 = vsub.f32 %v1992, %v1486
        %v2009 = vsub.f32 %v1993, %v1487
        %v2010 = vsub.f32 %v1994, %v1488
        %v2011 = vsub.f32 %v1995, %v1489
        %v2012 = vsub.f32 %v1996, %v1490
        %v2013 = vsub.f32 %v1997, %v1491
        %v2014 = vsub.f32 %v1998, %v1492
        %v2015 = vsub.f32 %v1999, %v1493
        %v2016 = vsub.f32 %v2000, %v1494
        %v2017 = vsub.f32 %v2001, %v1495
        %v2018 = vpack.c.bf16 %v2003, %v2002
        %v2019 = vpack.c.bf16 %v2005, %v2004
        %v2020 = vpack.c.bf16 %v2007, %v2006
        %v2021 = vpack.c.bf16 %v2009, %v2008
        %v2022 = vpack.c.bf16 %v2011, %v2010
        %v2023 = vpack.c.bf16 %v2013, %v2012
        %v2024 = vpack.c.bf16 %v2015, %v2014
        %v2025 = vpack.c.bf16 %v2017, %v2016
        %s2026 = scalar_lea.vmem %s9, 36
        %v2027 = vld [vmem:[%s2026] sm:$0xf]
        %v2028 = vld [vmem:[%s2026 + $0x4] sm:$0xf]
        %v2029 = vld [vmem:[%s2026 + $0x8] sm:$0xf]
        %v2030 = vld [vmem:[%s2026 + $0xc] sm:$0xf]
        %v2031 = vld [vmem:[%s2026 + $0x10] sm:$0xf]
        %v2032 = vld [vmem:[%s2026 + $0x14] sm:$0xf]
        %v2033 = vld [vmem:[%s2026 + $0x18] sm:$0xf]
        %v2034 = vld [vmem:[%s2026 + $0x1c] sm:$0xf]
        %v2035 = vld [vmem:[%s2026 + $0x20] sm:$0x3]
        %v2045 = vunpack.c.l.b16 %v2027
        %v2046 = vunpack.c.l.b16 %v2028
        %v2047 = vunpack.c.l.b16 %v2029
        %v2048 = vunpack.c.l.b16 %v2030
        %v2049 = vunpack.c.l.b16 %v2031
        %v2050 = vunpack.c.l.b16 %v2032
        %v2051 = vunpack.c.l.b16 %v2033
        %v2052 = vunpack.c.l.b16 %v2034
        %v2053 = vunpack.c.l.b16 %v2035
        %v2054 = vpack.c.b16 %v2046, %v2045
        %v2055 = vpack.c.b16 %v2048, %v2047
        %v2056 = vpack.c.b16 %v2050, %v2049
        %v2057 = vpack.c.b16 %v2052, %v2051
        %v2058 = vpack.c.b16 %v2053, %v2053
        %v2064 = vsel %vm932, %v2018, 0
        %v2067 = vsel %vm932, %v2019, 0
        %v2070 = vsel %vm932, %v2020, 0
        %v2073 = vsel %vm932, %v2021, 0
        %v2076 = vsel %vm932, %v2022, 0
        %v2079 = vsel %vm932, %v2023, 0
        %v2082 = vsel %vm932, %v2024, 0
        %v2085 = vsel %vm932, %v2025, 0
        %v2088 = vsel %vm949, %v2058, 0
        %2090 = vmatprep.subr.bf16.mxu0 0
        %2091 = vmatpush1.bf16.msra.mxu0 %v2054
        %2092 = vmatprep.subr.bf16.mxu0 0
        %2093 = vmatpush1.bf16.msra.mxu0 %v2055
        %2094 = vmatprep.subr.bf16.mxu0 0
        %2095 = vmatpush1.bf16.msra.mxu0 %v2056
        %2096 = vmatprep.subr.bf16.mxu0 0
        %2097 = vmatpush1.bf16.msra.mxu0 %v2057
        %2098 = vmatprep.subr.bf16.mxu0 0
        %2099 = vmatpush1.bf16.msra.mxu0 %v2088
        %2100 = vmatprep.subr.bf16.mxu0 0
        %2101 = vmatpush1.bf16.msra.mxu0 0
        %2102 = vmatprep.subr.bf16.mxu0 0
        %2103 = vmatpush1.bf16.msra.mxu0 0
        %2104 = vmatprep.subr.bf16.mxu0 0
        %2105 = vmatpush1.bf16.msra.mxu0 0
        %2106 = vmatprep.subr.bf16.mxu0 0
        %2107 = vmatpush1.bf16.msra.mxu0 0
        %2108 = vmatprep.subr.bf16.mxu0 0
        %2109 = vmatpush1.bf16.msra.mxu0 0
        %2110 = vmatprep.subr.bf16.mxu0 0
        %2111 = vmatpush1.bf16.msra.mxu0 0
        %2112 = vmatprep.subr.bf16.mxu0 0
        %2113 = vmatpush1.bf16.msra.mxu0 0
        %2114 = vmatprep.subr.bf16.mxu0 0
        %2115 = vmatpush1.bf16.msra.mxu0 0
        %2116 = vmatprep.subr.bf16.mxu0 0
        %2117 = vmatpush1.bf16.msra.mxu0 0
        %2118 = vmatprep.subr.bf16.mxu0 0
        %2119 = vmatpush1.bf16.msra.mxu0 0
        %2120 = vmatprep.subr.bf16.mxu0 0
        %2121 = vmatpush1.bf16.msra.mxu0 0
        %2122 = vmatprep.mubr.bf16.mxu0 0
        %2123 = vmatmul.mubr.bf16.gmra.mrb[0].mxu0 %v2064
        %v2124 = vpop.f32.mrb[0].mxu0
        %v2125 = vadd.f32 0.0, %v2124
        %v2126 = vpop.f32.mrb[0].mxu0
        %v2127 = vpop.f32.mrb[0].mxu0
        %v2128 = vadd.f32 0.0, %v2127
        %v2129 = vpop.f32.mrb[0].mxu0
        %2130 = vmatprep.mubr.bf16.mxu0 0
        %2131 = vmatmul.mubr.bf16.gmra.mrb[0].mxu0 %v2067
        %v2132 = vpop.f32.mrb[0].mxu0
        %v2133 = vadd.f32 0.0, %v2132
        %v2134 = vpop.f32.mrb[0].mxu0
        %v2135 = vpop.f32.mrb[0].mxu0
        %v2136 = vadd.f32 0.0, %v2135
        %v2137 = vpop.f32.mrb[0].mxu0
        %2138 = vmatprep.mubr.bf16.mxu0 0
        %2139 = vmatmul.mubr.bf16.gmra.mrb[0].mxu0 %v2070
        %v2140 = vpop.f32.mrb[0].mxu0
        %v2141 = vadd.f32 0.0, %v2140
        %v2142 = vpop.f32.mrb[0].mxu0
        %v2143 = vpop.f32.mrb[0].mxu0
        %v2144 = vadd.f32 0.0, %v2143
        %v2145 = vpop.f32.mrb[0].mxu0
        %2146 = vmatprep.mubr.bf16.mxu0 0
        %2147 = vmatmul.mubr.bf16.gmra.mrb[0].mxu0 %v2073
        %v2148 = vpop.f32.mrb[0].mxu0
        %v2149 = vadd.f32 0.0, %v2148
        %v2150 = vpop.f32.mrb[0].mxu0
        %v2151 = vpop.f32.mrb[0].mxu0
        %v2152 = vadd.f32 0.0, %v2151
        %v2153 = vpop.f32.mrb[0].mxu0
        %2154 = vmatprep.mubr.bf16.mxu0 0
        %2155 = vmatmul.mubr.bf16.gmra.mrb[0].mxu0 %v2076
        %v2156 = vpop.f32.mrb[0].mxu0
        %v2157 = vadd.f32 0.0, %v2156
        %v2158 = vpop.f32.mrb[0].mxu0
        %v2159 = vpop.f32.mrb[0].mxu0
        %v2160 = vadd.f32 0.0, %v2159
        %v2161 = vpop.f32.mrb[0].mxu0
        %2162 = vmatprep.mubr.bf16.mxu0 0
        %2163 = vmatmul.mubr.bf16.gmra.mrb[0].mxu0 %v2079
        %v2164 = vpop.f32.mrb[0].mxu0
        %v2165 = vadd.f32 0.0, %v2164
        %v2166 = vpop.f32.mrb[0].mxu0
        %v2167 = vpop.f32.mrb[0].mxu0
        %v2168 = vadd.f32 0.0, %v2167
        %v2169 = vpop.f32.mrb[0].mxu0
        %2170 = vmatprep.mubr.bf16.mxu0 0
        %2171 = vmatmul.mubr.bf16.gmra.mrb[0].mxu0 %v2082
        %v2172 = vpop.f32.mrb[0].mxu0
        %v2173 = vadd.f32 0.0, %v2172
        %v2174 = vpop.f32.mrb[0].mxu0
        %v2175 = vpop.f32.mrb[0].mxu0
        %v2176 = vadd.f32 0.0, %v2175
        %v2177 = vpop.f32.mrb[0].mxu0
        %2178 = vmatprep.mubr.bf16.mxu0 0
        %2179 = vmatmul.mubr.bf16.gmra.mrb[0].mxu0 %v2085
        %v2180 = vpop.f32.mrb[0].mxu0
        %v2181 = vadd.f32 0.0, %v2180
        %v2182 = vpop.f32.mrb[0].mxu0
        %v2183 = vpop.f32.mrb[0].mxu0
        %v2184 = vadd.f32 0.0, %v2183
        %v2185 = vpop.f32.mrb[0].mxu0
        %2186 = vdwg.mxu0
        %2203 = vrot.lane.b32.xlu0 %v2125, 32
        %v2204 = vpop.permute.xlu0 %2203
        %2205 = vrot.lane.b32.xlu0 %v2128, 32
        %v2206 = vpop.permute.xlu0 %2205
        %2207 = vrot.lane.b32.xlu0 %v2133, 32
        %v2208 = vpop.permute.xlu0 %2207
        %2209 = vrot.lane.b32.xlu0 %v2136, 32
        %v2210 = vpop.permute.xlu0 %2209
        %2211 = vrot.lane.b32.xlu0 %v2141, 32
        %v2212 = vpop.permute.xlu0 %2211
        %2213 = vrot.lane.b32.xlu0 %v2144, 32
        %v2214 = vpop.permute.xlu0 %2213
        %2215 = vrot.lane.b32.xlu0 %v2149, 32
        %v2216 = vpop.permute.xlu0 %2215
        %2217 = vrot.lane.b32.xlu0 %v2152, 32
        %v2218 = vpop.permute.xlu0 %2217
        %2219 = vrot.lane.b32.xlu0 %v2157, 32
        %v2220 = vpop.permute.xlu0 %2219
        %2221 = vrot.lane.b32.xlu0 %v2160, 32
        %v2222 = vpop.permute.xlu0 %2221
        %2223 = vrot.lane.b32.xlu0 %v2165, 32
        %v2224 = vpop.permute.xlu0 %2223
        %2225 = vrot.lane.b32.xlu0 %v2168, 32
        %v2226 = vpop.permute.xlu0 %2225
        %2227 = vrot.lane.b32.xlu0 %v2173, 32
        %v2228 = vpop.permute.xlu0 %2227
        %2229 = vrot.lane.b32.xlu0 %v2176, 32
        %v2230 = vpop.permute.xlu0 %2229
        %2231 = vrot.lane.b32.xlu0 %v2181, 32
        %v2232 = vpop.permute.xlu0 %2231
        %2233 = vrot.lane.b32.xlu0 %v2184, 32
        %v2234 = vpop.permute.xlu0 %2233
        %v2251 = vadd.f32 %v1873, %v2204
        %v2252 = vadd.f32 %v1874, %v2206
        %v2253 = vadd.f32 %v1875, %v2208
        %v2254 = vadd.f32 %v1876, %v2210
        %v2255 = vadd.f32 %v1877, %v2212
        %v2256 = vadd.f32 %v1878, %v2214
        %v2257 = vadd.f32 %v1879, %v2216
        %v2258 = vadd.f32 %v1880, %v2218
        %v2259 = vadd.f32 %v1881, %v2220
        %v2260 = vadd.f32 %v1882, %v2222
        %v2261 = vadd.f32 %v1883, %v2224
        %v2262 = vadd.f32 %v1884, %v2226
        %v2263 = vadd.f32 %v1885, %v2228
        %v2264 = vadd.f32 %v1886, %v2230
        %v2265 = vadd.f32 %v1887, %v2232
        %v2266 = vadd.f32 %v1888, %v2234
        %v2283 = vunpack.c.l.b16 %v1464
        %v2284 = vunpack.c.l.b16 %v1465
        %v2285 = vunpack.c.l.b16 %v1466
        %v2286 = vunpack.c.l.b16 %v1467
        %v2287 = vunpack.c.l.b16 %v1468
        %v2288 = vunpack.c.l.b16 %v1469
        %v2289 = vunpack.c.l.b16 %v1470
        %v2290 = vunpack.c.l.b16 %v1471
        %v2291 = vunpack.c.l.b16 %v1472
        %v2292 = vunpack.c.l.b16 %v1473
        %v2293 = vunpack.c.l.b16 %v1474
        %v2294 = vunpack.c.l.b16 %v1475
        %v2295 = vunpack.c.l.b16 %v1476
        %v2296 = vunpack.c.l.b16 %v1477
        %v2297 = vunpack.c.l.b16 %v1478
        %v2298 = vunpack.c.l.b16 %v1479
        %v2299 = vpack.c.b16 %v2284, %v2283
        %v2300 = vpack.c.b16 %v2286, %v2285
        %v2301 = vpack.c.b16 %v2288, %v2287
        %v2302 = vpack.c.b16 %v2290, %v2289
        %v2303 = vpack.c.b16 %v2292, %v2291
        %v2304 = vpack.c.b16 %v2294, %v2293
        %v2305 = vpack.c.b16 %v2296, %v2295
        %v2306 = vpack.c.b16 %v2298, %v2297
        %2315 = vmatprep.subr.bf16.mxu0 0
        %2316 = vmatpush1.bf16.msra.mxu0 %v873
        %2317 = vmatprep.subr.bf16.mxu0 0
        %2318 = vmatpush1.bf16.msra.mxu0 %v876
        %2319 = vmatprep.subr.bf16.mxu0 0
        %2320 = vmatpush1.bf16.msra.mxu0 %v879
        %2321 = vmatprep.subr.bf16.mxu0 0
        %2322 = vmatpush1.bf16.msra.mxu0 %v882
        %2323 = vmatprep.subr.bf16.mxu0 0
        %2324 = vmatpush1.bf16.msra.mxu0 %v885
        %2325 = vmatprep.subr.bf16.mxu0 0
        %2326 = vmatpush1.bf16.msra.mxu0 %v888
        %2327 = vmatprep.subr.bf16.mxu0 0
        %2328 = vmatpush1.bf16.msra.mxu0 %v891
        %2329 = vmatprep.subr.bf16.mxu0 0
        %2330 = vmatpush1.bf16.msra.mxu0 %v894
        %2331 = vmatprep.subr.bf16.mxu0 0
        %2332 = vmatpush1.bf16.msra.mxu0 0
        %2333 = vmatprep.subr.bf16.mxu0 0
        %2334 = vmatpush1.bf16.msra.mxu0 0
        %2335 = vmatprep.subr.bf16.mxu0 0
        %2336 = vmatpush1.bf16.msra.mxu0 0
        %2337 = vmatprep.subr.bf16.mxu0 0
        %2338 = vmatpush1.bf16.msra.mxu0 0
        %2339 = vmatprep.subr.bf16.mxu0 0
        %2340 = vmatpush1.bf16.msra.mxu0 0
        %2341 = vmatprep.subr.bf16.mxu0 0
        %2342 = vmatpush1.bf16.msra.mxu0 0
        %2343 = vmatprep.subr.bf16.mxu0 0
        %2344 = vmatpush1.bf16.msra.mxu0 0
        %2345 = vmatprep.subr.bf16.mxu0 0
        %2346 = vmatpush1.bf16.msra.mxu0 0
        %2347 = vmatprep.mubr.bf16.mxu0 0
        %2348 = vmatmul.mubr.bf16.gmra.mrb[0].mxu0 %v2299
        %v2349 = vpop.f32.mrb[0].mxu0
        %v2350 = vadd.f32 0.0, %v2349
        %v2351 = vpop.f32.mrb[0].mxu0
        %v2352 = vpop.f32.mrb[0].mxu0
        %v2353 = vadd.f32 0.0, %v2352
        %v2354 = vpop.f32.mrb[0].mxu0
        %2355 = vmatprep.mubr.bf16.mxu0 0
        %2356 = vmatmul.mubr.bf16.gmra.mrb[0].mxu0 %v2300
        %v2357 = vpop.f32.mrb[0].mxu0
        %v2358 = vadd.f32 0.0, %v2357
        %v2359 = vpop.f32.mrb[0].mxu0
        %v2360 = vpop.f32.mrb[0].mxu0
        %v2361 = vadd.f32 0.0, %v2360
        %v2362 = vpop.f32.mrb[0].mxu0
        %2363 = vmatprep.mubr.bf16.mxu0 0
        %2364 = vmatmul.mubr.bf16.gmra.mrb[0].mxu0 %v2301
        %v2365 = vpop.f32.mrb[0].mxu0
        %v2366 = vadd.f32 0.0, %v2365
        %v2367 = vpop.f32.mrb[0].mxu0
        %v2368 = vpop.f32.mrb[0].mxu0
        %v2369 = vadd.f32 0.0, %v2368
        %v2370 = vpop.f32.mrb[0].mxu0
        %2371 = vmatprep.mubr.bf16.mxu0 0
        %2372 = vmatmul.mubr.bf16.gmra.mrb[0].mxu0 %v2302
        %v2373 = vpop.f32.mrb[0].mxu0
        %v2374 = vadd.f32 0.0, %v2373
        %v2375 = vpop.f32.mrb[0].mxu0
        %v2376 = vpop.f32.mrb[0].mxu0
        %v2377 = vadd.f32 0.0, %v2376
        %v2378 = vpop.f32.mrb[0].mxu0
        %2379 = vmatprep.mubr.bf16.mxu0 0
        %2380 = vmatmul.mubr.bf16.gmra.mrb[0].mxu0 %v2303
        %v2381 = vpop.f32.mrb[0].mxu0
        %v2382 = vadd.f32 0.0, %v2381
        %v2383 = vpop.f32.mrb[0].mxu0
        %v2384 = vpop.f32.mrb[0].mxu0
        %v2385 = vadd.f32 0.0, %v2384
        %v2386 = vpop.f32.mrb[0].mxu0
        %2387 = vmatprep.mubr.bf16.mxu0 0
        %2388 = vmatmul.mubr.bf16.gmra.mrb[0].mxu0 %v2304
        %v2389 = vpop.f32.mrb[0].mxu0
        %v2390 = vadd.f32 0.0, %v2389
        %v2391 = vpop.f32.mrb[0].mxu0
        %v2392 = vpop.f32.mrb[0].mxu0
        %v2393 = vadd.f32 0.0, %v2392
        %v2394 = vpop.f32.mrb[0].mxu0
        %2395 = vmatprep.mubr.bf16.mxu0 0
        %2396 = vmatmul.mubr.bf16.gmra.mrb[0].mxu0 %v2305
        %v2397 = vpop.f32.mrb[0].mxu0
        %v2398 = vadd.f32 0.0, %v2397
        %v2399 = vpop.f32.mrb[0].mxu0
        %v2400 = vpop.f32.mrb[0].mxu0
        %v2401 = vadd.f32 0.0, %v2400
        %v2402 = vpop.f32.mrb[0].mxu0
        %2403 = vmatprep.mubr.bf16.mxu0 0
        %2404 = vmatmul.mubr.bf16.gmra.mrb[0].mxu0 %v2306
        %v2405 = vpop.f32.mrb[0].mxu0
        %v2406 = vadd.f32 0.0, %v2405
        %v2407 = vpop.f32.mrb[0].mxu0
        %v2408 = vpop.f32.mrb[0].mxu0
        %v2409 = vadd.f32 0.0, %v2408
        %v2410 = vpop.f32.mrb[0].mxu0
        %2411 = vdwg.mxu0
        %v2412 = vpack.c.bf16 %v2353, %v2350
        %v2413 = vpack.c.bf16 %v2361, %v2358
        %v2414 = vpack.c.bf16 %v2369, %v2366
        %v2415 = vpack.c.bf16 %v2377, %v2374
        %v2416 = vpack.c.bf16 %v2385, %v2382
        %v2417 = vpack.c.bf16 %v2393, %v2390
        %v2418 = vpack.c.bf16 %v2401, %v2398
        %v2419 = vpack.c.bf16 %v2409, %v2406
        %s2420 = scalar_lea.vmem %s9, 72
        %v2421 = vld [vmem:[%s2420] sm:$0xf]
        %v2422 = vld [vmem:[%s2420 + $0x4] sm:$0xf]
        %v2423 = vld [vmem:[%s2420 + $0x8] sm:$0xf]
        %v2424 = vld [vmem:[%s2420 + $0xc] sm:$0xf]
        %v2425 = vld [vmem:[%s2420 + $0x10] sm:$0xf]
        %v2426 = vld [vmem:[%s2420 + $0x14] sm:$0xf]
        %v2427 = vld [vmem:[%s2420 + $0x18] sm:$0xf]
        %v2428 = vld [vmem:[%s2420 + $0x1c] sm:$0xf]
        %v2429 = vld [vmem:[%s2420 + $0x20] sm:$0x3]
        %v2439 = vunpack.c.l.b16 %v2421
        %v2440 = vunpack.c.l.b16 %v2422
        %v2441 = vunpack.c.l.b16 %v2423
        %v2442 = vunpack.c.l.b16 %v2424
        %v2443 = vunpack.c.l.b16 %v2425
        %v2444 = vunpack.c.l.b16 %v2426
        %v2445 = vunpack.c.l.b16 %v2427
        %v2446 = vunpack.c.l.b16 %v2428
        %v2447 = vunpack.c.l.b16 %v2429
        %v2448 = vpack.c.b16 %v2440, %v2439
        %v2449 = vpack.c.b16 %v2442, %v2441
        %v2450 = vpack.c.b16 %v2444, %v2443
        %v2451 = vpack.c.b16 %v2446, %v2445
        %v2452 = vpack.c.b16 %v2447, %v2447
        %v2458 = vsel %vm932, %v2412, 0
        %v2461 = vsel %vm932, %v2413, 0
        %v2464 = vsel %vm932, %v2414, 0
        %v2467 = vsel %vm932, %v2415, 0
        %v2470 = vsel %vm932, %v2416, 0
        %v2473 = vsel %vm932, %v2417, 0
        %v2476 = vsel %vm932, %v2418, 0
        %v2479 = vsel %vm932, %v2419, 0
        %v2482 = vsel %vm949, %v2452, 0
        %2484 = vmatprep.subr.bf16.mxu0 0
        %2485 = vmatpush1.bf16.msra.mxu0 %v2448
        %2486 = vmatprep.subr.bf16.mxu0 0
        %2487 = vmatpush1.bf16.msra.mxu0 %v2449
        %2488 = vmatprep.subr.bf16.mxu0 0
        %2489 = vmatpush1.bf16.msra.mxu0 %v2450
        %2490 = vmatprep.subr.bf16.mxu0 0
        %2491 = vmatpush1.bf16.msra.mxu0 %v2451
        %2492 = vmatprep.subr.bf16.mxu0 0
        %2493 = vmatpush1.bf16.msra.mxu0 %v2482
        %2494 = vmatprep.subr.bf16.mxu0 0
        %2495 = vmatpush1.bf16.msra.mxu0 0
        %2496 = vmatprep.subr.bf16.mxu0 0
        %2497 = vmatpush1.bf16.msra.mxu0 0
        %2498 = vmatprep.subr.bf16.mxu0 0
        %2499 = vmatpush1.bf16.msra.mxu0 0
        %2500 = vmatprep.subr.bf16.mxu0 0
        %2501 = vmatpush1.bf16.msra.mxu0 0
        %2502 = vmatprep.subr.bf16.mxu0 0
        %2503 = vmatpush1.bf16.msra.mxu0 0
        %2504 = vmatprep.subr.bf16.mxu0 0
        %2505 = vmatpush1.bf16.msra.mxu0 0
        %2506 = vmatprep.subr.bf16.mxu0 0
        %2507 = vmatpush1.bf16.msra.mxu0 0
        %2508 = vmatprep.subr.bf16.mxu0 0
        %2509 = vmatpush1.bf16.msra.mxu0 0
        %2510 = vmatprep.subr.bf16.mxu0 0
        %2511 = vmatpush1.bf16.msra.mxu0 0
        %2512 = vmatprep.subr.bf16.mxu0 0
        %2513 = vmatpush1.bf16.msra.mxu0 0
        %2514 = vmatprep.subr.bf16.mxu0 0
        %2515 = vmatpush1.bf16.msra.mxu0 0
        %2516 = vmatprep.mubr.bf16.mxu0 0
        %2517 = vmatmul.mubr.bf16.gmra.mrb[0].mxu0 %v2458
        %v2518 = vpop.f32.mrb[0].mxu0
        %v2519 = vadd.f32 0.0, %v2518
        %v2520 = vpop.f32.mrb[0].mxu0
        %v2521 = vpop.f32.mrb[0].mxu0
        %v2522 = vadd.f32 0.0, %v2521
        %v2523 = vpop.f32.mrb[0].mxu0
        %2524 = vmatprep.mubr.bf16.mxu0 0
        %2525 = vmatmul.mubr.bf16.gmra.mrb[0].mxu0 %v2461
        %v2526 = vpop.f32.mrb[0].mxu0
        %v2527 = vadd.f32 0.0, %v2526
        %v2528 = vpop.f32.mrb[0].mxu0
        %v2529 = vpop.f32.mrb[0].mxu0
        %v2530 = vadd.f32 0.0, %v2529
        %v2531 = vpop.f32.mrb[0].mxu0
        %2532 = vmatprep.mubr.bf16.mxu0 0
        %2533 = vmatmul.mubr.bf16.gmra.mrb[0].mxu0 %v2464
        %v2534 = vpop.f32.mrb[0].mxu0
        %v2535 = vadd.f32 0.0, %v2534
        %v2536 = vpop.f32.mrb[0].mxu0
        %v2537 = vpop.f32.mrb[0].mxu0
        %v2538 = vadd.f32 0.0, %v2537
        %v2539 = vpop.f32.mrb[0].mxu0
        %2540 = vmatprep.mubr.bf16.mxu0 0
        %2541 = vmatmul.mubr.bf16.gmra.mrb[0].mxu0 %v2467
        %v2542 = vpop.f32.mrb[0].mxu0
        %v2543 = vadd.f32 0.0, %v2542
        %v2544 = vpop.f32.mrb[0].mxu0
        %v2545 = vpop.f32.mrb[0].mxu0
        %v2546 = vadd.f32 0.0, %v2545
        %v2547 = vpop.f32.mrb[0].mxu0
        %2548 = vmatprep.mubr.bf16.mxu0 0
        %2549 = vmatmul.mubr.bf16.gmra.mrb[0].mxu0 %v2470
        %v2550 = vpop.f32.mrb[0].mxu0
        %v2551 = vadd.f32 0.0, %v2550
        %v2552 = vpop.f32.mrb[0].mxu0
        %v2553 = vpop.f32.mrb[0].mxu0
        %v2554 = vadd.f32 0.0, %v2553
        %v2555 = vpop.f32.mrb[0].mxu0
        %2556 = vmatprep.mubr.bf16.mxu0 0
        %2557 = vmatmul.mubr.bf16.gmra.mrb[0].mxu0 %v2473
        %v2558 = vpop.f32.mrb[0].mxu0
        %v2559 = vadd.f32 0.0, %v2558
        %v2560 = vpop.f32.mrb[0].mxu0
        %v2561 = vpop.f32.mrb[0].mxu0
        %v2562 = vadd.f32 0.0, %v2561
        %v2563 = vpop.f32.mrb[0].mxu0
        %2564 = vmatprep.mubr.bf16.mxu0 0
        %2565 = vmatmul.mubr.bf16.gmra.mrb[0].mxu0 %v2476
        %v2566 = vpop.f32.mrb[0].mxu0
        %v2567 = vadd.f32 0.0, %v2566
        %v2568 = vpop.f32.mrb[0].mxu0
        %v2569 = vpop.f32.mrb[0].mxu0
        %v2570 = vadd.f32 0.0, %v2569
        %v2571 = vpop.f32.mrb[0].mxu0
        %2572 = vmatprep.mubr.bf16.mxu0 0
        %2573 = vmatmul.mubr.bf16.gmra.mrb[0].mxu0 %v2479
        %v2574 = vpop.f32.mrb[0].mxu0
        %v2575 = vadd.f32 0.0, %v2574
        %v2576 = vpop.f32.mrb[0].mxu0
        %v2577 = vpop.f32.mrb[0].mxu0
        %v2578 = vadd.f32 0.0, %v2577
        %v2579 = vpop.f32.mrb[0].mxu0
        %2580 = vdwg.mxu0
        %2597 = vrot.lane.b32.xlu0 %v2519, 32
        %v2598 = vpop.permute.xlu0 %2597
        %2599 = vrot.lane.b32.xlu0 %v2522, 32
        %v2600 = vpop.permute.xlu0 %2599
        %2601 = vrot.lane.b32.xlu0 %v2527, 32
        %v2602 = vpop.permute.xlu0 %2601
        %2603 = vrot.lane.b32.xlu0 %v2530, 32
        %v2604 = vpop.permute.xlu0 %2603
        %2605 = vrot.lane.b32.xlu0 %v2535, 32
        %v2606 = vpop.permute.xlu0 %2605
        %2607 = vrot.lane.b32.xlu0 %v2538, 32
        %v2608 = vpop.permute.xlu0 %2607
        %2609 = vrot.lane.b32.xlu0 %v2543, 32
        %v2610 = vpop.permute.xlu0 %2609
        %2611 = vrot.lane.b32.xlu0 %v2546, 32
        %v2612 = vpop.permute.xlu0 %2611
        %2613 = vrot.lane.b32.xlu0 %v2551, 32
        %v2614 = vpop.permute.xlu0 %2613
        %2615 = vrot.lane.b32.xlu0 %v2554, 32
        %v2616 = vpop.permute.xlu0 %2615
        %2617 = vrot.lane.b32.xlu0 %v2559, 32
        %v2618 = vpop.permute.xlu0 %2617
        %2619 = vrot.lane.b32.xlu0 %v2562, 32
        %v2620 = vpop.permute.xlu0 %2619
        %2621 = vrot.lane.b32.xlu0 %v2567, 32
        %v2622 = vpop.permute.xlu0 %2621
        %2623 = vrot.lane.b32.xlu0 %v2570, 32
        %v2624 = vpop.permute.xlu0 %2623
        %2625 = vrot.lane.b32.xlu0 %v2575, 32
        %v2626 = vpop.permute.xlu0 %2625
        %2627 = vrot.lane.b32.xlu0 %v2578, 32
        %v2628 = vpop.permute.xlu0 %2627
        %v2645 = vadd.f32 %v2251, %v2598
        %v2646 = vadd.f32 %v2252, %v2600
        %v2647 = vadd.f32 %v2253, %v2602
        %v2648 = vadd.f32 %v2254, %v2604
        %v2649 = vadd.f32 %v2255, %v2606
        %v2650 = vadd.f32 %v2256, %v2608
        %v2651 = vadd.f32 %v2257, %v2610
        %v2652 = vadd.f32 %v2258, %v2612
        %v2653 = vadd.f32 %v2259, %v2614
        %v2654 = vadd.f32 %v2260, %v2616
        %v2655 = vadd.f32 %v2261, %v2618
        %v2656 = vadd.f32 %v2262, %v2620
        %v2657 = vadd.f32 %v2263, %v2622
        %v2658 = vadd.f32 %v2264, %v2624
        %v2659 = vadd.f32 %v2265, %v2626
        %v2660 = vadd.f32 %v2266, %v2628
        %2661 = vmatprep.subr.bf16.mxu0 0
        %2662 = vmatpush1.bf16.msra.mxu0 %v2412
        %2663 = vmatprep.subr.bf16.mxu0 0
        %2664 = vmatpush1.bf16.msra.mxu0 %v2413
        %2665 = vmatprep.subr.bf16.mxu0 0
        %2666 = vmatpush1.bf16.msra.mxu0 %v2414
        %2667 = vmatprep.subr.bf16.mxu0 0
        %2668 = vmatpush1.bf16.msra.mxu0 %v2415
        %2669 = vmatprep.subr.bf16.mxu0 0
        %2670 = vmatpush1.bf16.msra.mxu0 %v2416
        %2671 = vmatprep.subr.bf16.mxu0 0
        %2672 = vmatpush1.bf16.msra.mxu0 %v2417
        %2673 = vmatprep.subr.bf16.mxu0 0
        %2674 = vmatpush1.bf16.msra.mxu0 %v2418
        %2675 = vmatprep.subr.bf16.mxu0 0
        %2676 = vmatpush1.bf16.msra.mxu0 %v2419
        %2677 = vmatprep.subr.bf16.mxu0 0
        %2678 = vmatpush1.bf16.msra.mxu0 0
        %2679 = vmatprep.subr.bf16.mxu0 0
        %2680 = vmatpush1.bf16.msra.mxu0 0
        %2681 = vmatprep.subr.bf16.mxu0 0
        %2682 = vmatpush1.bf16.msra.mxu0 0
        %2683 = vmatprep.subr.bf16.mxu0 0
        %2684 = vmatpush1.bf16.msra.mxu0 0
        %2685 = vmatprep.subr.bf16.mxu0 0
        %2686 = vmatpush1.bf16.msra.mxu0 0
        %2687 = vmatprep.subr.bf16.mxu0 0
        %2688 = vmatpush1.bf16.msra.mxu0 0
        %2689 = vmatprep.subr.bf16.mxu0 0
        %2690 = vmatpush1.bf16.msra.mxu0 0
        %2691 = vmatprep.subr.bf16.mxu0 0
        %2692 = vmatpush1.bf16.msra.mxu0 0
        %2693 = vmatprep.mubr.bf16.mxu0 0
        %2694 = vmatmul.mubr.bf16.gmra.mrb[0].mxu0 %v2299
        %v2695 = vpop.f32.mrb[0].mxu0
        %v2696 = vadd.f32 0.0, %v2695
        %v2697 = vpop.f32.mrb[0].mxu0
        %v2698 = vpop.f32.mrb[0].mxu0
        %v2699 = vadd.f32 0.0, %v2698
        %v2700 = vpop.f32.mrb[0].mxu0
        %2701 = vmatprep.mubr.bf16.mxu0 0
        %2702 = vmatmul.mubr.bf16.gmra.mrb[0].mxu0 %v2300
        %v2703 = vpop.f32.mrb[0].mxu0
        %v2704 = vadd.f32 0.0, %v2703
        %v2705 = vpop.f32.mrb[0].mxu0
        %v2706 = vpop.f32.mrb[0].mxu0
        %v2707 = vadd.f32 0.0, %v2706
        %v2708 = vpop.f32.mrb[0].mxu0
        %2709 = vmatprep.mubr.bf16.mxu0 0
        %2710 = vmatmul.mubr.bf16.gmra.mrb[0].mxu0 %v2301
        %v2711 = vpop.f32.mrb[0].mxu0
        %v2712 = vadd.f32 0.0, %v2711
        %v2713 = vpop.f32.mrb[0].mxu0
        %v2714 = vpop.f32.mrb[0].mxu0
        %v2715 = vadd.f32 0.0, %v2714
        %v2716 = vpop.f32.mrb[0].mxu0
        %2717 = vmatprep.mubr.bf16.mxu0 0
        %2718 = vmatmul.mubr.bf16.gmra.mrb[0].mxu0 %v2302
        %v2719 = vpop.f32.mrb[0].mxu0
        %v2720 = vadd.f32 0.0, %v2719
        %v2721 = vpop.f32.mrb[0].mxu0
        %v2722 = vpop.f32.mrb[0].mxu0
        %v2723 = vadd.f32 0.0, %v2722
        %v2724 = vpop.f32.mrb[0].mxu0
        %2725 = vmatprep.mubr.bf16.mxu0 0
        %2726 = vmatmul.mubr.bf16.gmra.mrb[0].mxu0 %v2303
        %v2727 = vpop.f32.mrb[0].mxu0
        %v2728 = vadd.f32 0.0, %v2727
        %v2729 = vpop.f32.mrb[0].mxu0
        %v2730 = vpop.f32.mrb[0].mxu0
        %v2731 = vadd.f32 0.0, %v2730
        %v2732 = vpop.f32.mrb[0].mxu0
        %2733 = vmatprep.mubr.bf16.mxu0 0
        %2734 = vmatmul.mubr.bf16.gmra.mrb[0].mxu0 %v2304
        %v2735 = vpop.f32.mrb[0].mxu0
        %v2736 = vadd.f32 0.0, %v2735
        %v2737 = vpop.f32.mrb[0].mxu0
        %v2738 = vpop.f32.mrb[0].mxu0
        %v2739 = vadd.f32 0.0, %v2738
        %v2740 = vpop.f32.mrb[0].mxu0
        %2741 = vmatprep.mubr.bf16.mxu0 0
        %2742 = vmatmul.mubr.bf16.gmra.mrb[0].mxu0 %v2305
        %v2743 = vpop.f32.mrb[0].mxu0
        %v2744 = vadd.f32 0.0, %v2743
        %v2745 = vpop.f32.mrb[0].mxu0
        %v2746 = vpop.f32.mrb[0].mxu0
        %v2747 = vadd.f32 0.0, %v2746
        %v2748 = vpop.f32.mrb[0].mxu0
        %2749 = vmatprep.mubr.bf16.mxu0 0
        %2750 = vmatmul.mubr.bf16.gmra.mrb[0].mxu0 %v2306
        %v2751 = vpop.f32.mrb[0].mxu0
        %v2752 = vadd.f32 0.0, %v2751
        %v2753 = vpop.f32.mrb[0].mxu0
        %v2754 = vpop.f32.mrb[0].mxu0
        %v2755 = vadd.f32 0.0, %v2754
        %v2756 = vpop.f32.mrb[0].mxu0
        %2757 = vdwg.mxu0
        %v2758 = vmul.f32 %v2696, 2.0
        %v2759 = vmul.f32 %v2699, 2.0
        %v2760 = vmul.f32 %v2704, 2.0
        %v2761 = vmul.f32 %v2707, 2.0
        %v2762 = vmul.f32 %v2712, 2.0
        %v2763 = vmul.f32 %v2715, 2.0
        %v2764 = vmul.f32 %v2720, 2.0
        %v2765 = vmul.f32 %v2723, 2.0
        %v2766 = vmul.f32 %v2728, 2.0
        %v2767 = vmul.f32 %v2731, 2.0
        %v2768 = vmul.f32 %v2736, 2.0
        %v2769 = vmul.f32 %v2739, 2.0
        %v2770 = vmul.f32 %v2744, 2.0
        %v2771 = vmul.f32 %v2747, 2.0
        %v2772 = vmul.f32 %v2752, 2.0
        %v2773 = vmul.f32 %v2755, 2.0
        %v2774 = vsub.f32 %v2758, %v1480
        %v2775 = vsub.f32 %v2759, %v1481
        %v2776 = vsub.f32 %v2760, %v1482
        %v2777 = vsub.f32 %v2761, %v1483
        %v2778 = vsub.f32 %v2762, %v1484
        %v2779 = vsub.f32 %v2763, %v1485
        %v2780 = vsub.f32 %v2764, %v1486
        %v2781 = vsub.f32 %v2765, %v1487
        %v2782 = vsub.f32 %v2766, %v1488
        %v2783 = vsub.f32 %v2767, %v1489
        %v2784 = vsub.f32 %v2768, %v1490
        %v2785 = vsub.f32 %v2769, %v1491
        %v2786 = vsub.f32 %v2770, %v1492
        %v2787 = vsub.f32 %v2771, %v1493
        %v2788 = vsub.f32 %v2772, %v1494
        %v2789 = vsub.f32 %v2773, %v1495
        %v2790 = vpack.c.bf16 %v2775, %v2774
        %v2791 = vpack.c.bf16 %v2777, %v2776
        %v2792 = vpack.c.bf16 %v2779, %v2778
        %v2793 = vpack.c.bf16 %v2781, %v2780
        %v2794 = vpack.c.bf16 %v2783, %v2782
        %v2795 = vpack.c.bf16 %v2785, %v2784
        %v2796 = vpack.c.bf16 %v2787, %v2786
        %v2797 = vpack.c.bf16 %v2789, %v2788
        %s2798 = scalar_lea.vmem %s9, 108
        %v2799 = vld [vmem:[%s2798] sm:$0xf]
        %v2800 = vld [vmem:[%s2798 + $0x4] sm:$0xf]
        %v2801 = vld [vmem:[%s2798 + $0x8] sm:$0xf]
        %v2802 = vld [vmem:[%s2798 + $0xc] sm:$0xf]
        %v2803 = vld [vmem:[%s2798 + $0x10] sm:$0xf]
        %v2804 = vld [vmem:[%s2798 + $0x14] sm:$0xf]
        %v2805 = vld [vmem:[%s2798 + $0x18] sm:$0xf]
        %v2806 = vld [vmem:[%s2798 + $0x1c] sm:$0xf]
        %v2807 = vld [vmem:[%s2798 + $0x20] sm:$0x3]
        %v2817 = vunpack.c.l.b16 %v2799
        %v2818 = vunpack.c.l.b16 %v2800
        %v2819 = vunpack.c.l.b16 %v2801
        %v2820 = vunpack.c.l.b16 %v2802
        %v2821 = vunpack.c.l.b16 %v2803
        %v2822 = vunpack.c.l.b16 %v2804
        %v2823 = vunpack.c.l.b16 %v2805
        %v2824 = vunpack.c.l.b16 %v2806
        %v2825 = vunpack.c.l.b16 %v2807
        %v2826 = vpack.c.b16 %v2818, %v2817
        %v2827 = vpack.c.b16 %v2820, %v2819
        %v2828 = vpack.c.b16 %v2822, %v2821
        %v2829 = vpack.c.b16 %v2824, %v2823
        %v2830 = vpack.c.b16 %v2825, %v2825
        %v2836 = vsel %vm932, %v2790, 0
        %v2839 = vsel %vm932, %v2791, 0
        %v2842 = vsel %vm932, %v2792, 0
        %v2845 = vsel %vm932, %v2793, 0
        %v2848 = vsel %vm932, %v2794, 0
        %v2851 = vsel %vm932, %v2795, 0
        %v2854 = vsel %vm932, %v2796, 0
        %v2857 = vsel %vm932, %v2797, 0
        %v2860 = vsel %vm949, %v2830, 0
        %2862 = vmatprep.subr.bf16.mxu0 0
        %2863 = vmatpush1.bf16.msra.mxu0 %v2826
        %2864 = vmatprep.subr.bf16.mxu0 0
        %2865 = vmatpush1.bf16.msra.mxu0 %v2827
        %2866 = vmatprep.subr.bf16.mxu0 0
        %2867 = vmatpush1.bf16.msra.mxu0 %v2828
        %2868 = vmatprep.subr.bf16.mxu0 0
        %2869 = vmatpush1.bf16.msra.mxu0 %v2829
        %2870 = vmatprep.subr.bf16.mxu0 0
        %2871 = vmatpush1.bf16.msra.mxu0 %v2860
        %2872 = vmatprep.subr.bf16.mxu0 0
        %2873 = vmatpush1.bf16.msra.mxu0 0
        %2874 = vmatprep.subr.bf16.mxu0 0
        %2875 = vmatpush1.bf16.msra.mxu0 0
        %2876 = vmatprep.subr.bf16.mxu0 0
        %2877 = vmatpush1.bf16.msra.mxu0 0
        %2878 = vmatprep.subr.bf16.mxu0 0
        %2879 = vmatpush1.bf16.msra.mxu0 0
        %2880 = vmatprep.subr.bf16.mxu0 0
        %2881 = vmatpush1.bf16.msra.mxu0 0
        %2882 = vmatprep.subr.bf16.mxu0 0
        %2883 = vmatpush1.bf16.msra.mxu0 0
        %2884 = vmatprep.subr.bf16.mxu0 0
        %2885 = vmatpush1.bf16.msra.mxu0 0
        %2886 = vmatprep.subr.bf16.mxu0 0
        %2887 = vmatpush1.bf16.msra.mxu0 0
        %2888 = vmatprep.subr.bf16.mxu0 0
        %2889 = vmatpush1.bf16.msra.mxu0 0
        %2890 = vmatprep.subr.bf16.mxu0 0
        %2891 = vmatpush1.bf16.msra.mxu0 0
        %2892 = vmatprep.subr.bf16.mxu0 0
        %2893 = vmatpush1.bf16.msra.mxu0 0
        %2894 = vmatprep.mubr.bf16.mxu0 0
        %2895 = vmatmul.mubr.bf16.gmra.mrb[0].mxu0 %v2836
        %v2896 = vpop.f32.mrb[0].mxu0
        %v2897 = vadd.f32 0.0, %v2896
        %v2898 = vpop.f32.mrb[0].mxu0
        %v2899 = vpop.f32.mrb[0].mxu0
        %v2900 = vadd.f32 0.0, %v2899
        %v2901 = vpop.f32.mrb[0].mxu0
        %2902 = vmatprep.mubr.bf16.mxu0 0
        %2903 = vmatmul.mubr.bf16.gmra.mrb[0].mxu0 %v2839
        %v2904 = vpop.f32.mrb[0].mxu0
        %v2905 = vadd.f32 0.0, %v2904
        %v2906 = vpop.f32.mrb[0].mxu0
        %v2907 = vpop.f32.mrb[0].mxu0
        %v2908 = vadd.f32 0.0, %v2907
        %v2909 = vpop.f32.mrb[0].mxu0
        %2910 = vmatprep.mubr.bf16.mxu0 0
        %2911 = vmatmul.mubr.bf16.gmra.mrb[0].mxu0 %v2842
        %v2912 = vpop.f32.mrb[0].mxu0
        %v2913 = vadd.f32 0.0, %v2912
        %v2914 = vpop.f32.mrb[0].mxu0
        %v2915 = vpop.f32.mrb[0].mxu0
        %v2916 = vadd.f32 0.0, %v2915
        %v2917 = vpop.f32.mrb[0].mxu0
        %2918 = vmatprep.mubr.bf16.mxu0 0
        %2919 = vmatmul.mubr.bf16.gmra.mrb[0].mxu0 %v2845
        %v2920 = vpop.f32.mrb[0].mxu0
        %v2921 = vadd.f32 0.0, %v2920
        %v2922 = vpop.f32.mrb[0].mxu0
        %v2923 = vpop.f32.mrb[0].mxu0
        %v2924 = vadd.f32 0.0, %v2923
        %v2925 = vpop.f32.mrb[0].mxu0
        %2926 = vmatprep.mubr.bf16.mxu0 0
        %2927 = vmatmul.mubr.bf16.gmra.mrb[0].mxu0 %v2848
        %v2928 = vpop.f32.mrb[0].mxu0
        %v2929 = vadd.f32 0.0, %v2928
        %v2930 = vpop.f32.mrb[0].mxu0
        %v2931 = vpop.f32.mrb[0].mxu0
        %v2932 = vadd.f32 0.0, %v2931
        %v2933 = vpop.f32.mrb[0].mxu0
        %2934 = vmatprep.mubr.bf16.mxu0 0
        %2935 = vmatmul.mubr.bf16.gmra.mrb[0].mxu0 %v2851
        %v2936 = vpop.f32.mrb[0].mxu0
        %v2937 = vadd.f32 0.0, %v2936
        %v2938 = vpop.f32.mrb[0].mxu0
        %v2939 = vpop.f32.mrb[0].mxu0
        %v2940 = vadd.f32 0.0, %v2939
        %v2941 = vpop.f32.mrb[0].mxu0
        %2942 = vmatprep.mubr.bf16.mxu0 0
        %2943 = vmatmul.mubr.bf16.gmra.mrb[0].mxu0 %v2854
        %v2944 = vpop.f32.mrb[0].mxu0
        %v2945 = vadd.f32 0.0, %v2944
        %v2946 = vpop.f32.mrb[0].mxu0
        %v2947 = vpop.f32.mrb[0].mxu0
        %v2948 = vadd.f32 0.0, %v2947
        %v2949 = vpop.f32.mrb[0].mxu0
        %2950 = vmatprep.mubr.bf16.mxu0 0
        %2951 = vmatmul.mubr.bf16.gmra.mrb[0].mxu0 %v2857
        %v2952 = vpop.f32.mrb[0].mxu0
        %v2953 = vadd.f32 0.0, %v2952
        %v2954 = vpop.f32.mrb[0].mxu0
        %v2955 = vpop.f32.mrb[0].mxu0
        %v2956 = vadd.f32 0.0, %v2955
        %v2957 = vpop.f32.mrb[0].mxu0
        %2958 = vdwg.mxu0
        %2975 = vrot.lane.b32.xlu0 %v2897, 32
        %v2976 = vpop.permute.xlu0 %2975
        %2977 = vrot.lane.b32.xlu0 %v2900, 32
        %v2978 = vpop.permute.xlu0 %2977
        %2979 = vrot.lane.b32.xlu0 %v2905, 32
        %v2980 = vpop.permute.xlu0 %2979
        %2981 = vrot.lane.b32.xlu0 %v2908, 32
        %v2982 = vpop.permute.xlu0 %2981
        %2983 = vrot.lane.b32.xlu0 %v2913, 32
        %v2984 = vpop.permute.xlu0 %2983
        %2985 = vrot.lane.b32.xlu0 %v2916, 32
        %v2986 = vpop.permute.xlu0 %2985
        %2987 = vrot.lane.b32.xlu0 %v2921, 32
        %v2988 = vpop.permute.xlu0 %2987
        %2989 = vrot.lane.b32.xlu0 %v2924, 32
        %v2990 = vpop.permute.xlu0 %2989
        %2991 = vrot.lane.b32.xlu0 %v2929, 32
        %v2992 = vpop.permute.xlu0 %2991
        %2993 = vrot.lane.b32.xlu0 %v2932, 32
        %v2994 = vpop.permute.xlu0 %2993
        %2995 = vrot.lane.b32.xlu0 %v2937, 32
        %v2996 = vpop.permute.xlu0 %2995
        %2997 = vrot.lane.b32.xlu0 %v2940, 32
        %v2998 = vpop.permute.xlu0 %2997
        %2999 = vrot.lane.b32.xlu0 %v2945, 32
        %v3000 = vpop.permute.xlu0 %2999
        %3001 = vrot.lane.b32.xlu0 %v2948, 32
        %v3002 = vpop.permute.xlu0 %3001
        %3003 = vrot.lane.b32.xlu0 %v2953, 32
        %v3004 = vpop.permute.xlu0 %3003
        %3005 = vrot.lane.b32.xlu0 %v2956, 32
        %v3006 = vpop.permute.xlu0 %3005
        %v3023 = vadd.f32 %v2645, %v2976
        %v3024 = vadd.f32 %v2646, %v2978
        %v3025 = vadd.f32 %v2647, %v2980
        %v3026 = vadd.f32 %v2648, %v2982
        %v3027 = vadd.f32 %v2649, %v2984
        %v3028 = vadd.f32 %v2650, %v2986
        %v3029 = vadd.f32 %v2651, %v2988
        %v3030 = vadd.f32 %v2652, %v2990
        %v3031 = vadd.f32 %v2653, %v2992
        %v3032 = vadd.f32 %v2654, %v2994
        %v3033 = vadd.f32 %v2655, %v2996
        %v3034 = vadd.f32 %v2656, %v2998
        %v3035 = vadd.f32 %v2657, %v3000
        %v3036 = vadd.f32 %v2658, %v3002
        %v3037 = vadd.f32 %v2659, %v3004
        %v3038 = vadd.f32 %v2660, %v3006
        %v3039 = vld [vmem:[%s10] sm:$0x1]
        %v3041 = vlaneseq
        %v3042 = vshrl.u32 %v3041, 7
        %v3043 = vsub.s32 0, %v3042
        %v3044 = vrot.slane %v3039, %v3043
        %3045 = vrot.lane.b32.xlu0 %v3044, 32
        %v3046 = vpop.permute.xlu0 %3045
        %v3048 = vadd.f32 %v3023, %v3046
        %v3049 = vadd.f32 %v3024, %v3046
        %v3050 = vadd.f32 %v3025, %v3046
        %v3051 = vadd.f32 %v3026, %v3046
        %v3052 = vadd.f32 %v3027, %v3046
        %v3053 = vadd.f32 %v3028, %v3046
        %v3054 = vadd.f32 %v3029, %v3046
        %v3055 = vadd.f32 %v3030, %v3046
        %v3056 = vadd.f32 %v3031, %v3046
        %v3057 = vadd.f32 %v3032, %v3046
        %v3058 = vadd.f32 %v3033, %v3046
        %v3059 = vadd.f32 %v3034, %v3046
        %v3060 = vadd.f32 %v3035, %v3046
        %v3061 = vadd.f32 %v3036, %v3046
        %v3062 = vadd.f32 %v3037, %v3046
        %v3063 = vadd.f32 %v3038, %v3046
        %v3064 = vxor.u32 %v3048, 2147483648
        %v3065 = vxor.u32 %v3049, 2147483648
        %v3066 = vxor.u32 %v3050, 2147483648
        %v3067 = vxor.u32 %v3051, 2147483648
        %v3068 = vxor.u32 %v3052, 2147483648
        %v3069 = vxor.u32 %v3053, 2147483648
        %v3070 = vxor.u32 %v3054, 2147483648
        %v3071 = vxor.u32 %v3055, 2147483648
        %v3072 = vxor.u32 %v3056, 2147483648
        %v3073 = vxor.u32 %v3057, 2147483648
        %v3074 = vxor.u32 %v3058, 2147483648
        %v3075 = vxor.u32 %v3059, 2147483648
        %v3076 = vxor.u32 %v3060, 2147483648
        %v3077 = vxor.u32 %v3061, 2147483648
        %v3078 = vxor.u32 %v3062, 2147483648
        %v3079 = vxor.u32 %v3063, 2147483648
        %v3080 = vmul.f32 %v3064, 1.442695
        %v3081 = vpow.pop %v3080
        %v3082 = vmul.f32 %v3065, 1.442695
        %v3083 = vpow.pop %v3082
        %v3084 = vmul.f32 %v3066, 1.442695
        %v3085 = vpow.pop %v3084
        %v3086 = vmul.f32 %v3067, 1.442695
        %v3087 = vpow.pop %v3086
        %v3088 = vmul.f32 %v3068, 1.442695
        %v3089 = vpow.pop %v3088
        %v3090 = vmul.f32 %v3069, 1.442695
        %v3091 = vpow.pop %v3090
        %v3092 = vmul.f32 %v3070, 1.442695
        %v3093 = vpow.pop %v3092
        %v3094 = vmul.f32 %v3071, 1.442695
        %v3095 = vpow.pop %v3094
        %v3096 = vmul.f32 %v3072, 1.442695
        %v3097 = vpow.pop %v3096
        %v3098 = vmul.f32 %v3073, 1.442695
        %v3099 = vpow.pop %v3098
        %v3100 = vmul.f32 %v3074, 1.442695
        %v3101 = vpow.pop %v3100
        %v3102 = vmul.f32 %v3075, 1.442695
        %v3103 = vpow.pop %v3102
        %v3104 = vmul.f32 %v3076, 1.442695
        %v3105 = vpow.pop %v3104
        %v3106 = vmul.f32 %v3077, 1.442695
        %v3107 = vpow.pop %v3106
        %v3108 = vmul.f32 %v3078, 1.442695
        %v3109 = vpow.pop %v3108
        %v3110 = vmul.f32 %v3079, 1.442695
        %v3111 = vpow.pop %v3110
        %v3112 = vadd.f32 %v3081, 1.0
        %v3113 = vadd.f32 %v3083, 1.0
        %v3114 = vadd.f32 %v3085, 1.0
        %v3115 = vadd.f32 %v3087, 1.0
        %v3116 = vadd.f32 %v3089, 1.0
        %v3117 = vadd.f32 %v3091, 1.0
        %v3118 = vadd.f32 %v3093, 1.0
        %v3119 = vadd.f32 %v3095, 1.0
        %v3120 = vadd.f32 %v3097, 1.0
        %v3121 = vadd.f32 %v3099, 1.0
        %v3122 = vadd.f32 %v3101, 1.0
        %v3123 = vadd.f32 %v3103, 1.0
        %v3124 = vadd.f32 %v3105, 1.0
        %v3125 = vadd.f32 %v3107, 1.0
        %v3126 = vadd.f32 %v3109, 1.0
        %v3127 = vadd.f32 %v3111, 1.0
        %v3128 = vrcp.pop %v3112
        %v3129 = vmul.f32 1.0, %v3128
        %v3130 = vrcp.pop %v3113
        %v3131 = vmul.f32 1.0, %v3130
        %v3132 = vrcp.pop %v3114
        %v3133 = vmul.f32 1.0, %v3132
        %v3134 = vrcp.pop %v3115
        %v3135 = vmul.f32 1.0, %v3134
        %v3136 = vrcp.pop %v3116
        %v3137 = vmul.f32 1.0, %v3136
        %v3138 = vrcp.pop %v3117
        %v3139 = vmul.f32 1.0, %v3138
        %v3140 = vrcp.pop %v3118
        %v3141 = vmul.f32 1.0, %v3140
        %v3142 = vrcp.pop %v3119
        %v3143 = vmul.f32 1.0, %v3142
        %v3144 = vrcp.pop %v3120
        %v3145 = vmul.f32 1.0, %v3144
        %v3146 = vrcp.pop %v3121
        %v3147 = vmul.f32 1.0, %v3146
        %v3148 = vrcp.pop %v3122
        %v3149 = vmul.f32 1.0, %v3148
        %v3150 = vrcp.pop %v3123
        %v3151 = vmul.f32 1.0, %v3150
        %v3152 = vrcp.pop %v3124
        %v3153 = vmul.f32 1.0, %v3152
        %v3154 = vrcp.pop %v3125
        %v3155 = vmul.f32 1.0, %v3154
        %v3156 = vrcp.pop %v3126
        %v3157 = vmul.f32 1.0, %v3156
        %v3158 = vrcp.pop %v3127
        %v3159 = vmul.f32 1.0, %v3158
        %3176 = vrot.lane.b32.xlu0 %v1352, 32
        %v3177 = vpop.permute.xlu0 %3176
        %3178 = vrot.lane.b32.xlu0 %v1353, 32
        %v3179 = vpop.permute.xlu0 %3178
        %3180 = vrot.lane.b32.xlu0 %v1354, 32
        %v3181 = vpop.permute.xlu0 %3180
        %3182 = vrot.lane.b32.xlu0 %v1355, 32
        %v3183 = vpop.permute.xlu0 %3182
        %3184 = vrot.lane.b32.xlu0 %v1356, 32
        %v3185 = vpop.permute.xlu0 %3184
        %3186 = vrot.lane.b32.xlu0 %v1357, 32
        %v3187 = vpop.permute.xlu0 %3186
        %3188 = vrot.lane.b32.xlu0 %v1358, 32
        %v3189 = vpop.permute.xlu0 %3188
        %3190 = vrot.lane.b32.xlu0 %v1359, 32
        %v3191 = vpop.permute.xlu0 %3190
        %3192 = vrot.lane.b32.xlu0 %v1360, 32
        %v3193 = vpop.permute.xlu0 %3192
        %3194 = vrot.lane.b32.xlu0 %v1361, 32
        %v3195 = vpop.permute.xlu0 %3194
        %3196 = vrot.lane.b32.xlu0 %v1362, 32
        %v3197 = vpop.permute.xlu0 %3196
        %3198 = vrot.lane.b32.xlu0 %v1363, 32
        %v3199 = vpop.permute.xlu0 %3198
        %3200 = vrot.lane.b32.xlu0 %v1364, 32
        %v3201 = vpop.permute.xlu0 %3200
        %3202 = vrot.lane.b32.xlu0 %v1365, 32
        %v3203 = vpop.permute.xlu0 %3202
        %3204 = vrot.lane.b32.xlu0 %v1366, 32
        %v3205 = vpop.permute.xlu0 %3204
        %3206 = vrot.lane.b32.xlu0 %v1367, 32
        %v3207 = vpop.permute.xlu0 %3206
        %v3224 = vmul.f32 %v3129, %v3177
        %v3225 = vmul.f32 %v3131, %v3179
        %v3226 = vmul.f32 %v3133, %v3181
        %v3227 = vmul.f32 %v3135, %v3183
        %v3228 = vmul.f32 %v3137, %v3185
        %v3229 = vmul.f32 %v3139, %v3187
        %v3230 = vmul.f32 %v3141, %v3189
        %v3231 = vmul.f32 %v3143, %v3191
        %v3232 = vmul.f32 %v3145, %v3193
        %v3233 = vmul.f32 %v3147, %v3195
        %v3234 = vmul.f32 %v3149, %v3197
        %v3235 = vmul.f32 %v3151, %v3199
        %v3236 = vmul.f32 %v3153, %v3201
        %v3237 = vmul.f32 %v3155, %v3203
        %v3238 = vmul.f32 %v3157, %v3205
        %v3239 = vmul.f32 %v3159, %v3207
        %v3240 = vpack.c.bf16 %v3225, %v3224
        %v3241 = vpack.c.bf16 %v3227, %v3226
        %v3242 = vpack.c.bf16 %v3229, %v3228
        %v3243 = vpack.c.bf16 %v3231, %v3230
        %v3244 = vpack.c.bf16 %v3233, %v3232
        %v3245 = vpack.c.bf16 %v3235, %v3234
        %v3246 = vpack.c.bf16 %v3237, %v3236
        %v3247 = vpack.c.bf16 %v3239, %v3238
        %3264 = vrot.lane.b32.xlu0 %v1400, 64
        %v3265 = vpop.permute.xlu0 %3264
        %3266 = vrot.lane.b32.xlu0 %v1401, 64
        %v3267 = vpop.permute.xlu0 %3266
        %3268 = vrot.lane.b32.xlu0 %v1402, 64
        %v3269 = vpop.permute.xlu0 %3268
        %3270 = vrot.lane.b32.xlu0 %v1403, 64
        %v3271 = vpop.permute.xlu0 %3270
        %3272 = vrot.lane.b32.xlu0 %v1404, 64
        %v3273 = vpop.permute.xlu0 %3272
        %3274 = vrot.lane.b32.xlu0 %v1405, 64
        %v3275 = vpop.permute.xlu0 %3274
        %3276 = vrot.lane.b32.xlu0 %v1406, 64
        %v3277 = vpop.permute.xlu0 %3276
        %3278 = vrot.lane.b32.xlu0 %v1407, 64
        %v3279 = vpop.permute.xlu0 %3278
        %3280 = vrot.lane.b32.xlu0 %v1408, 64
        %v3281 = vpop.permute.xlu0 %3280
        %3282 = vrot.lane.b32.xlu0 %v1409, 64
        %v3283 = vpop.permute.xlu0 %3282
        %3284 = vrot.lane.b32.xlu0 %v1410, 64
        %v3285 = vpop.permute.xlu0 %3284
        %3286 = vrot.lane.b32.xlu0 %v1411, 64
        %v3287 = vpop.permute.xlu0 %3286
        %3288 = vrot.lane.b32.xlu0 %v1412, 64
        %v3289 = vpop.permute.xlu0 %3288
        %3290 = vrot.lane.b32.xlu0 %v1413, 64
        %v3291 = vpop.permute.xlu0 %3290
        %3292 = vrot.lane.b32.xlu0 %v1414, 64
        %v3293 = vpop.permute.xlu0 %3292
        %3294 = vrot.lane.b32.xlu0 %v1415, 64
        %v3295 = vpop.permute.xlu0 %3294
        %v3312 = vmul.f32 %v3129, %v3265
        %v3313 = vmul.f32 %v3131, %v3267
        %v3314 = vmul.f32 %v3133, %v3269
        %v3315 = vmul.f32 %v3135, %v3271
        %v3316 = vmul.f32 %v3137, %v3273
        %v3317 = vmul.f32 %v3139, %v3275
        %v3318 = vmul.f32 %v3141, %v3277
        %v3319 = vmul.f32 %v3143, %v3279
        %v3320 = vmul.f32 %v3145, %v3281
        %v3321 = vmul.f32 %v3147, %v3283
        %v3322 = vmul.f32 %v3149, %v3285
        %v3323 = vmul.f32 %v3151, %v3287
        %v3324 = vmul.f32 %v3153, %v3289
        %v3325 = vmul.f32 %v3155, %v3291
        %v3326 = vmul.f32 %v3157, %v3293
        %v3327 = vmul.f32 %v3159, %v3295
        %v3328 = vpack.c.bf16 %v3313, %v3312
        %v3329 = vpack.c.bf16 %v3315, %v3314
        %v3330 = vpack.c.bf16 %v3317, %v3316
        %v3331 = vpack.c.bf16 %v3319, %v3318
        %v3332 = vpack.c.bf16 %v3321, %v3320
        %v3333 = vpack.c.bf16 %v3323, %v3322
        %v3334 = vpack.c.bf16 %v3325, %v3324
        %v3335 = vpack.c.bf16 %v3327, %v3326
        %3344 = vrot.lane.b32.xlu0 %v3240, 96
        %v3345 = vpop.permute.xlu0 %3344
        %3346 = vrot.lane.b32.xlu0 %v3241, 96
        %v3347 = vpop.permute.xlu0 %3346
        %3348 = vrot.lane.b32.xlu0 %v3242, 96
        %v3349 = vpop.permute.xlu0 %3348
        %3350 = vrot.lane.b32.xlu0 %v3243, 96
        %v3351 = vpop.permute.xlu0 %3350
        %3352 = vrot.lane.b32.xlu0 %v3244, 96
        %v3353 = vpop.permute.xlu0 %3352
        %3354 = vrot.lane.b32.xlu0 %v3245, 96
        %v3355 = vpop.permute.xlu0 %3354
        %3356 = vrot.lane.b32.xlu0 %v3246, 96
        %v3357 = vpop.permute.xlu0 %3356
        %3358 = vrot.lane.b32.xlu0 %v3247, 96
        %v3359 = vpop.permute.xlu0 %3358
        %3368 = vrot.lane.b32.xlu0 %v3328, 96
        %v3369 = vpop.permute.xlu0 %3368
        %3370 = vrot.lane.b32.xlu0 %v3329, 96
        %v3371 = vpop.permute.xlu0 %3370
        %3372 = vrot.lane.b32.xlu0 %v3330, 96
        %v3373 = vpop.permute.xlu0 %3372
        %3374 = vrot.lane.b32.xlu0 %v3331, 96
        %v3375 = vpop.permute.xlu0 %3374
        %3376 = vrot.lane.b32.xlu0 %v3332, 96
        %v3377 = vpop.permute.xlu0 %3376
        %3378 = vrot.lane.b32.xlu0 %v3333, 96
        %v3379 = vpop.permute.xlu0 %3378
        %3380 = vrot.lane.b32.xlu0 %v3334, 96
        %v3381 = vpop.permute.xlu0 %3380
        %3382 = vrot.lane.b32.xlu0 %v3335, 96
        %v3383 = vpop.permute.xlu0 %3382
        %v3386 = vsel %vm846, %v3345, %v3369
        %v3389 = vsel %vm846, %v3347, %v3371
        %v3392 = vsel %vm846, %v3349, %v3373
        %v3395 = vsel %vm846, %v3351, %v3375
        %v3398 = vsel %vm846, %v3353, %v3377
        %v3401 = vsel %vm846, %v3355, %v3379
        %v3404 = vsel %vm846, %v3357, %v3381
        %v3407 = vsel %vm846, %v3359, %v3383
        %v3408 = vsel %vm871, %v3386, %v831
        %v3410 = vsel %vm871, %v3389, %v833
        %v3412 = vsel %vm871, %v3392, %v835
        %v3414 = vsel %vm871, %v3395, %v837
        %v3416 = vsel %vm871, %v3398, %v839
        %v3418 = vsel %vm871, %v3401, %v841
        %v3420 = vsel %vm871, %v3404, %v843
        %v3422 = vsel %vm871, %v3407, %v845
        %v3424 = vld [vmem:[%s11] sm:$0xf]
        %v3425 = vld [vmem:[%s11 + $0x4] sm:$0xf]
        %v3426 = vld [vmem:[%s11 + $0x8] sm:$0xf]
        %v3427 = vld [vmem:[%s11 + $0xc] sm:$0xf]
        %v3428 = vld [vmem:[%s11 + $0x10] sm:$0xf]
        %v3429 = vld [vmem:[%s11 + $0x14] sm:$0xf]
        %v3430 = vld [vmem:[%s11 + $0x18] sm:$0xf]
        %v3431 = vld [vmem:[%s11 + $0x1c] sm:$0xf]
        %v3432 = vld [vmem:[%s11 + $0x20] sm:$0x3]
        %v3433 = vunpack.c.l.bf16 %v3408
        %v3434 = vunpack.c.h.bf16 %v3408
        %v3435 = vunpack.c.l.bf16 %v3410
        %v3436 = vunpack.c.h.bf16 %v3410
        %v3437 = vunpack.c.l.bf16 %v3412
        %v3438 = vunpack.c.h.bf16 %v3412
        %v3439 = vunpack.c.l.bf16 %v3414
        %v3440 = vunpack.c.h.bf16 %v3414
        %v3441 = vunpack.c.l.bf16 %v3416
        %v3442 = vunpack.c.h.bf16 %v3416
        %v3443 = vunpack.c.l.bf16 %v3418
        %v3444 = vunpack.c.h.bf16 %v3418
        %v3445 = vunpack.c.l.bf16 %v3420
        %v3446 = vunpack.c.h.bf16 %v3420
        %v3447 = vunpack.c.l.bf16 %v3422
        %v3448 = vunpack.c.h.bf16 %v3422
        %3449 = vmatprep.subr.bf16.mxu0 0
        %3450 = vmatpush1.bf16.msra.mxu0 %v3408
        %3451 = vmatprep.subr.bf16.mxu0 0
        %3452 = vmatpush1.bf16.msra.mxu0 %v3410
        %3453 = vmatprep.subr.bf16.mxu0 0
        %3454 = vmatpush1.bf16.msra.mxu0 %v3412
        %3455 = vmatprep.subr.bf16.mxu0 0
        %3456 = vmatpush1.bf16.msra.mxu0 %v3414
        %3457 = vmatprep.subr.bf16.mxu0 0
        %3458 = vmatpush1.bf16.msra.mxu0 %v3416
        %3459 = vmatprep.subr.bf16.mxu0 0
        %3460 = vmatpush1.bf16.msra.mxu0 %v3418
        %3461 = vmatprep.subr.bf16.mxu0 0
        %3462 = vmatpush1.bf16.msra.mxu0 %v3420
        %3463 = vmatprep.subr.bf16.mxu0 0
        %3464 = vmatpush1.bf16.msra.mxu0 %v3422
        %3465 = vmatprep.subr.bf16.mxu0 0
        %3466 = vmatpush1.bf16.msra.mxu0 0
        %3467 = vmatprep.subr.bf16.mxu0 0
        %3468 = vmatpush1.bf16.msra.mxu0 0
        %3469 = vmatprep.subr.bf16.mxu0 0
        %3470 = vmatpush1.bf16.msra.mxu0 0
        %3471 = vmatprep.subr.bf16.mxu0 0
        %3472 = vmatpush1.bf16.msra.mxu0 0
        %3473 = vmatprep.subr.bf16.mxu0 0
        %3474 = vmatpush1.bf16.msra.mxu0 0
        %3475 = vmatprep.subr.bf16.mxu0 0
        %3476 = vmatpush1.bf16.msra.mxu0 0
        %3477 = vmatprep.subr.bf16.mxu0 0
        %3478 = vmatpush1.bf16.msra.mxu0 0
        %3479 = vmatprep.subr.bf16.mxu0 0
        %3480 = vmatpush1.bf16.msra.mxu0 0
        %3481 = vmatprep.mubr.bf16.mxu0 0
        %3482 = vmatmul.mubr.bf16.gmra.mrb[0].mxu0 %v1528
        %v3483 = vpop.f32.mrb[0].mxu0
        %v3484 = vadd.f32 0.0, %v3483
        %v3485 = vpop.f32.mrb[0].mxu0
        %v3486 = vpop.f32.mrb[0].mxu0
        %v3487 = vadd.f32 0.0, %v3486
        %v3488 = vpop.f32.mrb[0].mxu0
        %3489 = vmatprep.mubr.bf16.mxu0 0
        %3490 = vmatmul.mubr.bf16.gmra.mrb[0].mxu0 %v1529
        %v3491 = vpop.f32.mrb[0].mxu0
        %v3492 = vadd.f32 0.0, %v3491
        %v3493 = vpop.f32.mrb[0].mxu0
        %v3494 = vpop.f32.mrb[0].mxu0
        %v3495 = vadd.f32 0.0, %v3494
        %v3496 = vpop.f32.mrb[0].mxu0
        %3497 = vmatprep.mubr.bf16.mxu0 0
        %3498 = vmatmul.mubr.bf16.gmra.mrb[0].mxu0 %v1530
        %v3499 = vpop.f32.mrb[0].mxu0
        %v3500 = vadd.f32 0.0, %v3499
        %v3501 = vpop.f32.mrb[0].mxu0
        %v3502 = vpop.f32.mrb[0].mxu0
        %v3503 = vadd.f32 0.0, %v3502
        %v3504 = vpop.f32.mrb[0].mxu0
        %3505 = vmatprep.mubr.bf16.mxu0 0
        %3506 = vmatmul.mubr.bf16.gmra.mrb[0].mxu0 %v1531
        %v3507 = vpop.f32.mrb[0].mxu0
        %v3508 = vadd.f32 0.0, %v3507
        %v3509 = vpop.f32.mrb[0].mxu0
        %v3510 = vpop.f32.mrb[0].mxu0
        %v3511 = vadd.f32 0.0, %v3510
        %v3512 = vpop.f32.mrb[0].mxu0
        %3513 = vmatprep.mubr.bf16.mxu0 0
        %3514 = vmatmul.mubr.bf16.gmra.mrb[0].mxu0 %v1532
        %v3515 = vpop.f32.mrb[0].mxu0
        %v3516 = vadd.f32 0.0, %v3515
        %v3517 = vpop.f32.mrb[0].mxu0
        %v3518 = vpop.f32.mrb[0].mxu0
        %v3519 = vadd.f32 0.0, %v3518
        %v3520 = vpop.f32.mrb[0].mxu0
        %3521 = vmatprep.mubr.bf16.mxu0 0
        %3522 = vmatmul.mubr.bf16.gmra.mrb[0].mxu0 %v1533
        %v3523 = vpop.f32.mrb[0].mxu0
        %v3524 = vadd.f32 0.0, %v3523
        %v3525 = vpop.f32.mrb[0].mxu0
        %v3526 = vpop.f32.mrb[0].mxu0
        %v3527 = vadd.f32 0.0, %v3526
        %v3528 = vpop.f32.mrb[0].mxu0
        %3529 = vmatprep.mubr.bf16.mxu0 0
        %3530 = vmatmul.mubr.bf16.gmra.mrb[0].mxu0 %v1534
        %v3531 = vpop.f32.mrb[0].mxu0
        %v3532 = vadd.f32 0.0, %v3531
        %v3533 = vpop.f32.mrb[0].mxu0
        %v3534 = vpop.f32.mrb[0].mxu0
        %v3535 = vadd.f32 0.0, %v3534
        %v3536 = vpop.f32.mrb[0].mxu0
        %3537 = vmatprep.mubr.bf16.mxu0 0
        %3538 = vmatmul.mubr.bf16.gmra.mrb[0].mxu0 %v1535
        %v3539 = vpop.f32.mrb[0].mxu0
        %v3540 = vadd.f32 0.0, %v3539
        %v3541 = vpop.f32.mrb[0].mxu0
        %v3542 = vpop.f32.mrb[0].mxu0
        %v3543 = vadd.f32 0.0, %v3542
        %v3544 = vpop.f32.mrb[0].mxu0
        %3545 = vdwg.mxu0
        %v3546 = vpack.c.bf16 %v3487, %v3484
        %v3547 = vpack.c.bf16 %v3495, %v3492
        %v3548 = vpack.c.bf16 %v3503, %v3500
        %v3549 = vpack.c.bf16 %v3511, %v3508
        %v3550 = vpack.c.bf16 %v3519, %v3516
        %v3551 = vpack.c.bf16 %v3527, %v3524
        %v3552 = vpack.c.bf16 %v3535, %v3532
        %v3553 = vpack.c.bf16 %v3543, %v3540
        %v3554 = vld [vmem:[%s12] sm:$0xf]
        %v3555 = vld [vmem:[%s12 + $0x4] sm:$0xf]
        %v3556 = vld [vmem:[%s12 + $0x8] sm:$0xf]
        %v3557 = vld [vmem:[%s12 + $0xc] sm:$0xf]
        %v3558 = vld [vmem:[%s12 + $0x10] sm:$0xf]
        %v3559 = vld [vmem:[%s12 + $0x14] sm:$0xf]
        %v3560 = vld [vmem:[%s12 + $0x18] sm:$0xf]
        %v3561 = vld [vmem:[%s12 + $0x1c] sm:$0xf]
        %v3562 = vld [vmem:[%s12 + $0x20] sm:$0x3]
        %v3572 = vunpack.c.l.b16 %v3554
        %v3573 = vunpack.c.l.b16 %v3555
        %v3574 = vunpack.c.l.b16 %v3556
        %v3575 = vunpack.c.l.b16 %v3557
        %v3576 = vunpack.c.l.b16 %v3558
        %v3577 = vunpack.c.l.b16 %v3559
        %v3578 = vunpack.c.l.b16 %v3560
        %v3579 = vunpack.c.l.b16 %v3561
        %v3580 = vunpack.c.l.b16 %v3562
        %v3581 = vpack.c.b16 %v3573, %v3572
        %v3582 = vpack.c.b16 %v3575, %v3574
        %v3583 = vpack.c.b16 %v3577, %v3576
        %v3584 = vpack.c.b16 %v3579, %v3578
        %v3585 = vpack.c.b16 %v3580, %v3580
        %v3591 = vsel %vm932, %v3546, 0
        %v3594 = vsel %vm932, %v3547, 0
        %v3597 = vsel %vm932, %v3548, 0
        %v3600 = vsel %vm932, %v3549, 0
        %v3603 = vsel %vm932, %v3550, 0
        %v3606 = vsel %vm932, %v3551, 0
        %v3609 = vsel %vm932, %v3552, 0
        %v3612 = vsel %vm932, %v3553, 0
        %v3615 = vsel %vm949, %v3585, 0
        %3617 = vmatprep.subr.bf16.mxu0 0
        %3618 = vmatpush1.bf16.msra.mxu0 %v3581
        %3619 = vmatprep.subr.bf16.mxu0 0
        %3620 = vmatpush1.bf16.msra.mxu0 %v3582
        %3621 = vmatprep.subr.bf16.mxu0 0
        %3622 = vmatpush1.bf16.msra.mxu0 %v3583
        %3623 = vmatprep.subr.bf16.mxu0 0
        %3624 = vmatpush1.bf16.msra.mxu0 %v3584
        %3625 = vmatprep.subr.bf16.mxu0 0
        %3626 = vmatpush1.bf16.msra.mxu0 %v3615
        %3627 = vmatprep.subr.bf16.mxu0 0
        %3628 = vmatpush1.bf16.msra.mxu0 0
        %3629 = vmatprep.subr.bf16.mxu0 0
        %3630 = vmatpush1.bf16.msra.mxu0 0
        %3631 = vmatprep.subr.bf16.mxu0 0
        %3632 = vmatpush1.bf16.msra.mxu0 0
        %3633 = vmatprep.subr.bf16.mxu0 0
        %3634 = vmatpush1.bf16.msra.mxu0 0
        %3635 = vmatprep.subr.bf16.mxu0 0
        %3636 = vmatpush1.bf16.msra.mxu0 0
        %3637 = vmatprep.subr.bf16.mxu0 0
        %3638 = vmatpush1.bf16.msra.mxu0 0
        %3639 = vmatprep.subr.bf16.mxu0 0
        %3640 = vmatpush1.bf16.msra.mxu0 0
        %3641 = vmatprep.subr.bf16.mxu0 0
        %3642 = vmatpush1.bf16.msra.mxu0 0
        %3643 = vmatprep.subr.bf16.mxu0 0
        %3644 = vmatpush1.bf16.msra.mxu0 0
        %3645 = vmatprep.subr.bf16.mxu0 0
        %3646 = vmatpush1.bf16.msra.mxu0 0
        %3647 = vmatprep.subr.bf16.mxu0 0
        %3648 = vmatpush1.bf16.msra.mxu0 0
        %3649 = vmatprep.mubr.bf16.mxu0 0
        %3650 = vmatmul.mubr.bf16.gmra.mrb[0].mxu0 %v3591
        %v3651 = vpop.f32.mrb[0].mxu0
        %v3652 = vadd.f32 0.0, %v3651
        %v3653 = vpop.f32.mrb[0].mxu0
        %v3654 = vpop.f32.mrb[0].mxu0
        %v3655 = vadd.f32 0.0, %v3654
        %v3656 = vpop.f32.mrb[0].mxu0
        %3657 = vmatprep.mubr.bf16.mxu0 0
        %3658 = vmatmul.mubr.bf16.gmra.mrb[0].mxu0 %v3594
        %v3659 = vpop.f32.mrb[0].mxu0
        %v3660 = vadd.f32 0.0, %v3659
        %v3661 = vpop.f32.mrb[0].mxu0
        %v3662 = vpop.f32.mrb[0].mxu0
        %v3663 = vadd.f32 0.0, %v3662
        %v3664 = vpop.f32.mrb[0].mxu0
        %3665 = vmatprep.mubr.bf16.mxu0 0
        %3666 = vmatmul.mubr.bf16.gmra.mrb[0].mxu0 %v3597
        %v3667 = vpop.f32.mrb[0].mxu0
        %v3668 = vadd.f32 0.0, %v3667
        %v3669 = vpop.f32.mrb[0].mxu0
        %v3670 = vpop.f32.mrb[0].mxu0
        %v3671 = vadd.f32 0.0, %v3670
        %v3672 = vpop.f32.mrb[0].mxu0
        %3673 = vmatprep.mubr.bf16.mxu0 0
        %3674 = vmatmul.mubr.bf16.gmra.mrb[0].mxu0 %v3600
        %v3675 = vpop.f32.mrb[0].mxu0
        %v3676 = vadd.f32 0.0, %v3675
        %v3677 = vpop.f32.mrb[0].mxu0
        %v3678 = vpop.f32.mrb[0].mxu0
        %v3679 = vadd.f32 0.0, %v3678
        %v3680 = vpop.f32.mrb[0].mxu0
        %3681 = vmatprep.mubr.bf16.mxu0 0
        %3682 = vmatmul.mubr.bf16.gmra.mrb[0].mxu0 %v3603
        %v3683 = vpop.f32.mrb[0].mxu0
        %v3684 = vadd.f32 0.0, %v3683
        %v3685 = vpop.f32.mrb[0].mxu0
        %v3686 = vpop.f32.mrb[0].mxu0
        %v3687 = vadd.f32 0.0, %v3686
        %v3688 = vpop.f32.mrb[0].mxu0
        %3689 = vmatprep.mubr.bf16.mxu0 0
        %3690 = vmatmul.mubr.bf16.gmra.mrb[0].mxu0 %v3606
        %v3691 = vpop.f32.mrb[0].mxu0
        %v3692 = vadd.f32 0.0, %v3691
        %v3693 = vpop.f32.mrb[0].mxu0
        %v3694 = vpop.f32.mrb[0].mxu0
        %v3695 = vadd.f32 0.0, %v3694
        %v3696 = vpop.f32.mrb[0].mxu0
        %3697 = vmatprep.mubr.bf16.mxu0 0
        %3698 = vmatmul.mubr.bf16.gmra.mrb[0].mxu0 %v3609
        %v3699 = vpop.f32.mrb[0].mxu0
        %v3700 = vadd.f32 0.0, %v3699
        %v3701 = vpop.f32.mrb[0].mxu0
        %v3702 = vpop.f32.mrb[0].mxu0
        %v3703 = vadd.f32 0.0, %v3702
        %v3704 = vpop.f32.mrb[0].mxu0
        %3705 = vmatprep.mubr.bf16.mxu0 0
        %3706 = vmatmul.mubr.bf16.gmra.mrb[0].mxu0 %v3612
        %v3707 = vpop.f32.mrb[0].mxu0
        %v3708 = vadd.f32 0.0, %v3707
        %v3709 = vpop.f32.mrb[0].mxu0
        %v3710 = vpop.f32.mrb[0].mxu0
        %v3711 = vadd.f32 0.0, %v3710
        %v3712 = vpop.f32.mrb[0].mxu0
        %3713 = vdwg.mxu0
        %v3723 = vunpack.c.l.b16 %v3424
        %v3724 = vunpack.c.l.b16 %v3425
        %v3725 = vunpack.c.l.b16 %v3426
        %v3726 = vunpack.c.l.b16 %v3427
        %v3727 = vunpack.c.l.b16 %v3428
        %v3728 = vunpack.c.l.b16 %v3429
        %v3729 = vunpack.c.l.b16 %v3430
        %v3730 = vunpack.c.l.b16 %v3431
        %v3731 = vunpack.c.l.b16 %v3432
        %v3732 = vpack.c.b16 %v3724, %v3723
        %v3733 = vpack.c.b16 %v3726, %v3725
        %v3734 = vpack.c.b16 %v3728, %v3727
        %v3735 = vpack.c.b16 %v3730, %v3729
        %v3736 = vpack.c.b16 %v3731, %v3731
        %v3741 = vsel %vm932, %v3408, 0
        %v3743 = vsel %vm932, %v3410, 0
        %v3745 = vsel %vm932, %v3412, 0
        %v3747 = vsel %vm932, %v3414, 0
        %v3749 = vsel %vm932, %v3416, 0
        %v3751 = vsel %vm932, %v3418, 0
        %v3753 = vsel %vm932, %v3420, 0
        %v3755 = vsel %vm932, %v3422, 0
        %v3758 = vsel %vm949, %v3736, 0
        %3760 = vmatprep.subr.bf16.mxu0 0
        %3761 = vmatpush1.bf16.msra.mxu0 %v3732
        %3762 = vmatprep.subr.bf16.mxu0 0
        %3763 = vmatpush1.bf16.msra.mxu0 %v3733
        %3764 = vmatprep.subr.bf16.mxu0 0
        %3765 = vmatpush1.bf16.msra.mxu0 %v3734
        %3766 = vmatprep.subr.bf16.mxu0 0
        %3767 = vmatpush1.bf16.msra.mxu0 %v3735
        %3768 = vmatprep.subr.bf16.mxu0 0
        %3769 = vmatpush1.bf16.msra.mxu0 %v3758
        %3770 = vmatprep.subr.bf16.mxu0 0
        %3771 = vmatpush1.bf16.msra.mxu0 0
        %3772 = vmatprep.subr.bf16.mxu0 0
        %3773 = vmatpush1.bf16.msra.mxu0 0
        %3774 = vmatprep.subr.bf16.mxu0 0
        %3775 = vmatpush1.bf16.msra.mxu0 0
        %3776 = vmatprep.subr.bf16.mxu0 0
        %3777 = vmatpush1.bf16.msra.mxu0 0
        %3778 = vmatprep.subr.bf16.mxu0 0
        %3779 = vmatpush1.bf16.msra.mxu0 0
        %3780 = vmatprep.subr.bf16.mxu0 0
        %3781 = vmatpush1.bf16.msra.mxu0 0
        %3782 = vmatprep.subr.bf16.mxu0 0
        %3783 = vmatpush1.bf16.msra.mxu0 0
        %3784 = vmatprep.subr.bf16.mxu0 0
        %3785 = vmatpush1.bf16.msra.mxu0 0
        %3786 = vmatprep.subr.bf16.mxu0 0
        %3787 = vmatpush1.bf16.msra.mxu0 0
        %3788 = vmatprep.subr.bf16.mxu0 0
        %3789 = vmatpush1.bf16.msra.mxu0 0
        %3790 = vmatprep.subr.bf16.mxu0 0
        %3791 = vmatpush1.bf16.msra.mxu0 0
        %3792 = vmatprep.mubr.bf16.mxu0 0
        %3793 = vmatmul.mubr.bf16.gmra.mrb[0].mxu0 %v3741
        %v3794 = vpop.f32.mrb[0].mxu0
        %v3795 = vadd.f32 %v3652, %v3794
        %v3796 = vpop.f32.mrb[0].mxu0
        %v3797 = vpop.f32.mrb[0].mxu0
        %v3798 = vadd.f32 %v3655, %v3797
        %v3799 = vpop.f32.mrb[0].mxu0
        %3800 = vmatprep.mubr.bf16.mxu0 0
        %3801 = vmatmul.mubr.bf16.gmra.mrb[0].mxu0 %v3743
        %v3802 = vpop.f32.mrb[0].mxu0
        %v3803 = vadd.f32 %v3660, %v3802
        %v3804 = vpop.f32.mrb[0].mxu0
        %v3805 = vpop.f32.mrb[0].mxu0
        %v3806 = vadd.f32 %v3663, %v3805
        %v3807 = vpop.f32.mrb[0].mxu0
        %3808 = vmatprep.mubr.bf16.mxu0 0
        %3809 = vmatmul.mubr.bf16.gmra.mrb[0].mxu0 %v3745
        %v3810 = vpop.f32.mrb[0].mxu0
        %v3811 = vadd.f32 %v3668, %v3810
        %v3812 = vpop.f32.mrb[0].mxu0
        %v3813 = vpop.f32.mrb[0].mxu0
        %v3814 = vadd.f32 %v3671, %v3813
        %v3815 = vpop.f32.mrb[0].mxu0
        %3816 = vmatprep.mubr.bf16.mxu0 0
        %3817 = vmatmul.mubr.bf16.gmra.mrb[0].mxu0 %v3747
        %v3818 = vpop.f32.mrb[0].mxu0
        %v3819 = vadd.f32 %v3676, %v3818
        %v3820 = vpop.f32.mrb[0].mxu0
        %v3821 = vpop.f32.mrb[0].mxu0
        %v3822 = vadd.f32 %v3679, %v3821
        %v3823 = vpop.f32.mrb[0].mxu0
        %3824 = vmatprep.mubr.bf16.mxu0 0
        %3825 = vmatmul.mubr.bf16.gmra.mrb[0].mxu0 %v3749
        %v3826 = vpop.f32.mrb[0].mxu0
        %v3827 = vadd.f32 %v3684, %v3826
        %v3828 = vpop.f32.mrb[0].mxu0
        %v3829 = vpop.f32.mrb[0].mxu0
        %v3830 = vadd.f32 %v3687, %v3829
        %v3831 = vpop.f32.mrb[0].mxu0
        %3832 = vmatprep.mubr.bf16.mxu0 0
        %3833 = vmatmul.mubr.bf16.gmra.mrb[0].mxu0 %v3751
        %v3834 = vpop.f32.mrb[0].mxu0
        %v3835 = vadd.f32 %v3692, %v3834
        %v3836 = vpop.f32.mrb[0].mxu0
        %v3837 = vpop.f32.mrb[0].mxu0
        %v3838 = vadd.f32 %v3695, %v3837
        %v3839 = vpop.f32.mrb[0].mxu0
        %3840 = vmatprep.mubr.bf16.mxu0 0
        %3841 = vmatmul.mubr.bf16.gmra.mrb[0].mxu0 %v3753
        %v3842 = vpop.f32.mrb[0].mxu0
        %v3843 = vadd.f32 %v3700, %v3842
        %v3844 = vpop.f32.mrb[0].mxu0
        %v3845 = vpop.f32.mrb[0].mxu0
        %v3846 = vadd.f32 %v3703, %v3845
        %v3847 = vpop.f32.mrb[0].mxu0
        %3848 = vmatprep.mubr.bf16.mxu0 0
        %3849 = vmatmul.mubr.bf16.gmra.mrb[0].mxu0 %v3755
        %v3850 = vpop.f32.mrb[0].mxu0
        %v3851 = vadd.f32 %v3708, %v3850
        %v3852 = vpop.f32.mrb[0].mxu0
        %v3853 = vpop.f32.mrb[0].mxu0
        %v3854 = vadd.f32 %v3711, %v3853
        %v3855 = vpop.f32.mrb[0].mxu0
        %3856 = vdwg.mxu0
        %3857 = vmatprep.subr.bf16.mxu0 0
        %3858 = vmatpush1.bf16.msra.mxu0 %v3546
        %3859 = vmatprep.subr.bf16.mxu0 0
        %3860 = vmatpush1.bf16.msra.mxu0 %v3547
        %3861 = vmatprep.subr.bf16.mxu0 0
        %3862 = vmatpush1.bf16.msra.mxu0 %v3548
        %3863 = vmatprep.subr.bf16.mxu0 0
        %3864 = vmatpush1.bf16.msra.mxu0 %v3549
        %3865 = vmatprep.subr.bf16.mxu0 0
        %3866 = vmatpush1.bf16.msra.mxu0 %v3550
        %3867 = vmatprep.subr.bf16.mxu0 0
        %3868 = vmatpush1.bf16.msra.mxu0 %v3551
        %3869 = vmatprep.subr.bf16.mxu0 0
        %3870 = vmatpush1.bf16.msra.mxu0 %v3552
        %3871 = vmatprep.subr.bf16.mxu0 0
        %3872 = vmatpush1.bf16.msra.mxu0 %v3553
        %3873 = vmatprep.subr.bf16.mxu0 0
        %3874 = vmatpush1.bf16.msra.mxu0 0
        %3875 = vmatprep.subr.bf16.mxu0 0
        %3876 = vmatpush1.bf16.msra.mxu0 0
        %3877 = vmatprep.subr.bf16.mxu0 0
        %3878 = vmatpush1.bf16.msra.mxu0 0
        %3879 = vmatprep.subr.bf16.mxu0 0
        %3880 = vmatpush1.bf16.msra.mxu0 0
        %3881 = vmatprep.subr.bf16.mxu0 0
        %3882 = vmatpush1.bf16.msra.mxu0 0
        %3883 = vmatprep.subr.bf16.mxu0 0
        %3884 = vmatpush1.bf16.msra.mxu0 0
        %3885 = vmatprep.subr.bf16.mxu0 0
        %3886 = vmatpush1.bf16.msra.mxu0 0
        %3887 = vmatprep.subr.bf16.mxu0 0
        %3888 = vmatpush1.bf16.msra.mxu0 0
        %3889 = vmatprep.mubr.bf16.mxu0 0
        %3890 = vmatmul.mubr.bf16.gmra.mrb[0].mxu0 %v1528
        %v3891 = vpop.f32.mrb[0].mxu0
        %v3892 = vadd.f32 0.0, %v3891
        %v3893 = vpop.f32.mrb[0].mxu0
        %v3894 = vpop.f32.mrb[0].mxu0
        %v3895 = vadd.f32 0.0, %v3894
        %v3896 = vpop.f32.mrb[0].mxu0
        %3897 = vmatprep.mubr.bf16.mxu0 0
        %3898 = vmatmul.mubr.bf16.gmra.mrb[0].mxu0 %v1529
        %v3899 = vpop.f32.mrb[0].mxu0
        %v3900 = vadd.f32 0.0, %v3899
        %v3901 = vpop.f32.mrb[0].mxu0
        %v3902 = vpop.f32.mrb[0].mxu0
        %v3903 = vadd.f32 0.0, %v3902
        %v3904 = vpop.f32.mrb[0].mxu0
        %3905 = vmatprep.mubr.bf16.mxu0 0
        %3906 = vmatmul.mubr.bf16.gmra.mrb[0].mxu0 %v1530
        %v3907 = vpop.f32.mrb[0].mxu0
        %v3908 = vadd.f32 0.0, %v3907
        %v3909 = vpop.f32.mrb[0].mxu0
        %v3910 = vpop.f32.mrb[0].mxu0
        %v3911 = vadd.f32 0.0, %v3910
        %v3912 = vpop.f32.mrb[0].mxu0
        %3913 = vmatprep.mubr.bf16.mxu0 0
        %3914 = vmatmul.mubr.bf16.gmra.mrb[0].mxu0 %v1531
        %v3915 = vpop.f32.mrb[0].mxu0
        %v3916 = vadd.f32 0.0, %v3915
        %v3917 = vpop.f32.mrb[0].mxu0
        %v3918 = vpop.f32.mrb[0].mxu0
        %v3919 = vadd.f32 0.0, %v3918
        %v3920 = vpop.f32.mrb[0].mxu0
        %3921 = vmatprep.mubr.bf16.mxu0 0
        %3922 = vmatmul.mubr.bf16.gmra.mrb[0].mxu0 %v1532
        %v3923 = vpop.f32.mrb[0].mxu0
        %v3924 = vadd.f32 0.0, %v3923
        %v3925 = vpop.f32.mrb[0].mxu0
        %v3926 = vpop.f32.mrb[0].mxu0
        %v3927 = vadd.f32 0.0, %v3926
        %v3928 = vpop.f32.mrb[0].mxu0
        %3929 = vmatprep.mubr.bf16.mxu0 0
        %3930 = vmatmul.mubr.bf16.gmra.mrb[0].mxu0 %v1533
        %v3931 = vpop.f32.mrb[0].mxu0
        %v3932 = vadd.f32 0.0, %v3931
        %v3933 = vpop.f32.mrb[0].mxu0
        %v3934 = vpop.f32.mrb[0].mxu0
        %v3935 = vadd.f32 0.0, %v3934
        %v3936 = vpop.f32.mrb[0].mxu0
        %3937 = vmatprep.mubr.bf16.mxu0 0
        %3938 = vmatmul.mubr.bf16.gmra.mrb[0].mxu0 %v1534
        %v3939 = vpop.f32.mrb[0].mxu0
        %v3940 = vadd.f32 0.0, %v3939
        %v3941 = vpop.f32.mrb[0].mxu0
        %v3942 = vpop.f32.mrb[0].mxu0
        %v3943 = vadd.f32 0.0, %v3942
        %v3944 = vpop.f32.mrb[0].mxu0
        %3945 = vmatprep.mubr.bf16.mxu0 0
        %3946 = vmatmul.mubr.bf16.gmra.mrb[0].mxu0 %v1535
        %v3947 = vpop.f32.mrb[0].mxu0
        %v3948 = vadd.f32 0.0, %v3947
        %v3949 = vpop.f32.mrb[0].mxu0
        %v3950 = vpop.f32.mrb[0].mxu0
        %v3951 = vadd.f32 0.0, %v3950
        %v3952 = vpop.f32.mrb[0].mxu0
        %3953 = vdwg.mxu0
        %v3954 = vmul.f32 %v3892, 2.0
        %v3955 = vmul.f32 %v3895, 2.0
        %v3956 = vmul.f32 %v3900, 2.0
        %v3957 = vmul.f32 %v3903, 2.0
        %v3958 = vmul.f32 %v3908, 2.0
        %v3959 = vmul.f32 %v3911, 2.0
        %v3960 = vmul.f32 %v3916, 2.0
        %v3961 = vmul.f32 %v3919, 2.0
        %v3962 = vmul.f32 %v3924, 2.0
        %v3963 = vmul.f32 %v3927, 2.0
        %v3964 = vmul.f32 %v3932, 2.0
        %v3965 = vmul.f32 %v3935, 2.0
        %v3966 = vmul.f32 %v3940, 2.0
        %v3967 = vmul.f32 %v3943, 2.0
        %v3968 = vmul.f32 %v3948, 2.0
        %v3969 = vmul.f32 %v3951, 2.0
        %v3970 = vsub.f32 %v3954, %v3433
        %v3971 = vsub.f32 %v3955, %v3434
        %v3972 = vsub.f32 %v3956, %v3435
        %v3973 = vsub.f32 %v3957, %v3436
        %v3974 = vsub.f32 %v3958, %v3437
        %v3975 = vsub.f32 %v3959, %v3438
        %v3976 = vsub.f32 %v3960, %v3439
        %v3977 = vsub.f32 %v3961, %v3440
        %v3978 = vsub.f32 %v3962, %v3441
        %v3979 = vsub.f32 %v3963, %v3442
        %v3980 = vsub.f32 %v3964, %v3443
        %v3981 = vsub.f32 %v3965, %v3444
        %v3982 = vsub.f32 %v3966, %v3445
        %v3983 = vsub.f32 %v3967, %v3446
        %v3984 = vsub.f32 %v3968, %v3447
        %v3985 = vsub.f32 %v3969, %v3448
        %v3986 = vpack.c.bf16 %v3971, %v3970
        %v3987 = vpack.c.bf16 %v3973, %v3972
        %v3988 = vpack.c.bf16 %v3975, %v3974
        %v3989 = vpack.c.bf16 %v3977, %v3976
        %v3990 = vpack.c.bf16 %v3979, %v3978
        %v3991 = vpack.c.bf16 %v3981, %v3980
        %v3992 = vpack.c.bf16 %v3983, %v3982
        %v3993 = vpack.c.bf16 %v3985, %v3984
        %s3994 = scalar_lea.vmem %s12, 36
        %v3995 = vld [vmem:[%s3994] sm:$0xf]
        %v3996 = vld [vmem:[%s3994 + $0x4] sm:$0xf]
        %v3997 = vld [vmem:[%s3994 + $0x8] sm:$0xf]
        %v3998 = vld [vmem:[%s3994 + $0xc] sm:$0xf]
        %v3999 = vld [vmem:[%s3994 + $0x10] sm:$0xf]
        %v4000 = vld [vmem:[%s3994 + $0x14] sm:$0xf]
        %v4001 = vld [vmem:[%s3994 + $0x18] sm:$0xf]
        %v4002 = vld [vmem:[%s3994 + $0x1c] sm:$0xf]
        %v4003 = vld [vmem:[%s3994 + $0x20] sm:$0x3]
        %v4013 = vunpack.c.l.b16 %v3995
        %v4014 = vunpack.c.l.b16 %v3996
        %v4015 = vunpack.c.l.b16 %v3997
        %v4016 = vunpack.c.l.b16 %v3998
        %v4017 = vunpack.c.l.b16 %v3999
        %v4018 = vunpack.c.l.b16 %v4000
        %v4019 = vunpack.c.l.b16 %v4001
        %v4020 = vunpack.c.l.b16 %v4002
        %v4021 = vunpack.c.l.b16 %v4003
        %v4022 = vpack.c.b16 %v4014, %v4013
        %v4023 = vpack.c.b16 %v4016, %v4015
        %v4024 = vpack.c.b16 %v4018, %v4017
        %v4025 = vpack.c.b16 %v4020, %v4019
        %v4026 = vpack.c.b16 %v4021, %v4021
        %v4032 = vsel %vm932, %v3986, 0
        %v4035 = vsel %vm932, %v3987, 0
        %v4038 = vsel %vm932, %v3988, 0
        %v4041 = vsel %vm932, %v3989, 0
        %v4044 = vsel %vm932, %v3990, 0
        %v4047 = vsel %vm932, %v3991, 0
        %v4050 = vsel %vm932, %v3992, 0
        %v4053 = vsel %vm932, %v3993, 0
        %v4056 = vsel %vm949, %v4026, 0
        %4058 = vmatprep.subr.bf16.mxu0 0
        %4059 = vmatpush1.bf16.msra.mxu0 %v4022
        %4060 = vmatprep.subr.bf16.mxu0 0
        %4061 = vmatpush1.bf16.msra.mxu0 %v4023
        %4062 = vmatprep.subr.bf16.mxu0 0
        %4063 = vmatpush1.bf16.msra.mxu0 %v4024
        %4064 = vmatprep.subr.bf16.mxu0 0
        %4065 = vmatpush1.bf16.msra.mxu0 %v4025
        %4066 = vmatprep.subr.bf16.mxu0 0
        %4067 = vmatpush1.bf16.msra.mxu0 %v4056
        %4068 = vmatprep.subr.bf16.mxu0 0
        %4069 = vmatpush1.bf16.msra.mxu0 0
        %4070 = vmatprep.subr.bf16.mxu0 0
        %4071 = vmatpush1.bf16.msra.mxu0 0
        %4072 = vmatprep.subr.bf16.mxu0 0
        %4073 = vmatpush1.bf16.msra.mxu0 0
        %4074 = vmatprep.subr.bf16.mxu0 0
        %4075 = vmatpush1.bf16.msra.mxu0 0
        %4076 = vmatprep.subr.bf16.mxu0 0
        %4077 = vmatpush1.bf16.msra.mxu0 0
        %4078 = vmatprep.subr.bf16.mxu0 0
        %4079 = vmatpush1.bf16.msra.mxu0 0
        %4080 = vmatprep.subr.bf16.mxu0 0
        %4081 = vmatpush1.bf16.msra.mxu0 0
        %4082 = vmatprep.subr.bf16.mxu0 0
        %4083 = vmatpush1.bf16.msra.mxu0 0
        %4084 = vmatprep.subr.bf16.mxu0 0
        %4085 = vmatpush1.bf16.msra.mxu0 0
        %4086 = vmatprep.subr.bf16.mxu0 0
        %4087 = vmatpush1.bf16.msra.mxu0 0
        %4088 = vmatprep.subr.bf16.mxu0 0
        %4089 = vmatpush1.bf16.msra.mxu0 0
        %4090 = vmatprep.mubr.bf16.mxu0 0
        %4091 = vmatmul.mubr.bf16.gmra.mrb[0].mxu0 %v4032
        %v4092 = vpop.f32.mrb[0].mxu0
        %v4093 = vadd.f32 0.0, %v4092
        %v4094 = vpop.f32.mrb[0].mxu0
        %v4095 = vpop.f32.mrb[0].mxu0
        %v4096 = vadd.f32 0.0, %v4095
        %v4097 = vpop.f32.mrb[0].mxu0
        %4098 = vmatprep.mubr.bf16.mxu0 0
        %4099 = vmatmul.mubr.bf16.gmra.mrb[0].mxu0 %v4035
        %v4100 = vpop.f32.mrb[0].mxu0
        %v4101 = vadd.f32 0.0, %v4100
        %v4102 = vpop.f32.mrb[0].mxu0
        %v4103 = vpop.f32.mrb[0].mxu0
        %v4104 = vadd.f32 0.0, %v4103
        %v4105 = vpop.f32.mrb[0].mxu0
        %4106 = vmatprep.mubr.bf16.mxu0 0
        %4107 = vmatmul.mubr.bf16.gmra.mrb[0].mxu0 %v4038
        %v4108 = vpop.f32.mrb[0].mxu0
        %v4109 = vadd.f32 0.0, %v4108
        %v4110 = vpop.f32.mrb[0].mxu0
        %v4111 = vpop.f32.mrb[0].mxu0
        %v4112 = vadd.f32 0.0, %v4111
        %v4113 = vpop.f32.mrb[0].mxu0
        %4114 = vmatprep.mubr.bf16.mxu0 0
        %4115 = vmatmul.mubr.bf16.gmra.mrb[0].mxu0 %v4041
        %v4116 = vpop.f32.mrb[0].mxu0
        %v4117 = vadd.f32 0.0, %v4116
        %v4118 = vpop.f32.mrb[0].mxu0
        %v4119 = vpop.f32.mrb[0].mxu0
        %v4120 = vadd.f32 0.0, %v4119
        %v4121 = vpop.f32.mrb[0].mxu0
        %4122 = vmatprep.mubr.bf16.mxu0 0
        %4123 = vmatmul.mubr.bf16.gmra.mrb[0].mxu0 %v4044
        %v4124 = vpop.f32.mrb[0].mxu0
        %v4125 = vadd.f32 0.0, %v4124
        %v4126 = vpop.f32.mrb[0].mxu0
        %v4127 = vpop.f32.mrb[0].mxu0
        %v4128 = vadd.f32 0.0, %v4127
        %v4129 = vpop.f32.mrb[0].mxu0
        %4130 = vmatprep.mubr.bf16.mxu0 0
        %4131 = vmatmul.mubr.bf16.gmra.mrb[0].mxu0 %v4047
        %v4132 = vpop.f32.mrb[0].mxu0
        %v4133 = vadd.f32 0.0, %v4132
        %v4134 = vpop.f32.mrb[0].mxu0
        %v4135 = vpop.f32.mrb[0].mxu0
        %v4136 = vadd.f32 0.0, %v4135
        %v4137 = vpop.f32.mrb[0].mxu0
        %4138 = vmatprep.mubr.bf16.mxu0 0
        %4139 = vmatmul.mubr.bf16.gmra.mrb[0].mxu0 %v4050
        %v4140 = vpop.f32.mrb[0].mxu0
        %v4141 = vadd.f32 0.0, %v4140
        %v4142 = vpop.f32.mrb[0].mxu0
        %v4143 = vpop.f32.mrb[0].mxu0
        %v4144 = vadd.f32 0.0, %v4143
        %v4145 = vpop.f32.mrb[0].mxu0
        %4146 = vmatprep.mubr.bf16.mxu0 0
        %4147 = vmatmul.mubr.bf16.gmra.mrb[0].mxu0 %v4053
        %v4148 = vpop.f32.mrb[0].mxu0
        %v4149 = vadd.f32 0.0, %v4148
        %v4150 = vpop.f32.mrb[0].mxu0
        %v4151 = vpop.f32.mrb[0].mxu0
        %v4152 = vadd.f32 0.0, %v4151
        %v4153 = vpop.f32.mrb[0].mxu0
        %4154 = vdwg.mxu0
        %v4155 = vadd.f32 %v3795, %v4093
        %v4156 = vadd.f32 %v3798, %v4096
        %v4157 = vadd.f32 %v3803, %v4101
        %v4158 = vadd.f32 %v3806, %v4104
        %v4159 = vadd.f32 %v3811, %v4109
        %v4160 = vadd.f32 %v3814, %v4112
        %v4161 = vadd.f32 %v3819, %v4117
        %v4162 = vadd.f32 %v3822, %v4120
        %v4163 = vadd.f32 %v3827, %v4125
        %v4164 = vadd.f32 %v3830, %v4128
        %v4165 = vadd.f32 %v3835, %v4133
        %v4166 = vadd.f32 %v3838, %v4136
        %v4167 = vadd.f32 %v3843, %v4141
        %v4168 = vadd.f32 %v3846, %v4144
        %v4169 = vadd.f32 %v3851, %v4149
        %v4170 = vadd.f32 %v3854, %v4152
        %4171 = vmatprep.subr.bf16.mxu0 0
        %4172 = vmatpush1.bf16.msra.mxu0 %v3408
        %4173 = vmatprep.subr.bf16.mxu0 0
        %4174 = vmatpush1.bf16.msra.mxu0 %v3410
        %4175 = vmatprep.subr.bf16.mxu0 0
        %4176 = vmatpush1.bf16.msra.mxu0 %v3412
        %4177 = vmatprep.subr.bf16.mxu0 0
        %4178 = vmatpush1.bf16.msra.mxu0 %v3414
        %4179 = vmatprep.subr.bf16.mxu0 0
        %4180 = vmatpush1.bf16.msra.mxu0 %v3416
        %4181 = vmatprep.subr.bf16.mxu0 0
        %4182 = vmatpush1.bf16.msra.mxu0 %v3418
        %4183 = vmatprep.subr.bf16.mxu0 0
        %4184 = vmatpush1.bf16.msra.mxu0 %v3420
        %4185 = vmatprep.subr.bf16.mxu0 0
        %4186 = vmatpush1.bf16.msra.mxu0 %v3422
        %4187 = vmatprep.subr.bf16.mxu0 0
        %4188 = vmatpush1.bf16.msra.mxu0 0
        %4189 = vmatprep.subr.bf16.mxu0 0
        %4190 = vmatpush1.bf16.msra.mxu0 0
        %4191 = vmatprep.subr.bf16.mxu0 0
        %4192 = vmatpush1.bf16.msra.mxu0 0
        %4193 = vmatprep.subr.bf16.mxu0 0
        %4194 = vmatpush1.bf16.msra.mxu0 0
        %4195 = vmatprep.subr.bf16.mxu0 0
        %4196 = vmatpush1.bf16.msra.mxu0 0
        %4197 = vmatprep.subr.bf16.mxu0 0
        %4198 = vmatpush1.bf16.msra.mxu0 0
        %4199 = vmatprep.subr.bf16.mxu0 0
        %4200 = vmatpush1.bf16.msra.mxu0 0
        %4201 = vmatprep.subr.bf16.mxu0 0
        %4202 = vmatpush1.bf16.msra.mxu0 0
        %4203 = vmatprep.mubr.bf16.mxu0 0
        %4204 = vmatmul.mubr.bf16.gmra.mrb[0].mxu0 %v2299
        %v4205 = vpop.f32.mrb[0].mxu0
        %v4206 = vadd.f32 0.0, %v4205
        %v4207 = vpop.f32.mrb[0].mxu0
        %v4208 = vpop.f32.mrb[0].mxu0
        %v4209 = vadd.f32 0.0, %v4208
        %v4210 = vpop.f32.mrb[0].mxu0
        %4211 = vmatprep.mubr.bf16.mxu0 0
        %4212 = vmatmul.mubr.bf16.gmra.mrb[0].mxu0 %v2300
        %v4213 = vpop.f32.mrb[0].mxu0
        %v4214 = vadd.f32 0.0, %v4213
        %v4215 = vpop.f32.mrb[0].mxu0
        %v4216 = vpop.f32.mrb[0].mxu0
        %v4217 = vadd.f32 0.0, %v4216
        %v4218 = vpop.f32.mrb[0].mxu0
        %4219 = vmatprep.mubr.bf16.mxu0 0
        %4220 = vmatmul.mubr.bf16.gmra.mrb[0].mxu0 %v2301
        %v4221 = vpop.f32.mrb[0].mxu0
        %v4222 = vadd.f32 0.0, %v4221
        %v4223 = vpop.f32.mrb[0].mxu0
        %v4224 = vpop.f32.mrb[0].mxu0
        %v4225 = vadd.f32 0.0, %v4224
        %v4226 = vpop.f32.mrb[0].mxu0
        %4227 = vmatprep.mubr.bf16.mxu0 0
        %4228 = vmatmul.mubr.bf16.gmra.mrb[0].mxu0 %v2302
        %v4229 = vpop.f32.mrb[0].mxu0
        %v4230 = vadd.f32 0.0, %v4229
        %v4231 = vpop.f32.mrb[0].mxu0
        %v4232 = vpop.f32.mrb[0].mxu0
        %v4233 = vadd.f32 0.0, %v4232
        %v4234 = vpop.f32.mrb[0].mxu0
        %4235 = vmatprep.mubr.bf16.mxu0 0
        %4236 = vmatmul.mubr.bf16.gmra.mrb[0].mxu0 %v2303
        %v4237 = vpop.f32.mrb[0].mxu0
        %v4238 = vadd.f32 0.0, %v4237
        %v4239 = vpop.f32.mrb[0].mxu0
        %v4240 = vpop.f32.mrb[0].mxu0
        %v4241 = vadd.f32 0.0, %v4240
        %v4242 = vpop.f32.mrb[0].mxu0
        %4243 = vmatprep.mubr.bf16.mxu0 0
        %4244 = vmatmul.mubr.bf16.gmra.mrb[0].mxu0 %v2304
        %v4245 = vpop.f32.mrb[0].mxu0
        %v4246 = vadd.f32 0.0, %v4245
        %v4247 = vpop.f32.mrb[0].mxu0
        %v4248 = vpop.f32.mrb[0].mxu0
        %v4249 = vadd.f32 0.0, %v4248
        %v4250 = vpop.f32.mrb[0].mxu0
        %4251 = vmatprep.mubr.bf16.mxu0 0
        %4252 = vmatmul.mubr.bf16.gmra.mrb[0].mxu0 %v2305
        %v4253 = vpop.f32.mrb[0].mxu0
        %v4254 = vadd.f32 0.0, %v4253
        %v4255 = vpop.f32.mrb[0].mxu0
        %v4256 = vpop.f32.mrb[0].mxu0
        %v4257 = vadd.f32 0.0, %v4256
        %v4258 = vpop.f32.mrb[0].mxu0
        %4259 = vmatprep.mubr.bf16.mxu0 0
        %4260 = vmatmul.mubr.bf16.gmra.mrb[0].mxu0 %v2306
        %v4261 = vpop.f32.mrb[0].mxu0
        %v4262 = vadd.f32 0.0, %v4261
        %v4263 = vpop.f32.mrb[0].mxu0
        %v4264 = vpop.f32.mrb[0].mxu0
        %v4265 = vadd.f32 0.0, %v4264
        %v4266 = vpop.f32.mrb[0].mxu0
        %4267 = vdwg.mxu0
        %v4268 = vpack.c.bf16 %v4209, %v4206
        %v4269 = vpack.c.bf16 %v4217, %v4214
        %v4270 = vpack.c.bf16 %v4225, %v4222
        %v4271 = vpack.c.bf16 %v4233, %v4230
        %v4272 = vpack.c.bf16 %v4241, %v4238
        %v4273 = vpack.c.bf16 %v4249, %v4246
        %v4274 = vpack.c.bf16 %v4257, %v4254
        %v4275 = vpack.c.bf16 %v4265, %v4262
        %s4276 = scalar_lea.vmem %s12, 72
        %v4277 = vld [vmem:[%s4276] sm:$0xf]
        %v4278 = vld [vmem:[%s4276 + $0x4] sm:$0xf]
        %v4279 = vld [vmem:[%s4276 + $0x8] sm:$0xf]
        %v4280 = vld [vmem:[%s4276 + $0xc] sm:$0xf]
        %v4281 = vld [vmem:[%s4276 + $0x10] sm:$0xf]
        %v4282 = vld [vmem:[%s4276 + $0x14] sm:$0xf]
        %v4283 = vld [vmem:[%s4276 + $0x18] sm:$0xf]
        %v4284 = vld [vmem:[%s4276 + $0x1c] sm:$0xf]
        %v4285 = vld [vmem:[%s4276 + $0x20] sm:$0x3]
        %v4295 = vunpack.c.l.b16 %v4277
        %v4296 = vunpack.c.l.b16 %v4278
        %v4297 = vunpack.c.l.b16 %v4279
        %v4298 = vunpack.c.l.b16 %v4280
        %v4299 = vunpack.c.l.b16 %v4281
        %v4300 = vunpack.c.l.b16 %v4282
        %v4301 = vunpack.c.l.b16 %v4283
        %v4302 = vunpack.c.l.b16 %v4284
        %v4303 = vunpack.c.l.b16 %v4285
        %v4304 = vpack.c.b16 %v4296, %v4295
        %v4305 = vpack.c.b16 %v4298, %v4297
        %v4306 = vpack.c.b16 %v4300, %v4299
        %v4307 = vpack.c.b16 %v4302, %v4301
        %v4308 = vpack.c.b16 %v4303, %v4303
        %v4314 = vsel %vm932, %v4268, 0
        %v4317 = vsel %vm932, %v4269, 0
        %v4320 = vsel %vm932, %v4270, 0
        %v4323 = vsel %vm932, %v4271, 0
        %v4326 = vsel %vm932, %v4272, 0
        %v4329 = vsel %vm932, %v4273, 0
        %v4332 = vsel %vm932, %v4274, 0
        %v4335 = vsel %vm932, %v4275, 0
        %v4338 = vsel %vm949, %v4308, 0
        %4340 = vmatprep.subr.bf16.mxu0 0
        %4341 = vmatpush1.bf16.msra.mxu0 %v4304
        %4342 = vmatprep.subr.bf16.mxu0 0
        %4343 = vmatpush1.bf16.msra.mxu0 %v4305
        %4344 = vmatprep.subr.bf16.mxu0 0
        %4345 = vmatpush1.bf16.msra.mxu0 %v4306
        %4346 = vmatprep.subr.bf16.mxu0 0
        %4347 = vmatpush1.bf16.msra.mxu0 %v4307
        %4348 = vmatprep.subr.bf16.mxu0 0
        %4349 = vmatpush1.bf16.msra.mxu0 %v4338
        %4350 = vmatprep.subr.bf16.mxu0 0
        %4351 = vmatpush1.bf16.msra.mxu0 0
        %4352 = vmatprep.subr.bf16.mxu0 0
        %4353 = vmatpush1.bf16.msra.mxu0 0
        %4354 = vmatprep.subr.bf16.mxu0 0
        %4355 = vmatpush1.bf16.msra.mxu0 0
        %4356 = vmatprep.subr.bf16.mxu0 0
        %4357 = vmatpush1.bf16.msra.mxu0 0
        %4358 = vmatprep.subr.bf16.mxu0 0
        %4359 = vmatpush1.bf16.msra.mxu0 0
        %4360 = vmatprep.subr.bf16.mxu0 0
        %4361 = vmatpush1.bf16.msra.mxu0 0
        %4362 = vmatprep.subr.bf16.mxu0 0
        %4363 = vmatpush1.bf16.msra.mxu0 0
        %4364 = vmatprep.subr.bf16.mxu0 0
        %4365 = vmatpush1.bf16.msra.mxu0 0
        %4366 = vmatprep.subr.bf16.mxu0 0
        %4367 = vmatpush1.bf16.msra.mxu0 0
        %4368 = vmatprep.subr.bf16.mxu0 0
        %4369 = vmatpush1.bf16.msra.mxu0 0
        %4370 = vmatprep.subr.bf16.mxu0 0
        %4371 = vmatpush1.bf16.msra.mxu0 0
        %4372 = vmatprep.mubr.bf16.mxu0 0
        %4373 = vmatmul.mubr.bf16.gmra.mrb[0].mxu0 %v4314
        %v4374 = vpop.f32.mrb[0].mxu0
        %v4375 = vadd.f32 0.0, %v4374
        %v4376 = vpop.f32.mrb[0].mxu0
        %v4377 = vpop.f32.mrb[0].mxu0
        %v4378 = vadd.f32 0.0, %v4377
        %v4379 = vpop.f32.mrb[0].mxu0
        %4380 = vmatprep.mubr.bf16.mxu0 0
        %4381 = vmatmul.mubr.bf16.gmra.mrb[0].mxu0 %v4317
        %v4382 = vpop.f32.mrb[0].mxu0
        %v4383 = vadd.f32 0.0, %v4382
        %v4384 = vpop.f32.mrb[0].mxu0
        %v4385 = vpop.f32.mrb[0].mxu0
        %v4386 = vadd.f32 0.0, %v4385
        %v4387 = vpop.f32.mrb[0].mxu0
        %4388 = vmatprep.mubr.bf16.mxu0 0
        %4389 = vmatmul.mubr.bf16.gmra.mrb[0].mxu0 %v4320
        %v4390 = vpop.f32.mrb[0].mxu0
        %v4391 = vadd.f32 0.0, %v4390
        %v4392 = vpop.f32.mrb[0].mxu0
        %v4393 = vpop.f32.mrb[0].mxu0
        %v4394 = vadd.f32 0.0, %v4393
        %v4395 = vpop.f32.mrb[0].mxu0
        %4396 = vmatprep.mubr.bf16.mxu0 0
        %4397 = vmatmul.mubr.bf16.gmra.mrb[0].mxu0 %v4323
        %v4398 = vpop.f32.mrb[0].mxu0
        %v4399 = vadd.f32 0.0, %v4398
        %v4400 = vpop.f32.mrb[0].mxu0
        %v4401 = vpop.f32.mrb[0].mxu0
        %v4402 = vadd.f32 0.0, %v4401
        %v4403 = vpop.f32.mrb[0].mxu0
        %4404 = vmatprep.mubr.bf16.mxu0 0
        %4405 = vmatmul.mubr.bf16.gmra.mrb[0].mxu0 %v4326
        %v4406 = vpop.f32.mrb[0].mxu0
        %v4407 = vadd.f32 0.0, %v4406
        %v4408 = vpop.f32.mrb[0].mxu0
        %v4409 = vpop.f32.mrb[0].mxu0
        %v4410 = vadd.f32 0.0, %v4409
        %v4411 = vpop.f32.mrb[0].mxu0
        %4412 = vmatprep.mubr.bf16.mxu0 0
        %4413 = vmatmul.mubr.bf16.gmra.mrb[0].mxu0 %v4329
        %v4414 = vpop.f32.mrb[0].mxu0
        %v4415 = vadd.f32 0.0, %v4414
        %v4416 = vpop.f32.mrb[0].mxu0
        %v4417 = vpop.f32.mrb[0].mxu0
        %v4418 = vadd.f32 0.0, %v4417
        %v4419 = vpop.f32.mrb[0].mxu0
        %4420 = vmatprep.mubr.bf16.mxu0 0
        %4421 = vmatmul.mubr.bf16.gmra.mrb[0].mxu0 %v4332
        %v4422 = vpop.f32.mrb[0].mxu0
        %v4423 = vadd.f32 0.0, %v4422
        %v4424 = vpop.f32.mrb[0].mxu0
        %v4425 = vpop.f32.mrb[0].mxu0
        %v4426 = vadd.f32 0.0, %v4425
        %v4427 = vpop.f32.mrb[0].mxu0
        %4428 = vmatprep.mubr.bf16.mxu0 0
        %4429 = vmatmul.mubr.bf16.gmra.mrb[0].mxu0 %v4335
        %v4430 = vpop.f32.mrb[0].mxu0
        %v4431 = vadd.f32 0.0, %v4430
        %v4432 = vpop.f32.mrb[0].mxu0
        %v4433 = vpop.f32.mrb[0].mxu0
        %v4434 = vadd.f32 0.0, %v4433
        %v4435 = vpop.f32.mrb[0].mxu0
        %4436 = vdwg.mxu0
        %v4437 = vadd.f32 %v4155, %v4375
        %v4438 = vadd.f32 %v4156, %v4378
        %v4439 = vadd.f32 %v4157, %v4383
        %v4440 = vadd.f32 %v4158, %v4386
        %v4441 = vadd.f32 %v4159, %v4391
        %v4442 = vadd.f32 %v4160, %v4394
        %v4443 = vadd.f32 %v4161, %v4399
        %v4444 = vadd.f32 %v4162, %v4402
        %v4445 = vadd.f32 %v4163, %v4407
        %v4446 = vadd.f32 %v4164, %v4410
        %v4447 = vadd.f32 %v4165, %v4415
        %v4448 = vadd.f32 %v4166, %v4418
        %v4449 = vadd.f32 %v4167, %v4423
        %v4450 = vadd.f32 %v4168, %v4426
        %v4451 = vadd.f32 %v4169, %v4431
        %v4452 = vadd.f32 %v4170, %v4434
        %4453 = vmatprep.subr.bf16.mxu0 0
        %4454 = vmatpush1.bf16.msra.mxu0 %v4268
        %4455 = vmatprep.subr.bf16.mxu0 0
        %4456 = vmatpush1.bf16.msra.mxu0 %v4269
        %4457 = vmatprep.subr.bf16.mxu0 0
        %4458 = vmatpush1.bf16.msra.mxu0 %v4270
        %4459 = vmatprep.subr.bf16.mxu0 0
        %4460 = vmatpush1.bf16.msra.mxu0 %v4271
        %4461 = vmatprep.subr.bf16.mxu0 0
        %4462 = vmatpush1.bf16.msra.mxu0 %v4272
        %4463 = vmatprep.subr.bf16.mxu0 0
        %4464 = vmatpush1.bf16.msra.mxu0 %v4273
        %4465 = vmatprep.subr.bf16.mxu0 0
        %4466 = vmatpush1.bf16.msra.mxu0 %v4274
        %4467 = vmatprep.subr.bf16.mxu0 0
        %4468 = vmatpush1.bf16.msra.mxu0 %v4275
        %4469 = vmatprep.subr.bf16.mxu0 0
        %4470 = vmatpush1.bf16.msra.mxu0 0
        %4471 = vmatprep.subr.bf16.mxu0 0
        %4472 = vmatpush1.bf16.msra.mxu0 0
        %4473 = vmatprep.subr.bf16.mxu0 0
        %4474 = vmatpush1.bf16.msra.mxu0 0
        %4475 = vmatprep.subr.bf16.mxu0 0
        %4476 = vmatpush1.bf16.msra.mxu0 0
        %4477 = vmatprep.subr.bf16.mxu0 0
        %4478 = vmatpush1.bf16.msra.mxu0 0
        %4479 = vmatprep.subr.bf16.mxu0 0
        %4480 = vmatpush1.bf16.msra.mxu0 0
        %4481 = vmatprep.subr.bf16.mxu0 0
        %4482 = vmatpush1.bf16.msra.mxu0 0
        %4483 = vmatprep.subr.bf16.mxu0 0
        %4484 = vmatpush1.bf16.msra.mxu0 0
        %4485 = vmatprep.mubr.bf16.mxu0 0
        %4486 = vmatmul.mubr.bf16.gmra.mrb[0].mxu0 %v2299
        %v4487 = vpop.f32.mrb[0].mxu0
        %v4488 = vadd.f32 0.0, %v4487
        %v4489 = vpop.f32.mrb[0].mxu0
        %v4490 = vpop.f32.mrb[0].mxu0
        %v4491 = vadd.f32 0.0, %v4490
        %v4492 = vpop.f32.mrb[0].mxu0
        %4493 = vmatprep.mubr.bf16.mxu0 0
        %4494 = vmatmul.mubr.bf16.gmra.mrb[0].mxu0 %v2300
        %v4495 = vpop.f32.mrb[0].mxu0
        %v4496 = vadd.f32 0.0, %v4495
        %v4497 = vpop.f32.mrb[0].mxu0
        %v4498 = vpop.f32.mrb[0].mxu0
        %v4499 = vadd.f32 0.0, %v4498
        %v4500 = vpop.f32.mrb[0].mxu0
        %4501 = vmatprep.mubr.bf16.mxu0 0
        %4502 = vmatmul.mubr.bf16.gmra.mrb[0].mxu0 %v2301
        %v4503 = vpop.f32.mrb[0].mxu0
        %v4504 = vadd.f32 0.0, %v4503
        %v4505 = vpop.f32.mrb[0].mxu0
        %v4506 = vpop.f32.mrb[0].mxu0
        %v4507 = vadd.f32 0.0, %v4506
        %v4508 = vpop.f32.mrb[0].mxu0
        %4509 = vmatprep.mubr.bf16.mxu0 0
        %4510 = vmatmul.mubr.bf16.gmra.mrb[0].mxu0 %v2302
        %v4511 = vpop.f32.mrb[0].mxu0
        %v4512 = vadd.f32 0.0, %v4511
        %v4513 = vpop.f32.mrb[0].mxu0
        %v4514 = vpop.f32.mrb[0].mxu0
        %v4515 = vadd.f32 0.0, %v4514
        %v4516 = vpop.f32.mrb[0].mxu0
        %4517 = vmatprep.mubr.bf16.mxu0 0
        %4518 = vmatmul.mubr.bf16.gmra.mrb[0].mxu0 %v2303
        %v4519 = vpop.f32.mrb[0].mxu0
        %v4520 = vadd.f32 0.0, %v4519
        %v4521 = vpop.f32.mrb[0].mxu0
        %v4522 = vpop.f32.mrb[0].mxu0
        %v4523 = vadd.f32 0.0, %v4522
        %v4524 = vpop.f32.mrb[0].mxu0
        %4525 = vmatprep.mubr.bf16.mxu0 0
        %4526 = vmatmul.mubr.bf16.gmra.mrb[0].mxu0 %v2304
        %v4527 = vpop.f32.mrb[0].mxu0
        %v4528 = vadd.f32 0.0, %v4527
        %v4529 = vpop.f32.mrb[0].mxu0
        %v4530 = vpop.f32.mrb[0].mxu0
        %v4531 = vadd.f32 0.0, %v4530
        %v4532 = vpop.f32.mrb[0].mxu0
        %4533 = vmatprep.mubr.bf16.mxu0 0
        %4534 = vmatmul.mubr.bf16.gmra.mrb[0].mxu0 %v2305
        %v4535 = vpop.f32.mrb[0].mxu0
        %v4536 = vadd.f32 0.0, %v4535
        %v4537 = vpop.f32.mrb[0].mxu0
        %v4538 = vpop.f32.mrb[0].mxu0
        %v4539 = vadd.f32 0.0, %v4538
        %v4540 = vpop.f32.mrb[0].mxu0
        %4541 = vmatprep.mubr.bf16.mxu0 0
        %4542 = vmatmul.mubr.bf16.gmra.mrb[0].mxu0 %v2306
        %v4543 = vpop.f32.mrb[0].mxu0
        %v4544 = vadd.f32 0.0, %v4543
        %v4545 = vpop.f32.mrb[0].mxu0
        %v4546 = vpop.f32.mrb[0].mxu0
        %v4547 = vadd.f32 0.0, %v4546
        %v4548 = vpop.f32.mrb[0].mxu0
        %4549 = vdwg.mxu0
        %v4550 = vmul.f32 %v4488, 2.0
        %v4551 = vmul.f32 %v4491, 2.0
        %v4552 = vmul.f32 %v4496, 2.0
        %v4553 = vmul.f32 %v4499, 2.0
        %v4554 = vmul.f32 %v4504, 2.0
        %v4555 = vmul.f32 %v4507, 2.0
        %v4556 = vmul.f32 %v4512, 2.0
        %v4557 = vmul.f32 %v4515, 2.0
        %v4558 = vmul.f32 %v4520, 2.0
        %v4559 = vmul.f32 %v4523, 2.0
        %v4560 = vmul.f32 %v4528, 2.0
        %v4561 = vmul.f32 %v4531, 2.0
        %v4562 = vmul.f32 %v4536, 2.0
        %v4563 = vmul.f32 %v4539, 2.0
        %v4564 = vmul.f32 %v4544, 2.0
        %v4565 = vmul.f32 %v4547, 2.0
        %v4566 = vsub.f32 %v4550, %v3433
        %v4567 = vsub.f32 %v4551, %v3434
        %v4568 = vsub.f32 %v4552, %v3435
        %v4569 = vsub.f32 %v4553, %v3436
        %v4570 = vsub.f32 %v4554, %v3437
        %v4571 = vsub.f32 %v4555, %v3438
        %v4572 = vsub.f32 %v4556, %v3439
        %v4573 = vsub.f32 %v4557, %v3440
        %v4574 = vsub.f32 %v4558, %v3441
        %v4575 = vsub.f32 %v4559, %v3442
        %v4576 = vsub.f32 %v4560, %v3443
        %v4577 = vsub.f32 %v4561, %v3444
        %v4578 = vsub.f32 %v4562, %v3445
        %v4579 = vsub.f32 %v4563, %v3446
        %v4580 = vsub.f32 %v4564, %v3447
        %v4581 = vsub.f32 %v4565, %v3448
        %v4582 = vpack.c.bf16 %v4567, %v4566
        %v4583 = vpack.c.bf16 %v4569, %v4568
        %v4584 = vpack.c.bf16 %v4571, %v4570
        %v4585 = vpack.c.bf16 %v4573, %v4572
        %v4586 = vpack.c.bf16 %v4575, %v4574
        %v4587 = vpack.c.bf16 %v4577, %v4576
        %v4588 = vpack.c.bf16 %v4579, %v4578
        %v4589 = vpack.c.bf16 %v4581, %v4580
        %s4590 = scalar_lea.vmem %s12, 108
        %v4591 = vld [vmem:[%s4590] sm:$0xf]
        %v4592 = vld [vmem:[%s4590 + $0x4] sm:$0xf]
        %v4593 = vld [vmem:[%s4590 + $0x8] sm:$0xf]
        %v4594 = vld [vmem:[%s4590 + $0xc] sm:$0xf]
        %v4595 = vld [vmem:[%s4590 + $0x10] sm:$0xf]
        %v4596 = vld [vmem:[%s4590 + $0x14] sm:$0xf]
        %v4597 = vld [vmem:[%s4590 + $0x18] sm:$0xf]
        %v4598 = vld [vmem:[%s4590 + $0x1c] sm:$0xf]
        %v4599 = vld [vmem:[%s4590 + $0x20] sm:$0x3]
        %v4609 = vunpack.c.l.b16 %v4591
        %v4610 = vunpack.c.l.b16 %v4592
        %v4611 = vunpack.c.l.b16 %v4593
        %v4612 = vunpack.c.l.b16 %v4594
        %v4613 = vunpack.c.l.b16 %v4595
        %v4614 = vunpack.c.l.b16 %v4596
        %v4615 = vunpack.c.l.b16 %v4597
        %v4616 = vunpack.c.l.b16 %v4598
        %v4617 = vunpack.c.l.b16 %v4599
        %v4618 = vpack.c.b16 %v4610, %v4609
        %v4619 = vpack.c.b16 %v4612, %v4611
        %v4620 = vpack.c.b16 %v4614, %v4613
        %v4621 = vpack.c.b16 %v4616, %v4615
        %v4622 = vpack.c.b16 %v4617, %v4617
        %v4628 = vsel %vm932, %v4582, 0
        %v4631 = vsel %vm932, %v4583, 0
        %v4634 = vsel %vm932, %v4584, 0
        %v4637 = vsel %vm932, %v4585, 0
        %v4640 = vsel %vm932, %v4586, 0
        %v4643 = vsel %vm932, %v4587, 0
        %v4646 = vsel %vm932, %v4588, 0
        %v4649 = vsel %vm932, %v4589, 0
        %v4652 = vsel %vm949, %v4622, 0
        %4654 = vmatprep.subr.bf16.mxu0 0
        %4655 = vmatpush1.bf16.msra.mxu0 %v4618
        %4656 = vmatprep.subr.bf16.mxu0 0
        %4657 = vmatpush1.bf16.msra.mxu0 %v4619
        %4658 = vmatprep.subr.bf16.mxu0 0
        %4659 = vmatpush1.bf16.msra.mxu0 %v4620
        %4660 = vmatprep.subr.bf16.mxu0 0
        %4661 = vmatpush1.bf16.msra.mxu0 %v4621
        %4662 = vmatprep.subr.bf16.mxu0 0
        %4663 = vmatpush1.bf16.msra.mxu0 %v4652
        %4664 = vmatprep.subr.bf16.mxu0 0
        %4665 = vmatpush1.bf16.msra.mxu0 0
        %4666 = vmatprep.subr.bf16.mxu0 0
        %4667 = vmatpush1.bf16.msra.mxu0 0
        %4668 = vmatprep.subr.bf16.mxu0 0
        %4669 = vmatpush1.bf16.msra.mxu0 0
        %4670 = vmatprep.subr.bf16.mxu0 0
        %4671 = vmatpush1.bf16.msra.mxu0 0
        %4672 = vmatprep.subr.bf16.mxu0 0
        %4673 = vmatpush1.bf16.msra.mxu0 0
        %4674 = vmatprep.subr.bf16.mxu0 0
        %4675 = vmatpush1.bf16.msra.mxu0 0
        %4676 = vmatprep.subr.bf16.mxu0 0
        %4677 = vmatpush1.bf16.msra.mxu0 0
        %4678 = vmatprep.subr.bf16.mxu0 0
        %4679 = vmatpush1.bf16.msra.mxu0 0
        %4680 = vmatprep.subr.bf16.mxu0 0
        %4681 = vmatpush1.bf16.msra.mxu0 0
        %4682 = vmatprep.subr.bf16.mxu0 0
        %4683 = vmatpush1.bf16.msra.mxu0 0
        %4684 = vmatprep.subr.bf16.mxu0 0
        %4685 = vmatpush1.bf16.msra.mxu0 0
        %4686 = vmatprep.mubr.bf16.mxu0 0
        %4687 = vmatmul.mubr.bf16.gmra.mrb[0].mxu0 %v4628
        %v4688 = vpop.f32.mrb[0].mxu0
        %v4689 = vadd.f32 0.0, %v4688
        %v4690 = vpop.f32.mrb[0].mxu0
        %v4691 = vpop.f32.mrb[0].mxu0
        %v4692 = vadd.f32 0.0, %v4691
        %v4693 = vpop.f32.mrb[0].mxu0
        %4694 = vmatprep.mubr.bf16.mxu0 0
        %4695 = vmatmul.mubr.bf16.gmra.mrb[0].mxu0 %v4631
        %v4696 = vpop.f32.mrb[0].mxu0
        %v4697 = vadd.f32 0.0, %v4696
        %v4698 = vpop.f32.mrb[0].mxu0
        %v4699 = vpop.f32.mrb[0].mxu0
        %v4700 = vadd.f32 0.0, %v4699
        %v4701 = vpop.f32.mrb[0].mxu0
        %4702 = vmatprep.mubr.bf16.mxu0 0
        %4703 = vmatmul.mubr.bf16.gmra.mrb[0].mxu0 %v4634
        %v4704 = vpop.f32.mrb[0].mxu0
        %v4705 = vadd.f32 0.0, %v4704
        %v4706 = vpop.f32.mrb[0].mxu0
        %v4707 = vpop.f32.mrb[0].mxu0
        %v4708 = vadd.f32 0.0, %v4707
        %v4709 = vpop.f32.mrb[0].mxu0
        %4710 = vmatprep.mubr.bf16.mxu0 0
        %4711 = vmatmul.mubr.bf16.gmra.mrb[0].mxu0 %v4637
        %v4712 = vpop.f32.mrb[0].mxu0
        %v4713 = vadd.f32 0.0, %v4712
        %v4714 = vpop.f32.mrb[0].mxu0
        %v4715 = vpop.f32.mrb[0].mxu0
        %v4716 = vadd.f32 0.0, %v4715
        %v4717 = vpop.f32.mrb[0].mxu0
        %4718 = vmatprep.mubr.bf16.mxu0 0
        %4719 = vmatmul.mubr.bf16.gmra.mrb[0].mxu0 %v4640
        %v4720 = vpop.f32.mrb[0].mxu0
        %v4721 = vadd.f32 0.0, %v4720
        %v4722 = vpop.f32.mrb[0].mxu0
        %v4723 = vpop.f32.mrb[0].mxu0
        %v4724 = vadd.f32 0.0, %v4723
        %v4725 = vpop.f32.mrb[0].mxu0
        %4726 = vmatprep.mubr.bf16.mxu0 0
        %4727 = vmatmul.mubr.bf16.gmra.mrb[0].mxu0 %v4643
        %v4728 = vpop.f32.mrb[0].mxu0
        %v4729 = vadd.f32 0.0, %v4728
        %v4730 = vpop.f32.mrb[0].mxu0
        %v4731 = vpop.f32.mrb[0].mxu0
        %v4732 = vadd.f32 0.0, %v4731
        %v4733 = vpop.f32.mrb[0].mxu0
        %4734 = vmatprep.mubr.bf16.mxu0 0
        %4735 = vmatmul.mubr.bf16.gmra.mrb[0].mxu0 %v4646
        %v4736 = vpop.f32.mrb[0].mxu0
        %v4737 = vadd.f32 0.0, %v4736
        %v4738 = vpop.f32.mrb[0].mxu0
        %v4739 = vpop.f32.mrb[0].mxu0
        %v4740 = vadd.f32 0.0, %v4739
        %v4741 = vpop.f32.mrb[0].mxu0
        %4742 = vmatprep.mubr.bf16.mxu0 0
        %4743 = vmatmul.mubr.bf16.gmra.mrb[0].mxu0 %v4649
        %v4744 = vpop.f32.mrb[0].mxu0
        %v4745 = vadd.f32 0.0, %v4744
        %v4746 = vpop.f32.mrb[0].mxu0
        %v4747 = vpop.f32.mrb[0].mxu0
        %v4748 = vadd.f32 0.0, %v4747
        %v4749 = vpop.f32.mrb[0].mxu0
        %4750 = vdwg.mxu0
        %v4751 = vadd.f32 %v4437, %v4689
        %v4752 = vadd.f32 %v4438, %v4692
        %v4753 = vadd.f32 %v4439, %v4697
        %v4754 = vadd.f32 %v4440, %v4700
        %v4755 = vadd.f32 %v4441, %v4705
        %v4756 = vadd.f32 %v4442, %v4708
        %v4757 = vadd.f32 %v4443, %v4713
        %v4758 = vadd.f32 %v4444, %v4716
        %v4759 = vadd.f32 %v4445, %v4721
        %v4760 = vadd.f32 %v4446, %v4724
        %v4761 = vadd.f32 %v4447, %v4729
        %v4762 = vadd.f32 %v4448, %v4732
        %v4763 = vadd.f32 %v4449, %v4737
        %v4764 = vadd.f32 %v4450, %v4740
        %v4765 = vadd.f32 %v4451, %v4745
        %v4766 = vadd.f32 %v4452, %v4748
        %v4767 = vld [vmem:[%s13] sm:$0x1]
        %v4769 = vlaneseq
        %v4770 = vshrl.u32 %v4769, 7
        %v4771 = vsub.s32 0, %v4770
        %v4772 = vrot.slane %v4767, %v4771
        %v4774 = vadd.f32 %v4751, %v4772
        %v4775 = vadd.f32 %v4752, %v4772
        %v4776 = vadd.f32 %v4753, %v4772
        %v4777 = vadd.f32 %v4754, %v4772
        %v4778 = vadd.f32 %v4755, %v4772
        %v4779 = vadd.f32 %v4756, %v4772
        %v4780 = vadd.f32 %v4757, %v4772
        %v4781 = vadd.f32 %v4758, %v4772
        %v4782 = vadd.f32 %v4759, %v4772
        %v4783 = vadd.f32 %v4760, %v4772
        %v4784 = vadd.f32 %v4761, %v4772
        %v4785 = vadd.f32 %v4762, %v4772
        %v4786 = vadd.f32 %v4763, %v4772
        %v4787 = vadd.f32 %v4764, %v4772
        %v4788 = vadd.f32 %v4765, %v4772
        %v4789 = vadd.f32 %v4766, %v4772
        %v4790 = vtanh.pop %v4774
        %v4791 = vtanh.pop %v4775
        %v4792 = vtanh.pop %v4776
        %v4793 = vtanh.pop %v4777
        %v4794 = vtanh.pop %v4778
        %v4795 = vtanh.pop %v4779
        %v4796 = vtanh.pop %v4780
        %v4797 = vtanh.pop %v4781
        %v4798 = vtanh.pop %v4782
        %v4799 = vtanh.pop %v4783
        %v4800 = vtanh.pop %v4784
        %v4801 = vtanh.pop %v4785
        %v4802 = vtanh.pop %v4786
        %v4803 = vtanh.pop %v4787
        %v4804 = vtanh.pop %v4788
        %v4805 = vtanh.pop %v4789
        %4822 = vrot.lane.b32.xlu0 %v1432, 96
        %v4823 = vpop.permute.xlu0 %4822
        %4824 = vrot.lane.b32.xlu0 %v1433, 96
        %v4825 = vpop.permute.xlu0 %4824
        %4826 = vrot.lane.b32.xlu0 %v1434, 96
        %v4827 = vpop.permute.xlu0 %4826
        %4828 = vrot.lane.b32.xlu0 %v1435, 96
        %v4829 = vpop.permute.xlu0 %4828
        %4830 = vrot.lane.b32.xlu0 %v1436, 96
        %v4831 = vpop.permute.xlu0 %4830
        %4832 = vrot.lane.b32.xlu0 %v1437, 96
        %v4833 = vpop.permute.xlu0 %4832
        %4834 = vrot.lane.b32.xlu0 %v1438, 96
        %v4835 = vpop.permute.xlu0 %4834
        %4836 = vrot.lane.b32.xlu0 %v1439, 96
        %v4837 = vpop.permute.xlu0 %4836
        %4838 = vrot.lane.b32.xlu0 %v1440, 96
        %v4839 = vpop.permute.xlu0 %4838
        %4840 = vrot.lane.b32.xlu0 %v1441, 96
        %v4841 = vpop.permute.xlu0 %4840
        %4842 = vrot.lane.b32.xlu0 %v1442, 96
        %v4843 = vpop.permute.xlu0 %4842
        %4844 = vrot.lane.b32.xlu0 %v1443, 96
        %v4845 = vpop.permute.xlu0 %4844
        %4846 = vrot.lane.b32.xlu0 %v1444, 96
        %v4847 = vpop.permute.xlu0 %4846
        %4848 = vrot.lane.b32.xlu0 %v1445, 96
        %v4849 = vpop.permute.xlu0 %4848
        %4850 = vrot.lane.b32.xlu0 %v1446, 96
        %v4851 = vpop.permute.xlu0 %4850
        %4852 = vrot.lane.b32.xlu0 %v1447, 96
        %v4853 = vpop.permute.xlu0 %4852
        %v4870 = vmul.f32 %v3129, %v4823
        %v4871 = vmul.f32 %v3131, %v4825
        %v4872 = vmul.f32 %v3133, %v4827
        %v4873 = vmul.f32 %v3135, %v4829
        %v4874 = vmul.f32 %v3137, %v4831
        %v4875 = vmul.f32 %v3139, %v4833
        %v4876 = vmul.f32 %v3141, %v4835
        %v4877 = vmul.f32 %v3143, %v4837
        %v4878 = vmul.f32 %v3145, %v4839
        %v4879 = vmul.f32 %v3147, %v4841
        %v4880 = vmul.f32 %v3149, %v4843
        %v4881 = vmul.f32 %v3151, %v4845
        %v4882 = vmul.f32 %v3153, %v4847
        %v4883 = vmul.f32 %v3155, %v4849
        %v4884 = vmul.f32 %v3157, %v4851
        %v4885 = vmul.f32 %v3159, %v4853
        %v4886 = vsub.f32 1.0, %v3129
        %v4887 = vsub.f32 1.0, %v3131
        %v4888 = vsub.f32 1.0, %v3133
        %v4889 = vsub.f32 1.0, %v3135
        %v4890 = vsub.f32 1.0, %v3137
        %v4891 = vsub.f32 1.0, %v3139
        %v4892 = vsub.f32 1.0, %v3141
        %v4893 = vsub.f32 1.0, %v3143
        %v4894 = vsub.f32 1.0, %v3145
        %v4895 = vsub.f32 1.0, %v3147
        %v4896 = vsub.f32 1.0, %v3149
        %v4897 = vsub.f32 1.0, %v3151
        %v4898 = vsub.f32 1.0, %v3153
        %v4899 = vsub.f32 1.0, %v3155
        %v4900 = vsub.f32 1.0, %v3157
        %v4901 = vsub.f32 1.0, %v3159
        %4918 = vrot.lane.b32.xlu0 %v4790, 96
        %v4919 = vpop.permute.xlu0 %4918
        %4920 = vrot.lane.b32.xlu0 %v4791, 96
        %v4921 = vpop.permute.xlu0 %4920
        %4922 = vrot.lane.b32.xlu0 %v4792, 96
        %v4923 = vpop.permute.xlu0 %4922
        %4924 = vrot.lane.b32.xlu0 %v4793, 96
        %v4925 = vpop.permute.xlu0 %4924
        %4926 = vrot.lane.b32.xlu0 %v4794, 96
        %v4927 = vpop.permute.xlu0 %4926
        %4928 = vrot.lane.b32.xlu0 %v4795, 96
        %v4929 = vpop.permute.xlu0 %4928
        %4930 = vrot.lane.b32.xlu0 %v4796, 96
        %v4931 = vpop.permute.xlu0 %4930
        %4932 = vrot.lane.b32.xlu0 %v4797, 96
        %v4933 = vpop.permute.xlu0 %4932
        %4934 = vrot.lane.b32.xlu0 %v4798, 96
        %v4935 = vpop.permute.xlu0 %4934
        %4936 = vrot.lane.b32.xlu0 %v4799, 96
        %v4937 = vpop.permute.xlu0 %4936
        %4938 = vrot.lane.b32.xlu0 %v4800, 96
        %v4939 = vpop.permute.xlu0 %4938
        %4940 = vrot.lane.b32.xlu0 %v4801, 96
        %v4941 = vpop.permute.xlu0 %4940
        %4942 = vrot.lane.b32.xlu0 %v4802, 96
        %v4943 = vpop.permute.xlu0 %4942
        %4944 = vrot.lane.b32.xlu0 %v4803, 96
        %v4945 = vpop.permute.xlu0 %4944
        %4946 = vrot.lane.b32.xlu0 %v4804, 96
        %v4947 = vpop.permute.xlu0 %4946
        %4948 = vrot.lane.b32.xlu0 %v4805, 96
        %v4949 = vpop.permute.xlu0 %4948
        %v4966 = vmul.f32 %v4886, %v4919
        %v4967 = vmul.f32 %v4887, %v4921
        %v4968 = vmul.f32 %v4888, %v4923
        %v4969 = vmul.f32 %v4889, %v4925
        %v4970 = vmul.f32 %v4890, %v4927
        %v4971 = vmul.f32 %v4891, %v4929
        %v4972 = vmul.f32 %v4892, %v4931
        %v4973 = vmul.f32 %v4893, %v4933
        %v4974 = vmul.f32 %v4894, %v4935
        %v4975 = vmul.f32 %v4895, %v4937
        %v4976 = vmul.f32 %v4896, %v4939
        %v4977 = vmul.f32 %v4897, %v4941
        %v4978 = vmul.f32 %v4898, %v4943
        %v4979 = vmul.f32 %v4899, %v4945
        %v4980 = vmul.f32 %v4900, %v4947
        %v4981 = vmul.f32 %v4901, %v4949
        %v4982 = vadd.f32 %v4870, %v4966
        %v4983 = vadd.f32 %v4871, %v4967
        %v4984 = vadd.f32 %v4872, %v4968
        %v4985 = vadd.f32 %v4873, %v4969
        %v4986 = vadd.f32 %v4874, %v4970
        %v4987 = vadd.f32 %v4875, %v4971
        %v4988 = vadd.f32 %v4876, %v4972
        %v4989 = vadd.f32 %v4877, %v4973
        %v4990 = vadd.f32 %v4878, %v4974
        %v4991 = vadd.f32 %v4879, %v4975
        %v4992 = vadd.f32 %v4880, %v4976
        %v4993 = vadd.f32 %v4881, %v4977
        %v4994 = vadd.f32 %v4882, %v4978
        %v4995 = vadd.f32 %v4883, %v4979
        %v4996 = vadd.f32 %v4884, %v4980
        %v4997 = vadd.f32 %v4885, %v4981
        %v4998 = vpack.c.bf16 %v4983, %v4982
        %v4999 = vpack.c.bf16 %v4985, %v4984
        %v5000 = vpack.c.bf16 %v4987, %v4986
        %v5001 = vpack.c.bf16 %v4989, %v4988
        %v5002 = vpack.c.bf16 %v4991, %v4990
        %v5003 = vpack.c.bf16 %v4993, %v4992
        %v5004 = vpack.c.bf16 %v4995, %v4994
        %v5005 = vpack.c.bf16 %v4997, %v4996
        %v5006 = vld [vmem:[%s14] sm:$0xf]
        %v5007 = vld [vmem:[%s14 + $0x4] sm:$0xf]
        %v5008 = vld [vmem:[%s14 + $0x8] sm:$0xf]
        %v5009 = vld [vmem:[%s14 + $0xc] sm:$0xf]
        %v5010 = vld [vmem:[%s15] sm:$0x1]
        %v5012 = vlaneseq
        %v5013 = vshrl.u32 %v5012, 7
        %v5014 = vsub.s32 0, %v5013
        %v5015 = vrot.slane %v5010, %v5014
        %5025 = vrot.lane.b32.xlu0 %v4998, 32
        %v5026 = vpop.permute.xlu0 %5025
        %5027 = vrot.lane.b32.xlu0 %v4999, 32
        %v5028 = vpop.permute.xlu0 %5027
        %5029 = vrot.lane.b32.xlu0 %v5000, 32
        %v5030 = vpop.permute.xlu0 %5029
        %5031 = vrot.lane.b32.xlu0 %v5001, 32
        %v5032 = vpop.permute.xlu0 %5031
        %5033 = vrot.lane.b32.xlu0 %v5002, 32
        %v5034 = vpop.permute.xlu0 %5033
        %5035 = vrot.lane.b32.xlu0 %v5003, 32
        %v5036 = vpop.permute.xlu0 %5035
        %5037 = vrot.lane.b32.xlu0 %v5004, 32
        %v5038 = vpop.permute.xlu0 %5037
        %5039 = vrot.lane.b32.xlu0 %v5005, 32
        %v5040 = vpop.permute.xlu0 %5039
        %v5045 = vunpack.c.l.b16 %v5006
        %v5046 = vunpack.c.l.b16 %v5007
        %v5047 = vunpack.c.l.b16 %v5008
        %v5048 = vunpack.c.l.b16 %v5009
        %v5049 = vpack.c.b16 %v5046, %v5045
        %v5050 = vpack.c.b16 %v5048, %v5047
        %v5054 = vsel %vm846, %v5026, 0
        %v5057 = vsel %vm846, %v5028, 0
        %v5060 = vsel %vm846, %v5030, 0
        %v5063 = vsel %vm846, %v5032, 0
        %v5066 = vsel %vm846, %v5034, 0
        %v5069 = vsel %vm846, %v5036, 0
        %v5072 = vsel %vm846, %v5038, 0
        %v5075 = vsel %vm846, %v5040, 0
        %5077 = vmatprep.subr.bf16.mxu0 0
        %5078 = vmatpush1.bf16.msra.mxu0 %v5049
        %5079 = vmatprep.subr.bf16.mxu0 0
        %5080 = vmatpush1.bf16.msra.mxu0 %v5050
        %5081 = vmatprep.subr.bf16.mxu0 0
        %5082 = vmatpush1.bf16.msra.mxu0 0
        %5083 = vmatprep.subr.bf16.mxu0 0
        %5084 = vmatpush1.bf16.msra.mxu0 0
        %5085 = vmatprep.subr.bf16.mxu0 0
        %5086 = vmatpush1.bf16.msra.mxu0 0
        %5087 = vmatprep.subr.bf16.mxu0 0
        %5088 = vmatpush1.bf16.msra.mxu0 0
        %5089 = vmatprep.subr.bf16.mxu0 0
        %5090 = vmatpush1.bf16.msra.mxu0 0
        %5091 = vmatprep.subr.bf16.mxu0 0
        %5092 = vmatpush1.bf16.msra.mxu0 0
        %5093 = vmatprep.subr.bf16.mxu0 0
        %5094 = vmatpush1.bf16.msra.mxu0 0
        %5095 = vmatprep.subr.bf16.mxu0 0
        %5096 = vmatpush1.bf16.msra.mxu0 0
        %5097 = vmatprep.subr.bf16.mxu0 0
        %5098 = vmatpush1.bf16.msra.mxu0 0
        %5099 = vmatprep.subr.bf16.mxu0 0
        %5100 = vmatpush1.bf16.msra.mxu0 0
        %5101 = vmatprep.subr.bf16.mxu0 0
        %5102 = vmatpush1.bf16.msra.mxu0 0
        %5103 = vmatprep.subr.bf16.mxu0 0
        %5104 = vmatpush1.bf16.msra.mxu0 0
        %5105 = vmatprep.subr.bf16.mxu0 0
        %5106 = vmatpush1.bf16.msra.mxu0 0
        %5107 = vmatprep.subr.bf16.mxu0 0
        %5108 = vmatpush1.bf16.msra.mxu0 0
        %5109 = vmatprep.mubr.bf16.mxu0 0
        %5110 = vmatmul.mubr.bf16.gmra.mrb[0].mxu0 %v5054
        %v5111 = vpop.f32.mrb[0].mxu0
        %v5112 = vadd.f32 %v5015, %v5111
        %v5113 = vpop.f32.mrb[0].mxu0
        %v5114 = vpop.f32.mrb[0].mxu0
        %v5115 = vadd.f32 %v5015, %v5114
        %v5116 = vpop.f32.mrb[0].mxu0
        %5117 = vmatprep.mubr.bf16.mxu0 0
        %5118 = vmatmul.mubr.bf16.gmra.mrb[0].mxu0 %v5057
        %v5119 = vpop.f32.mrb[0].mxu0
        %v5120 = vadd.f32 %v5015, %v5119
        %v5121 = vpop.f32.mrb[0].mxu0
        %v5122 = vpop.f32.mrb[0].mxu0
        %v5123 = vadd.f32 %v5015, %v5122
        %v5124 = vpop.f32.mrb[0].mxu0
        %5125 = vmatprep.mubr.bf16.mxu0 0
        %5126 = vmatmul.mubr.bf16.gmra.mrb[0].mxu0 %v5060
        %v5127 = vpop.f32.mrb[0].mxu0
        %v5128 = vadd.f32 %v5015, %v5127
        %v5129 = vpop.f32.mrb[0].mxu0
        %v5130 = vpop.f32.mrb[0].mxu0
        %v5131 = vadd.f32 %v5015, %v5130
        %v5132 = vpop.f32.mrb[0].mxu0
        %5133 = vmatprep.mubr.bf16.mxu0 0
        %5134 = vmatmul.mubr.bf16.gmra.mrb[0].mxu0 %v5063
        %v5135 = vpop.f32.mrb[0].mxu0
        %v5136 = vadd.f32 %v5015, %v5135
        %v5137 = vpop.f32.mrb[0].mxu0
        %v5138 = vpop.f32.mrb[0].mxu0
        %v5139 = vadd.f32 %v5015, %v5138
        %v5140 = vpop.f32.mrb[0].mxu0
        %5141 = vmatprep.mubr.bf16.mxu0 0
        %5142 = vmatmul.mubr.bf16.gmra.mrb[0].mxu0 %v5066
        %v5143 = vpop.f32.mrb[0].mxu0
        %v5144 = vadd.f32 %v5015, %v5143
        %v5145 = vpop.f32.mrb[0].mxu0
        %v5146 = vpop.f32.mrb[0].mxu0
        %v5147 = vadd.f32 %v5015, %v5146
        %v5148 = vpop.f32.mrb[0].mxu0
        %5149 = vmatprep.mubr.bf16.mxu0 0
        %5150 = vmatmul.mubr.bf16.gmra.mrb[0].mxu0 %v5069
        %v5151 = vpop.f32.mrb[0].mxu0
        %v5152 = vadd.f32 %v5015, %v5151
        %v5153 = vpop.f32.mrb[0].mxu0
        %v5154 = vpop.f32.mrb[0].mxu0
        %v5155 = vadd.f32 %v5015, %v5154
        %v5156 = vpop.f32.mrb[0].mxu0
        %5157 = vmatprep.mubr.bf16.mxu0 0
        %5158 = vmatmul.mubr.bf16.gmra.mrb[0].mxu0 %v5072
        %v5159 = vpop.f32.mrb[0].mxu0
        %v5160 = vadd.f32 %v5015, %v5159
        %v5161 = vpop.f32.mrb[0].mxu0
        %v5162 = vpop.f32.mrb[0].mxu0
        %v5163 = vadd.f32 %v5015, %v5162
        %v5164 = vpop.f32.mrb[0].mxu0
        %5165 = vmatprep.mubr.bf16.mxu0 0
        %5166 = vmatmul.mubr.bf16.gmra.mrb[0].mxu0 %v5075
        %v5167 = vpop.f32.mrb[0].mxu0
        %v5168 = vadd.f32 %v5015, %v5167
        %v5169 = vpop.f32.mrb[0].mxu0
        %v5170 = vpop.f32.mrb[0].mxu0
        %v5171 = vadd.f32 %v5015, %v5170
        %v5172 = vpop.f32.mrb[0].mxu0
        %5173 = vdwg.mxu0
        %5190 = vrot.lane.b32.xlu0 %v4982, 32
        %v5191 = vpop.permute.xlu0 %5190
        %5192 = vrot.lane.b32.xlu0 %v4983, 32
        %v5193 = vpop.permute.xlu0 %5192
        %5194 = vrot.lane.b32.xlu0 %v4984, 32
        %v5195 = vpop.permute.xlu0 %5194
        %5196 = vrot.lane.b32.xlu0 %v4985, 32
        %v5197 = vpop.permute.xlu0 %5196
        %5198 = vrot.lane.b32.xlu0 %v4986, 32
        %v5199 = vpop.permute.xlu0 %5198
        %5200 = vrot.lane.b32.xlu0 %v4987, 32
        %v5201 = vpop.permute.xlu0 %5200
        %5202 = vrot.lane.b32.xlu0 %v4988, 32
        %v5203 = vpop.permute.xlu0 %5202
        %5204 = vrot.lane.b32.xlu0 %v4989, 32
        %v5205 = vpop.permute.xlu0 %5204
        %5206 = vrot.lane.b32.xlu0 %v4990, 32
        %v5207 = vpop.permute.xlu0 %5206
        %5208 = vrot.lane.b32.xlu0 %v4991, 32
        %v5209 = vpop.permute.xlu0 %5208
        %5210 = vrot.lane.b32.xlu0 %v4992, 32
        %v5211 = vpop.permute.xlu0 %5210
        %5212 = vrot.lane.b32.xlu0 %v4993, 32
        %v5213 = vpop.permute.xlu0 %5212
        %5214 = vrot.lane.b32.xlu0 %v4994, 32
        %v5215 = vpop.permute.xlu0 %5214
        %5216 = vrot.lane.b32.xlu0 %v4995, 32
        %v5217 = vpop.permute.xlu0 %5216
        %5218 = vrot.lane.b32.xlu0 %v4996, 32
        %v5219 = vpop.permute.xlu0 %5218
        %5220 = vrot.lane.b32.xlu0 %v4997, 32
        %v5221 = vpop.permute.xlu0 %5220
        %5254 = vrot.lane.b32.xlu0 %v5112, 32
        %v5255 = vpop.permute.xlu0 %5254
        %5256 = vrot.lane.b32.xlu0 %v5115, 32
        %v5257 = vpop.permute.xlu0 %5256
        %5258 = vrot.lane.b32.xlu0 %v5120, 32
        %v5259 = vpop.permute.xlu0 %5258
        %5260 = vrot.lane.b32.xlu0 %v5123, 32
        %v5261 = vpop.permute.xlu0 %5260
        %5262 = vrot.lane.b32.xlu0 %v5128, 32
        %v5263 = vpop.permute.xlu0 %5262
        %5264 = vrot.lane.b32.xlu0 %v5131, 32
        %v5265 = vpop.permute.xlu0 %5264
        %5266 = vrot.lane.b32.xlu0 %v5136, 32
        %v5267 = vpop.permute.xlu0 %5266
        %5268 = vrot.lane.b32.xlu0 %v5139, 32
        %v5269 = vpop.permute.xlu0 %5268
        %5270 = vrot.lane.b32.xlu0 %v5144, 32
        %v5271 = vpop.permute.xlu0 %5270
        %5272 = vrot.lane.b32.xlu0 %v5147, 32
        %v5273 = vpop.permute.xlu0 %5272
        %5274 = vrot.lane.b32.xlu0 %v5152, 32
        %v5275 = vpop.permute.xlu0 %5274
        %5276 = vrot.lane.b32.xlu0 %v5155, 32
        %v5277 = vpop.permute.xlu0 %5276
        %5278 = vrot.lane.b32.xlu0 %v5160, 32
        %v5279 = vpop.permute.xlu0 %5278
        %5280 = vrot.lane.b32.xlu0 %v5163, 32
        %v5281 = vpop.permute.xlu0 %5280
        %5282 = vrot.lane.b32.xlu0 %v5168, 32
        %v5283 = vpop.permute.xlu0 %5282
        %5284 = vrot.lane.b32.xlu0 %v5171, 32
        %v5285 = vpop.permute.xlu0 %5284
        %v5302 = vsel %vm846, %v5191, %v5255
        %v5303 = vsel %vm846, %v5193, %v5257
        %v5304 = vsel %vm846, %v5195, %v5259
        %v5305 = vsel %vm846, %v5197, %v5261
        %v5306 = vsel %vm846, %v5199, %v5263
        %v5307 = vsel %vm846, %v5201, %v5265
        %v5308 = vsel %vm846, %v5203, %v5267
        %v5309 = vsel %vm846, %v5205, %v5269
        %v5310 = vsel %vm846, %v5207, %v5271
        %v5311 = vsel %vm846, %v5209, %v5273
        %v5312 = vsel %vm846, %v5211, %v5275
        %v5313 = vsel %vm846, %v5213, %v5277
        %v5314 = vsel %vm846, %v5215, %v5279
        %v5315 = vsel %vm846, %v5217, %v5281
        %v5316 = vsel %vm846, %v5219, %v5283
        %v5317 = vsel %vm846, %v5221, %v5285
        %vm5318 = vcmask 785408
        %v5319 = vsel %vm5318, %v5302, 0.0
        %v5320 = vsel %vm5318, %v5303, 0.0
        %v5321 = vsel %vm5318, %v5304, 0.0
        %v5322 = vsel %vm5318, %v5305, 0.0
        %v5323 = vsel %vm5318, %v5306, 0.0
        %v5324 = vsel %vm5318, %v5307, 0.0
        %v5325 = vsel %vm5318, %v5308, 0.0
        %v5326 = vsel %vm5318, %v5309, 0.0
        %v5327 = vsel %vm5318, %v5310, 0.0
        %v5328 = vsel %vm5318, %v5311, 0.0
        %v5329 = vsel %vm5318, %v5312, 0.0
        %v5330 = vsel %vm5318, %v5313, 0.0
        %v5331 = vsel %vm5318, %v5314, 0.0
        %v5332 = vsel %vm5318, %v5315, 0.0
        %v5333 = vsel %vm5318, %v5316, 0.0
        %v5334 = vsel %vm5318, %v5317, 0.0
        %5335 = vst [vmem:[%s593] sm:$0xff] %v5319
        %5336 = vst [vmem:[%s593 + $0x8] sm:$0xff] %v5320
        %5337 = vst [vmem:[%s593 + $0x10] sm:$0xff] %v5321
        %5338 = vst [vmem:[%s593 + $0x18] sm:$0xff] %v5322
        %5339 = vst [vmem:[%s593 + $0x20] sm:$0xff] %v5323
        %5340 = vst [vmem:[%s593 + $0x28] sm:$0xff] %v5324
        %5341 = vst [vmem:[%s593 + $0x30] sm:$0xff] %v5325
        %5342 = vst [vmem:[%s593 + $0x38] sm:$0xff] %v5326
        %5343 = vst [vmem:[%s593 + $0x40] sm:$0xff] %v5327
        %5344 = vst [vmem:[%s593 + $0x48] sm:$0xff] %v5328
        %5345 = vst [vmem:[%s593 + $0x50] sm:$0xff] %v5329
        %5346 = vst [vmem:[%s593 + $0x58] sm:$0xff] %v5330
        %5347 = vst [vmem:[%s593 + $0x60] sm:$0xff] %v5331
        %5348 = vst [vmem:[%s593 + $0x68] sm:$0xff] %v5332
        %5349 = vst [vmem:[%s593 + $0x70] sm:$0xff] %v5333
        %5350 = vst [vmem:[%s593 + $0x78] sm:$0xff] %v5334
        %s5351 = sand.u32 %s404, 1
        %s5352 = scalar_lea.sflag [#allocation3], %s5351
        %s5353 = sand.u32 %s404, 1
        %s5354 = smul.addr %s5353, 128
        %s5355 = scalar_lea.vmem [#allocation2], %s5354
        // Predicated region
        $region85: #{tpu_custom_call.1} parent=83 // pred_check
          %p5356 = pneg %p414
        $region86: #{tpu_custom_call.1} parent=83 // pred_check_branch
          %5358 = sbr.rel (%p5356) target = $region88
        $region87: #{tpu_custom_call.1} parent=83 // pred_region
          %s5359 = smul.u32 16, %s30
          %s5361 = ssub.s32 2048, 2048
          %5362 = vsyncadd %s5352, %s5361
          %s5363 = smul.addr %s5359, 128
          %s5364 = scalar_lea.hbm %s16, %s5363
          %s5365 = sshll.u32 %s5355, 4
          %s5366 = int_to_ptr.vmem [resolvable:$true] %s5365
          %5371 = dma.vmem_to_hbm [thread:$0]  %s5366, 2048, %s5364, %s5352, 128, 128, 8
        $region88: #{tpu_custom_call.1} parent=83 // pred_fallthru
          _
      $region84: #{tpu_custom_call.1} parent=5 // pred_fallthru
        _
      %p5372 = scmp.le.s32.totalorder 2, %s25
      // Predicated region
      $region89: #{tpu_custom_call.1} parent=5 // pred_check
        %p5373 = pneg %p5372
      $region90: #{tpu_custom_call.1} parent=5 // pred_check_branch
        %5375 = sbr.rel (%p5373) target = $region92
      $region91: #{tpu_custom_call.1} parent=5 // pred_region
        %s5376 = ssub.s32 %s25, 2
        // Predicated region
        $region93: #{tpu_custom_call.1} parent=91 // pred_check
          %p5377 = pneg %p420
        $region94: #{tpu_custom_call.1} parent=91 // pred_check_branch
          %5379 = sbr.rel (%p5377) target = $region96
        $region95: #{tpu_custom_call.1} parent=91 // pred_region
          %s5380 = sand.u32 %s405, 1
          %s5381 = scalar_lea.sflag [#allocation3], %s5380
          %s5382 = sand.u32 %s405, 1
          %s5383 = smul.addr %s5382, 128
          %s5384 = scalar_lea.vmem [#allocation2], %s5383
          %5385 = dma.done %s5381, 2048
        $region96: #{tpu_custom_call.1} parent=91 // pred_fallthru
          _
      $region92: #{tpu_custom_call.1} parent=5 // pred_fallthru
        _
    $region6: #{tpu_custom_call.1} parent=1 // loop_footer
      %s29 = sadd.s32 1, %s25
    $region7: #{tpu_custom_call.1} parent=1 // loop_footer_branch
      %24 = sbr.rel target = $region3
    $region8: #{tpu_custom_call.1} parent=1 // loop_exit
      _
    %5386 = vsyncpa [#allocation3], 1
    %s5387 = scalar_lea.sflag [#allocation3], 1
    %5388 = vsyncpa %s5387, 1

</llo_original>
